<compile_context>
chip_gen: v7x
topology: tpu7x:2x2x1
jax: 0.10.0
libtpu: 0.0.40
codegen_flags: <defaults>
</compile_context>

<pallas_src>
import functools
import math

import jax
import jax.numpy as jnp
from jax.experimental import pallas as pl
from jax.experimental.pallas import tpu as pltpu

# Small synthetic BERT config (bert-base-chinese scaled down for the demo).
# head_dim=128 keeps every per-head slice 128-lane aligned on TPU.
CFG = dict(
    vocab=128,         # vocab size
    hidden=256,        # hidden size
    layers=2,          # transformer layers
    heads=2,           # attention heads
    head_dim=128,      # hidden // heads (lane-aligned)
    intermediate=512,  # FFN size
    max_pos=32,        # max position embeddings
    type_vocab=2,      # token type vocab
    num_classes=1,     # num_labels=1, as in SentimentClassifier
)
LN_EPS = 1e-12  # BERT LayerNorm eps


# ---------------------------------------------------------------------------
# Kernel: one (batch example, layer) step of the encoder.
#   l == 0   : embedding LayerNorm into the persistent VMEM hidden-state scratch
#   every l  : attention + FFN block (bf16 matmuls, f32 accum / elementwise)
#   l == L-1 : pooler (tanh on CLS token) + classifier head -> logits
# ---------------------------------------------------------------------------
def _bert_layer_kernel(S, NH, DH, L,
                       emb_ref, mask_ref, embln_ref,
                       wqkv_ref, wo_ref, w1_ref, w2_ref,
                       bqkv_ref, b1_ref, lvec_ref,
                       poolw_ref, poolb_ref, clsw_ref, clsb_ref,
                       o_ref, h_ref, ctx_ref):
    H = NH * DH
    l = pl.program_id(1)

    def _ln(x, g, b):
        mu = jnp.mean(x, axis=-1, keepdims=True)
        xc = x - mu
        var = jnp.mean(xc * xc, axis=-1, keepdims=True)
        return xc * jax.lax.rsqrt(var + LN_EPS) * g + b

    def _gelu(y):
        # TODO(synk): HF BERT uses exact erf-GELU; tanh approximation kept here
        # (erf lowering is not guaranteed in Mosaic).
        c = 0.7978845608028654  # sqrt(2/pi)
        return 0.5 * y * (1.0 + jnp.tanh(c * (y + 0.044715 * y * y * y)))

    def _mm(a, w):
        # bf16 operands on the MXU, f32 accumulation.
        return jnp.dot(a.astype(jnp.bfloat16), w.astype(jnp.bfloat16),
                       preferred_element_type=jnp.float32)

    # --- init: embedding LayerNorm into the persistent hidden-state scratch ---
    @pl.when(l == 0)
    def _():
        h_ref[...] = _ln(emb_ref[...], embln_ref[0:1, :], embln_ref[1:2, :])

    h = h_ref[...]                                                    # (S, H) f32

    # Additive attention mask for this example (cheap VPU filler).
    add_mask = (1.0 - mask_ref[...].astype(jnp.float32)) * -10000.0  # (1, S)

    # --- self-attention ---
    # Packed QKV projection: one lane-dense (S, 3H) matmul (scale folded into Q weights).
    qkv = _mm(h, wqkv_ref[...]) + bqkv_ref[...]                       # (S, 3H) f32

    for hh in range(NH):                                              # NH small, static
        c0 = hh * DH                                                  # 128-lane aligned
        q = qkv[:, c0:c0 + DH].astype(jnp.bfloat16)                   # (S, DH)
        k = qkv[:, H + c0:H + c0 + DH].astype(jnp.bfloat16)           # (S, DH)
        v = qkv[:, 2 * H + c0:2 * H + c0 + DH].astype(jnp.bfloat16)   # (S, DH)
        s = jax.lax.dot_general(q, k, (((1,), (1,)), ((), ())),
                                preferred_element_type=jnp.float32)   # (S, S)
        s = s + add_mask
        s = s - jnp.max(s, axis=-1, keepdims=True)
        p = jnp.exp(s)
        p = p / jnp.sum(p, axis=-1, keepdims=True)                    # exact softmax
        ctx_ref[:, c0:c0 + DH] = jnp.dot(p.astype(jnp.bfloat16), v,
                                         preferred_element_type=jnp.float32)

    attn_out = _mm(ctx_ref[...], wo_ref[...]) + lvec_ref[0:1, :]      # + bo
    h = _ln(h + attn_out, lvec_ref[2:3, :], lvec_ref[3:4, :])         # LN1

    # --- FFN ---
    inter = _gelu(_mm(h, w1_ref[...]) + b1_ref[...])                  # (S, I)
    ffn_out = _mm(inter, w2_ref[...]) + lvec_ref[1:2, :]              # + b2
    h = _ln(h + ffn_out, lvec_ref[4:5, :], lvec_ref[5:6, :])          # LN2

    h_ref[...] = h                                                    # carry to next layer

    # --- finalize: pooler (CLS token) + classifier head ---
    @pl.when(l == L - 1)
    def _():
        cls_tok = h[0:1, :]                                           # (1, H)
        pooled = jnp.tanh(_mm(cls_tok, poolw_ref[...]) + poolb_ref[...])
        logits = jnp.dot(pooled, clsw_ref[...],
                         preferred_element_type=jnp.float32) + clsb_ref[...]
        o_ref[...] = logits.astype(o_ref.dtype)


# ---------------------------------------------------------------------------
# pallas_call wrapper
# ---------------------------------------------------------------------------
def bert_fused_forward(inputs, B, S, NH, DH, L, IM, C):
    H = NH * DH
    kernel = functools.partial(_bert_layer_kernel, S, NH, DH, L)

    in_specs = [
        pl.BlockSpec((S, H), lambda b, l: (b, 0)),                 # emb slab
        pl.BlockSpec((None, 1, S), lambda b, l: (b, 0, 0)),        # attention mask
        pl.BlockSpec((2, H), lambda b, l: (0, 0)),                 # emb LN gamma/beta
        pl.BlockSpec((None, H, 3 * H), lambda b, l: (l, 0, 0)),    # wqkv (bf16)
        pl.BlockSpec((None, H, H), lambda b, l: (l, 0, 0)),        # wo   (bf16)
        pl.BlockSpec((None, H, IM), lambda b, l: (l, 0, 0)),       # w1   (bf16)
        pl.BlockSpec((None, IM, H), lambda b, l: (l, 0, 0)),       # w2   (bf16)
        pl.BlockSpec((None, 1, 3 * H), lambda b, l: (l, 0, 0)),    # bqkv
        pl.BlockSpec((None, 1, IM), lambda b, l: (l, 0, 0)),       # b1
        pl.BlockSpec((None, 6, H), lambda b, l: (l, 0, 0)),        # [bo,b2,ln1g,ln1b,ln2g,ln2b]
        pl.BlockSpec((H, H), lambda b, l: (0, 0)),                 # pooler W (bf16)
        pl.BlockSpec((1, H), lambda b, l: (0, 0)),                 # pooler b
        pl.BlockSpec((H, C), lambda b, l: (0, 0)),                 # classifier W
        pl.BlockSpec((1, C), lambda b, l: (0, 0)),                 # classifier b
    ]
    out_specs = pl.BlockSpec((None, 1, C), lambda b, l: (b, 0, 0))

    out = pl.pallas_call(
        kernel,
        out_shape=jax.ShapeDtypeStruct((B, 1, C), jnp.float32),
        grid=(B, L),
        in_specs=in_specs,
        out_specs=out_specs,
        scratch_shapes=[
            pltpu.VMEM((S, H), jnp.float32),   # hidden-state carry across layers
            pltpu.VMEM((S, H), jnp.float32),   # per-head context (aligned writes)
        ],
        compiler_params=pltpu.CompilerParams(
            dimension_semantics=("parallel", "arbitrary"),
            vmem_limit_bytes=32 * 1024 * 1024,
        ),
    )(*inputs)
    return out.reshape(B, C)


# ---------------------------------------------------------------------------
# Parameter init (deterministic, synthetic — no checkpoint load).
# Layer weights are stacked along L; Q/K/V packed into one (H, 3H) matrix with the
# softmax scale folded into the Q block.
# ---------------------------------------------------------------------------
def init_params(key, cfg):
    H, IM, V, L, C = (cfg["hidden"], cfg["intermediate"], cfg["vocab"],
                      cfg["layers"], cfg["num_classes"])
    DH = cfg["head_dim"]

    def nrm(k, shape):
        return 0.02 * jax.random.normal(k, shape, dtype=jnp.float32)

    keys = iter(jax.random.split(key, 16))

    wqkv = nrm(next(keys), (L, H, 3 * H))
    # Fold 1/sqrt(head_dim) into the Q block (removes the per-head (S,S) scale mult).
    wqkv = wqkv.at[:, :, :H].multiply(1.0 / math.sqrt(DH))

    ones_h = jnp.ones((L, 1, H), jnp.float32)
    zeros_h = jnp.zeros((L, 1, H), jnp.float32)
    # rows: [bo, b2, ln1_g, ln1_b, ln2_g, ln2_b]
    lvec = jnp.concatenate([zeros_h, zeros_h, ones_h, zeros_h, ones_h, zeros_h], axis=1)

    return {
        "word_emb": nrm(next(keys), (V, H)),
        "pos_emb": nrm(next(keys), (cfg["max_pos"], H)),
        "type_emb": nrm(next(keys), (cfg["type_vocab"], H)),
        "emb_ln": jnp.concatenate(
            [jnp.ones((1, H), jnp.float32), jnp.zeros((1, H), jnp.float32)], axis=0),
        "wqkv": wqkv,
        "bqkv": jnp.zeros((L, 1, 3 * H), jnp.float32),   # (scale fold on zeros is a no-op)
        "wo": nrm(next(keys), (L, H, H)),
        "w1": nrm(next(keys), (L, H, IM)),
        "b1": jnp.zeros((L, 1, IM), jnp.float32),
        "w2": nrm(next(keys), (L, IM, H)),
        "lvec": lvec,
        "pool_w": nrm(next(keys), (H, H)),
        "pool_b": jnp.zeros((1, H), jnp.float32),
        "cls_w": nrm(next(keys), (H, C)),
        "cls_b": jnp.zeros((1, C), jnp.float32),
    }


# ---------------------------------------------------------------------------
# Forward pass: BertForSequenceClassification(num_labels=1) -> logits (B, 1)
# Dropout omitted (inference semantics). Embedding gathers are glue done in plain
# JAX; everything after runs in the Pallas kernel.
# ---------------------------------------------------------------------------
def sentiment_classifier_forward(params, input_ids, attention_mask, token_type_ids, cfg=CFG):
    B, S = input_ids.shape
    H, NH, DH, L, IM, C = (cfg["hidden"], cfg["heads"], cfg["head_dim"],
                           cfg["layers"], cfg["intermediate"], cfg["num_classes"])

    pos_ids = jnp.arange(S, dtype=jnp.int32)
    emb = (jnp.take(params["word_emb"], input_ids, axis=0)
           + jnp.take(params["pos_emb"], pos_ids, axis=0)[None, :, :]
           + jnp.take(params["type_emb"], token_type_ids, axis=0))
    emb = emb.reshape(B * S, H).astype(jnp.float32)

    mask3 = attention_mask.astype(jnp.int32).reshape(B, 1, S)

    inputs = [
        emb,
        mask3,
        params["emb_ln"],
        params["wqkv"].astype(jnp.bfloat16),
        params["wo"].astype(jnp.bfloat16),
        params["w1"].astype(jnp.bfloat16),
        params["w2"].astype(jnp.bfloat16),
        params["bqkv"],
        params["b1"],
        params["lvec"],
        params["pool_w"].astype(jnp.bfloat16),
        params["pool_b"],
        params["cls_w"],
        params["cls_b"],
    ]
    return bert_fused_forward(inputs, B, S, NH, DH, L, IM, C)


# ---------------------------------------------------------------------------
if __name__ == "__main__":
    key = jax.random.PRNGKey(0)
    k_param, k_ids, k_type = jax.random.split(key, 3)

    B, S = 2, 8
    params = init_params(k_param, CFG)

    input_ids = jax.random.randint(k_ids, (B, S), 1, CFG["vocab"], dtype=jnp.int32)
    token_type_ids = jnp.zeros((B, S), dtype=jnp.int32)
    attention_mask = jnp.ones((B, S), dtype=jnp.int32)
    # exercise padding mask on the second example
    attention_mask = attention_mask.at[1, -2:].set(0)

    logits = sentiment_classifier_forward(params, input_ids, attention_mask, token_type_ids)
    logits = jax.block_until_ready(logits)
    assert logits.shape == (B, CFG["num_classes"]) and logits.dtype == jnp.float32
    assert bool(jnp.all(jnp.isfinite(logits)))
    print("KERNEL_OK")
</pallas_src>

<mosaic_0001>
module attributes {stable_mosaic.version = 11 : i64} {
  func.func @_bert_layer_kernel(%arg0: i32, %arg1: i32, %arg2: memref<8x256xf32, #tpu.memory_space<vmem>>, %arg3: memref<1x1x8xi32, #tpu.memory_space<vmem>>, %arg4: memref<2x256xf32, #tpu.memory_space<vmem>>, %arg5: memref<1x256x768xbf16, #tpu.memory_space<vmem>>, %arg6: memref<1x256x256xbf16, #tpu.memory_space<vmem>>, %arg7: memref<1x256x512xbf16, #tpu.memory_space<vmem>>, %arg8: memref<1x512x256xbf16, #tpu.memory_space<vmem>>, %arg9: memref<1x1x768xf32, #tpu.memory_space<vmem>>, %arg10: memref<1x1x512xf32, #tpu.memory_space<vmem>>, %arg11: memref<1x6x256xf32, #tpu.memory_space<vmem>>, %arg12: memref<256x256xbf16, #tpu.memory_space<vmem>>, %arg13: memref<1x256xf32, #tpu.memory_space<vmem>>, %arg14: memref<256x1xf32, #tpu.memory_space<vmem>>, %arg15: memref<1x1xf32, #tpu.memory_space<vmem>>, %arg16: memref<1x1x1xf32, #tpu.memory_space<vmem>>, %arg17: memref<8x256xf32, #tpu.memory_space<vmem>>, %arg18: memref<8x256xf32, #tpu.memory_space<vmem>>) attributes {dimension_semantics = [#tpu.dimension_semantics<parallel>, #tpu.dimension_semantics<arbitrary>], iteration_bounds = array<i64: 2, 2>, scalar_prefetch = 0 : i64, scratch_operands = 2 : i64, tpu.core_type = #tpu.core_type<tc>, window_params = [{transform_indices = @transform_0, window_bounds = array<i64: 8, 256>}, {transform_indices = @transform_1, window_bounds = array<i64: 1, 1, 8>}, {pipeline_mode = #tpu.pipeline_mode<synchronous>, transform_indices = @transform_2, window_bounds = array<i64: 2, 256>}, {transform_indices = @transform_3, window_bounds = array<i64: 1, 256, 768>}, {transform_indices = @transform_4, window_bounds = array<i64: 1, 256, 256>}, {transform_indices = @transform_5, window_bounds = array<i64: 1, 256, 512>}, {transform_indices = @transform_6, window_bounds = array<i64: 1, 512, 256>}, {transform_indices = @transform_7, window_bounds = array<i64: 1, 1, 768>}, {transform_indices = @transform_8, window_bounds = array<i64: 1, 1, 512>}, {transform_indices = @transform_9, window_bounds = array<i64: 1, 6, 256>}, {pipeline_mode = #tpu.pipeline_mode<synchronous>, transform_indices = @transform_10, window_bounds = array<i64: 256, 256>}, {pipeline_mode = #tpu.pipeline_mode<synchronous>, transform_indices = @transform_11, window_bounds = array<i64: 1, 256>}, {pipeline_mode = #tpu.pipeline_mode<synchronous>, transform_indices = @transform_12, window_bounds = array<i64: 256, 1>}, {pipeline_mode = #tpu.pipeline_mode<synchronous>, transform_indices = @transform_13, window_bounds = array<i64: 1, 1>}, {transform_indices = @transform_14, window_bounds = array<i64: 1, 1, 1>}]} {
    %c0_i32 = arith.constant 0 : i32
    %0 = arith.cmpi eq, %arg1, %c0_i32 : i32
    %1 = arith.extui %0 : i1 to i32
    %c0_i32_0 = arith.constant 0 : i32
    %2 = arith.cmpi ne, %1, %c0_i32_0 : i32
    scf.if %2 {
      %c0_71 = arith.constant 0 : index
      %c0_72 = arith.constant 0 : index
      %153 = vector.load %arg2[%c0_71, %c0_72] : memref<8x256xf32, #tpu.memory_space<vmem>>, vector<8x256xf32>
      %c0_73 = arith.constant 0 : index
      %c0_74 = arith.constant 0 : index
      %154 = vector.load %arg4[%c0_73, %c0_74] : memref<2x256xf32, #tpu.memory_space<vmem>>, vector<1x256xf32>
      %c1_75 = arith.constant 1 : index
      %c0_76 = arith.constant 0 : index
      %155 = vector.load %arg4[%c1_75, %c0_76] : memref<2x256xf32, #tpu.memory_space<vmem>>, vector<1x256xf32>
      %cst_77 = arith.constant dense<0.000000e+00> : vector<8xf32>
      %156 = vector.multi_reduction <add>, %153, %cst_77 [1] : vector<8x256xf32> to vector<8xf32>
      %157 = vector.shape_cast %156 : vector<8xf32> to vector<8x1xf32>
      %cst_78 = arith.constant 2.560000e+02 : f32
      %158 = vector.broadcast %cst_78 : f32 to vector<8x1xf32>
      %159 = arith.divf %157, %158 : vector<8x1xf32>
      %160 = vector.broadcast %159 : vector<8x1xf32> to vector<8x256xf32>
      %161 = arith.subf %153, %160 : vector<8x256xf32>
      %162 = arith.mulf %161, %161 : vector<8x256xf32>
      %cst_79 = arith.constant dense<0.000000e+00> : vector<8xf32>
      %163 = vector.multi_reduction <add>, %162, %cst_79 [1] : vector<8x256xf32> to vector<8xf32>
      %164 = vector.shape_cast %163 : vector<8xf32> to vector<8x1xf32>
      %cst_80 = arith.constant 2.560000e+02 : f32
      %165 = vector.broadcast %cst_80 : f32 to vector<8x1xf32>
      %166 = arith.divf %164, %165 : vector<8x1xf32>
      %cst_81 = arith.constant 9.99999996E-13 : f32
      %167 = vector.broadcast %cst_81 : f32 to vector<8x1xf32>
      %168 = arith.addf %166, %167 : vector<8x1xf32>
      %169 = math.rsqrt %168 : vector<8x1xf32>
      %170 = vector.broadcast %169 : vector<8x1xf32> to vector<8x256xf32>
      %171 = arith.mulf %161, %170 : vector<8x256xf32>
      %172 = vector.broadcast %154 : vector<1x256xf32> to vector<8x256xf32>
      %173 = arith.mulf %171, %172 : vector<8x256xf32>
      %174 = vector.broadcast %155 : vector<1x256xf32> to vector<8x256xf32>
      %175 = arith.addf %173, %174 : vector<8x256xf32>
      %c0_82 = arith.constant 0 : index
      %c0_83 = arith.constant 0 : index
      %176 = vector.load %arg17[%c0_82, %c0_83] : memref<8x256xf32, #tpu.memory_space<vmem>>, vector<8x256xf32>
      tpu.vector_store %arg17[%c0_82, %c0_83], %175 {strides = array<i32>} : memref<8x256xf32, #tpu.memory_space<vmem>>, vector<8x256xf32>,
    } else {
    }
    %c0 = arith.constant 0 : index
    %c0_1 = arith.constant 0 : index
    %3 = vector.load %arg17[%c0, %c0_1] : memref<8x256xf32, #tpu.memory_space<vmem>>, vector<8x256xf32>
    %c0_2 = arith.constant 0 : index
    %c0_3 = arith.constant 0 : index
    %c0_4 = arith.constant 0 : index
    %4 = vector.load %arg3[%c0_2, %c0_3, %c0_4] : memref<1x1x8xi32, #tpu.memory_space<vmem>>, vector<1x1x8xi32>
    %5 = vector.shape_cast %4 : vector<1x1x8xi32> to vector<1x8xi32>
    %6 = arith.sitofp %5 : vector<1x8xi32> to vector<1x8xf32>
    %cst = arith.constant 1.000000e+00 : f32
    %7 = vector.broadcast %cst : f32 to vector<1x8xf32>
    %8 = arith.subf %7, %6 : vector<1x8xf32>
    %cst_5 = arith.constant -1.000000e+04 : f32
    %9 = vector.broadcast %cst_5 : f32 to vector<1x8xf32>
    %10 = arith.mulf %8, %9 : vector<1x8xf32>
    %c0_6 = arith.constant 0 : index
    %c0_7 = arith.constant 0 : index
    %c0_8 = arith.constant 0 : index
    %11 = vector.load %arg5[%c0_6, %c0_7, %c0_8] : memref<1x256x768xbf16, #tpu.memory_space<vmem>>, vector<1x256x768xbf16>
    %12 = vector.shape_cast %11 : vector<1x256x768xbf16> to vector<256x768xbf16>
    %13 = arith.truncf %3 : vector<8x256xf32> to vector<8x256xbf16>
    %cst_9 = arith.constant dense<0.000000e+00> : vector<8x768xf32>
    %14 = tpu.matmul %13, %12, %cst_9 {dimension_numbers = #tpu.dot_dimension_numbers<[1], [0], [0], [1], [0, 0, 1, 1], [], []>} : vector<8x256xbf16>, vector<256x768xbf16>, vector<8x768xf32> -> vector<8x768xf32>
    %c0_10 = arith.constant 0 : index
    %c0_11 = arith.constant 0 : index
    %c0_12 = arith.constant 0 : index
    %15 = vector.load %arg9[%c0_10, %c0_11, %c0_12] : memref<1x1x768xf32, #tpu.memory_space<vmem>>, vector<1x1x768xf32>
    %16 = vector.shape_cast %15 : vector<1x1x768xf32> to vector<1x768xf32>
    %17 = vector.broadcast %16 : vector<1x768xf32> to vector<8x768xf32>
    %18 = arith.addf %14, %17 : vector<8x768xf32>
    %19 = vector.extract_strided_slice %18 {offsets = [0, 0], sizes = [8, 128], strides = [1, 1]} : vector<8x768xf32> to vector<8x128xf32>
    %20 = arith.truncf %19 : vector<8x128xf32> to vector<8x128xbf16>
    %21 = vector.extract_strided_slice %18 {offsets = [0, 256], sizes = [8, 128], strides = [1, 1]} : vector<8x768xf32> to vector<8x128xf32>
    %22 = arith.truncf %21 : vector<8x128xf32> to vector<8x128xbf16>
    %23 = vector.extract_strided_slice %18 {offsets = [0, 512], sizes = [8, 128], strides = [1, 1]} : vector<8x768xf32> to vector<8x128xf32>
    %24 = arith.truncf %23 : vector<8x128xf32> to vector<8x128xbf16>
    %cst_13 = arith.constant dense<0.000000e+00> : vector<8x8xf32>
    %25 = tpu.matmul %20, %22, %cst_13 {dimension_numbers = #tpu.dot_dimension_numbers<[1], [1], [0], [0], [0, 0, 1, 0], [], []>} : vector<8x128xbf16>, vector<8x128xbf16>, vector<8x8xf32> -> vector<8x8xf32>
    %26 = vector.broadcast %10 : vector<1x8xf32> to vector<8x8xf32>
    %27 = arith.addf %25, %26 : vector<8x8xf32>
    %cst_14 = arith.constant dense<0xFF800000> : vector<8xf32>
    %28 = vector.multi_reduction <maximumf>, %27, %cst_14 [1] : vector<8x8xf32> to vector<8xf32>
    %29 = vector.shape_cast %28 : vector<8xf32> to vector<8x1xf32>
    %30 = vector.broadcast %29 : vector<8x1xf32> to vector<8x8xf32>
    %31 = arith.subf %27, %30 : vector<8x8xf32>
    %32 = math.exp %31 : vector<8x8xf32>
    %cst_15 = arith.constant dense<0.000000e+00> : vector<8xf32>
    %33 = vector.multi_reduction <add>, %32, %cst_15 [1] : vector<8x8xf32> to vector<8xf32>
    %34 = vector.shape_cast %33 : vector<8xf32> to vector<8x1xf32>
    %35 = vector.broadcast %34 : vector<8x1xf32> to vector<8x8xf32>
    %36 = arith.divf %32, %35 : vector<8x8xf32>
    %37 = arith.truncf %36 : vector<8x8xf32> to vector<8x8xbf16>
    %cst_16 = arith.constant dense<0.000000e+00> : vector<8x128xf32>
    %38 = tpu.matmul %37, %24, %cst_16 {dimension_numbers = #tpu.dot_dimension_numbers<[1], [0], [0], [1], [0, 0, 1, 1], [], []>} : vector<8x8xbf16>, vector<8x128xbf16>, vector<8x128xf32> -> vector<8x128xf32>
    %c0_17 = arith.constant 0 : index
    %c0_18 = arith.constant 0 : index
    %39 = vector.load %arg18[%c0_17, %c0_18] : memref<8x256xf32, #tpu.memory_space<vmem>>, vector<8x128xf32>
    tpu.vector_store %arg18[%c0_17, %c0_18], %38 {strides = array<i32>} : memref<8x256xf32, #tpu.memory_space<vmem>>, vector<8x128xf32>,
    %40 = vector.extract_strided_slice %18 {offsets = [0, 128], sizes = [8, 128], strides = [1, 1]} : vector<8x768xf32> to vector<8x128xf32>
    %41 = arith.truncf %40 : vector<8x128xf32> to vector<8x128xbf16>
    %42 = vector.extract_strided_slice %18 {offsets = [0, 384], sizes = [8, 128], strides = [1, 1]} : vector<8x768xf32> to vector<8x128xf32>
    %43 = arith.truncf %42 : vector<8x128xf32> to vector<8x128xbf16>
    %44 = vector.extract_strided_slice %18 {offsets = [0, 640], sizes = [8, 128], strides = [1, 1]} : vector<8x768xf32> to vector<8x128xf32>
    %45 = arith.truncf %44 : vector<8x128xf32> to vector<8x128xbf16>
    %cst_19 = arith.constant dense<0.000000e+00> : vector<8x8xf32>
    %46 = tpu.matmul %41, %43, %cst_19 {dimension_numbers = #tpu.dot_dimension_numbers<[1], [1], [0], [0], [0, 0, 1, 0], [], []>} : vector<8x128xbf16>, vector<8x128xbf16>, vector<8x8xf32> -> vector<8x8xf32>
    %47 = vector.broadcast %10 : vector<1x8xf32> to vector<8x8xf32>
    %48 = arith.addf %46, %47 : vector<8x8xf32>
    %cst_20 = arith.constant dense<0xFF800000> : vector<8xf32>
    %49 = vector.multi_reduction <maximumf>, %48, %cst_20 [1] : vector<8x8xf32> to vector<8xf32>
    %50 = vector.shape_cast %49 : vector<8xf32> to vector<8x1xf32>
    %51 = vector.broadcast %50 : vector<8x1xf32> to vector<8x8xf32>
    %52 = arith.subf %48, %51 : vector<8x8xf32>
    %53 = math.exp %52 : vector<8x8xf32>
    %cst_21 = arith.constant dense<0.000000e+00> : vector<8xf32>
    %54 = vector.multi_reduction <add>, %53, %cst_21 [1] : vector<8x8xf32> to vector<8xf32>
    %55 = vector.shape_cast %54 : vector<8xf32> to vector<8x1xf32>
    %56 = vector.broadcast %55 : vector<8x1xf32> to vector<8x8xf32>
    %57 = arith.divf %53, %56 : vector<8x8xf32>
    %58 = arith.truncf %57 : vector<8x8xf32> to vector<8x8xbf16>
    %cst_22 = arith.constant dense<0.000000e+00> : vector<8x128xf32>
    %59 = tpu.matmul %58, %45, %cst_22 {dimension_numbers = #tpu.dot_dimension_numbers<[1], [0], [0], [1], [0, 0, 1, 1], [], []>} : vector<8x8xbf16>, vector<8x128xbf16>, vector<8x128xf32> -> vector<8x128xf32>
    %c0_23 = arith.constant 0 : index
    %c128 = arith.constant 128 : index
    %60 = vector.load %arg18[%c0_23, %c128] : memref<8x256xf32, #tpu.memory_space<vmem>>, vector<8x128xf32>
    tpu.vector_store %arg18[%c0_23, %c128], %59 {strides = array<i32>} : memref<8x256xf32, #tpu.memory_space<vmem>>, vector<8x128xf32>,
    %c0_24 = arith.constant 0 : index
    %c0_25 = arith.constant 0 : index
    %61 = vector.load %arg18[%c0_24, %c0_25] : memref<8x256xf32, #tpu.memory_space<vmem>>, vector<8x256xf32>
    %c0_26 = arith.constant 0 : index
    %c0_27 = arith.constant 0 : index
    %c0_28 = arith.constant 0 : index
    %62 = vector.load %arg6[%c0_26, %c0_27, %c0_28] : memref<1x256x256xbf16, #tpu.memory_space<vmem>>, vector<1x256x256xbf16>
    %63 = vector.shape_cast %62 : vector<1x256x256xbf16> to vector<256x256xbf16>
    %64 = arith.truncf %61 : vector<8x256xf32> to vector<8x256xbf16>
    %cst_29 = arith.constant dense<0.000000e+00> : vector<8x256xf32>
    %65 = tpu.matmul %64, %63, %cst_29 {dimension_numbers = #tpu.dot_dimension_numbers<[1], [0], [0], [1], [0, 0, 1, 1], [], []>} : vector<8x256xbf16>, vector<256x256xbf16>, vector<8x256xf32> -> vector<8x256xf32>
    %c0_30 = arith.constant 0 : index
    %c0_31 = arith.constant 0 : index
    %c0_32 = arith.constant 0 : index
    %66 = vector.load %arg11[%c0_30, %c0_31, %c0_32] : memref<1x6x256xf32, #tpu.memory_space<vmem>>, vector<1x1x256xf32>
    %67 = vector.shape_cast %66 : vector<1x1x256xf32> to vector<1x256xf32>
    %68 = vector.broadcast %67 : vector<1x256xf32> to vector<8x256xf32>
    %69 = arith.addf %65, %68 : vector<8x256xf32>
    %70 = arith.addf %3, %69 : vector<8x256xf32>
    %c0_33 = arith.constant 0 : index
    %c2 = arith.constant 2 : index
    %c0_34 = arith.constant 0 : index
    %71 = vector.load %arg11[%c0_33, %c2, %c0_34] : memref<1x6x256xf32, #tpu.memory_space<vmem>>, vector<1x1x256xf32>
    %72 = vector.shape_cast %71 : vector<1x1x256xf32> to vector<1x256xf32>
    %c0_35 = arith.constant 0 : index
    %c3 = arith.constant 3 : index
    %c0_36 = arith.constant 0 : index
    %73 = vector.load %arg11[%c0_35, %c3, %c0_36] : memref<1x6x256xf32, #tpu.memory_space<vmem>>, vector<1x1x256xf32>
    %74 = vector.shape_cast %73 : vector<1x1x256xf32> to vector<1x256xf32>
    %cst_37 = arith.constant dense<0.000000e+00> : vector<8xf32>
    %75 = vector.multi_reduction <add>, %70, %cst_37 [1] : vector<8x256xf32> to vector<8xf32>
    %76 = vector.shape_cast %75 : vector<8xf32> to vector<8x1xf32>
    %cst_38 = arith.constant 2.560000e+02 : f32
    %77 = vector.broadcast %cst_38 : f32 to vector<8x1xf32>
    %78 = arith.divf %76, %77 : vector<8x1xf32>
    %79 = vector.broadcast %78 : vector<8x1xf32> to vector<8x256xf32>
    %80 = arith.subf %70, %79 : vector<8x256xf32>
    %81 = arith.mulf %80, %80 : vector<8x256xf32>
    %cst_39 = arith.constant dense<0.000000e+00> : vector<8xf32>
    %82 = vector.multi_reduction <add>, %81, %cst_39 [1] : vector<8x256xf32> to vector<8xf32>
    %83 = vector.shape_cast %82 : vector<8xf32> to vector<8x1xf32>
    %cst_40 = arith.constant 2.560000e+02 : f32
    %84 = vector.broadcast %cst_40 : f32 to vector<8x1xf32>
    %85 = arith.divf %83, %84 : vector<8x1xf32>
    %cst_41 = arith.constant 9.99999996E-13 : f32
    %86 = vector.broadcast %cst_41 : f32 to vector<8x1xf32>
    %87 = arith.addf %85, %86 : vector<8x1xf32>
    %88 = math.rsqrt %87 : vector<8x1xf32>
    %89 = vector.broadcast %88 : vector<8x1xf32> to vector<8x256xf32>
    %90 = arith.mulf %80, %89 : vector<8x256xf32>
    %91 = vector.broadcast %72 : vector<1x256xf32> to vector<8x256xf32>
    %92 = arith.mulf %90, %91 : vector<8x256xf32>
    %93 = vector.broadcast %74 : vector<1x256xf32> to vector<8x256xf32>
    %94 = arith.addf %92, %93 : vector<8x256xf32>
    %c0_42 = arith.constant 0 : index
    %c0_43 = arith.constant 0 : index
    %c0_44 = arith.constant 0 : index
    %95 = vector.load %arg7[%c0_42, %c0_43, %c0_44] : memref<1x256x512xbf16, #tpu.memory_space<vmem>>, vector<1x256x512xbf16>
    %96 = vector.shape_cast %95 : vector<1x256x512xbf16> to vector<256x512xbf16>
    %97 = arith.truncf %94 : vector<8x256xf32> to vector<8x256xbf16>
    %cst_45 = arith.constant dense<0.000000e+00> : vector<8x512xf32>
    %98 = tpu.matmul %97, %96, %cst_45 {dimension_numbers = #tpu.dot_dimension_numbers<[1], [0], [0], [1], [0, 0, 1, 1], [], []>} : vector<8x256xbf16>, vector<256x512xbf16>, vector<8x512xf32> -> vector<8x512xf32>
    %c0_46 = arith.constant 0 : index
    %c0_47 = arith.constant 0 : index
    %c0_48 = arith.constant 0 : index
    %99 = vector.load %arg10[%c0_46, %c0_47, %c0_48] : memref<1x1x512xf32, #tpu.memory_space<vmem>>, vector<1x1x512xf32>
    %100 = vector.shape_cast %99 : vector<1x1x512xf32> to vector<1x512xf32>
    %101 = vector.broadcast %100 : vector<1x512xf32> to vector<8x512xf32>
    %102 = arith.addf %98, %101 : vector<8x512xf32>
    %cst_49 = arith.constant 5.000000e-01 : f32
    %103 = vector.broadcast %cst_49 : f32 to vector<8x512xf32>
    %104 = arith.mulf %103, %102 : vector<8x512xf32>
    %cst_50 = arith.constant 4.471500e-02 : f32
    %105 = vector.broadcast %cst_50 : f32 to vector<8x512xf32>
    %106 = arith.mulf %105, %102 : vector<8x512xf32>
    %107 = arith.mulf %106, %102 : vector<8x512xf32>
    %108 = arith.mulf %107, %102 : vector<8x512xf32>
    %109 = arith.addf %102, %108 : vector<8x512xf32>
    %cst_51 = arith.constant 0.797884583 : f32
    %110 = vector.broadcast %cst_51 : f32 to vector<8x512xf32>
    %111 = arith.mulf %110, %109 : vector<8x512xf32>
    %112 = math.tanh %111 : vector<8x512xf32>
    %cst_52 = arith.constant 1.000000e+00 : f32
    %113 = vector.broadcast %cst_52 : f32 to vector<8x512xf32>
    %114 = arith.addf %113, %112 : vector<8x512xf32>
    %115 = arith.mulf %104, %114 : vector<8x512xf32>
    %c0_53 = arith.constant 0 : index
    %c0_54 = arith.constant 0 : index
    %c0_55 = arith.constant 0 : index
    %116 = vector.load %arg8[%c0_53, %c0_54, %c0_55] : memref<1x512x256xbf16, #tpu.memory_space<vmem>>, vector<1x512x256xbf16>
    %117 = vector.shape_cast %116 : vector<1x512x256xbf16> to vector<512x256xbf16>
    %118 = arith.truncf %115 : vector<8x512xf32> to vector<8x512xbf16>
    %cst_56 = arith.constant dense<0.000000e+00> : vector<8x256xf32>
    %119 = tpu.matmul %118, %117, %cst_56 {dimension_numbers = #tpu.dot_dimension_numbers<[1], [0], [0], [1], [0, 0, 1, 1], [], []>} : vector<8x512xbf16>, vector<512x256xbf16>, vector<8x256xf32> -> vector<8x256xf32>
    %c0_57 = arith.constant 0 : index
    %c1 = arith.constant 1 : index
    %c0_58 = arith.constant 0 : index
    %120 = vector.load %arg11[%c0_57, %c1, %c0_58] : memref<1x6x256xf32, #tpu.memory_space<vmem>>, vector<1x1x256xf32>
    %121 = vector.shape_cast %120 : vector<1x1x256xf32> to vector<1x256xf32>
    %122 = vector.broadcast %121 : vector<1x256xf32> to vector<8x256xf32>
    %123 = arith.addf %119, %122 : vector<8x256xf32>
    %124 = arith.addf %94, %123 : vector<8x256xf32>
    %c0_59 = arith.constant 0 : index
    %c4 = arith.constant 4 : index
    %c0_60 = arith.constant 0 : index
    %125 = vector.load %arg11[%c0_59, %c4, %c0_60] : memref<1x6x256xf32, #tpu.memory_space<vmem>>, vector<1x1x256xf32>
    %126 = vector.shape_cast %125 : vector<1x1x256xf32> to vector<1x256xf32>
    %c0_61 = arith.constant 0 : index
    %c5 = arith.constant 5 : index
    %c0_62 = arith.constant 0 : index
    %127 = vector.load %arg11[%c0_61, %c5, %c0_62] : memref<1x6x256xf32, #tpu.memory_space<vmem>>, vector<1x1x256xf32>
    %128 = vector.shape_cast %127 : vector<1x1x256xf32> to vector<1x256xf32>
    %cst_63 = arith.constant dense<0.000000e+00> : vector<8xf32>
    %129 = vector.multi_reduction <add>, %124, %cst_63 [1] : vector<8x256xf32> to vector<8xf32>
    %130 = vector.shape_cast %129 : vector<8xf32> to vector<8x1xf32>
    %cst_64 = arith.constant 2.560000e+02 : f32
    %131 = vector.broadcast %cst_64 : f32 to vector<8x1xf32>
    %132 = arith.divf %130, %131 : vector<8x1xf32>
    %133 = vector.broadcast %132 : vector<8x1xf32> to vector<8x256xf32>
    %134 = arith.subf %124, %133 : vector<8x256xf32>
    %135 = arith.mulf %134, %134 : vector<8x256xf32>
    %cst_65 = arith.constant dense<0.000000e+00> : vector<8xf32>
    %136 = vector.multi_reduction <add>, %135, %cst_65 [1] : vector<8x256xf32> to vector<8xf32>
    %137 = vector.shape_cast %136 : vector<8xf32> to vector<8x1xf32>
    %cst_66 = arith.constant 2.560000e+02 : f32
    %138 = vector.broadcast %cst_66 : f32 to vector<8x1xf32>
    %139 = arith.divf %137, %138 : vector<8x1xf32>
    %cst_67 = arith.constant 9.99999996E-13 : f32
    %140 = vector.broadcast %cst_67 : f32 to vector<8x1xf32>
    %141 = arith.addf %139, %140 : vector<8x1xf32>
    %142 = math.rsqrt %141 : vector<8x1xf32>
    %143 = vector.broadcast %142 : vector<8x1xf32> to vector<8x256xf32>
    %144 = arith.mulf %134, %143 : vector<8x256xf32>
    %145 = vector.broadcast %126 : vector<1x256xf32> to vector<8x256xf32>
    %146 = arith.mulf %144, %145 : vector<8x256xf32>
    %147 = vector.broadcast %128 : vector<1x256xf32> to vector<8x256xf32>
    %148 = arith.addf %146, %147 : vector<8x256xf32>
    %c0_68 = arith.constant 0 : index
    %c0_69 = arith.constant 0 : index
    %149 = vector.load %arg17[%c0_68, %c0_69] : memref<8x256xf32, #tpu.memory_space<vmem>>, vector<8x256xf32>
    tpu.vector_store %arg17[%c0_68, %c0_69], %148 {strides = array<i32>} : memref<8x256xf32, #tpu.memory_space<vmem>>, vector<8x256xf32>,
    %c1_i32 = arith.constant 1 : i32
    %150 = arith.cmpi eq, %arg1, %c1_i32 : i32
    %151 = arith.extui %150 : i1 to i32
    %c0_i32_70 = arith.constant 0 : i32
    %152 = arith.cmpi ne, %151, %c0_i32_70 : i32
    scf.if %152 {
      %153 = vector.extract_strided_slice %148 {offsets = [0, 0], sizes = [1, 256], strides = [1, 1]} : vector<8x256xf32> to vector<1x256xf32>
      %c0_71 = arith.constant 0 : index
      %c0_72 = arith.constant 0 : index
      %154 = vector.load %arg12[%c0_71, %c0_72] : memref<256x256xbf16, #tpu.memory_space<vmem>>, vector<256x256xbf16>
      %155 = arith.truncf %153 : vector<1x256xf32> to vector<1x256xbf16>
      %cst_73 = arith.constant dense<0.000000e+00> : vector<1x256xf32>
      %156 = tpu.matmul %155, %154, %cst_73 {dimension_numbers = #tpu.dot_dimension_numbers<[1], [0], [0], [1], [0, 0, 1, 1], [], []>} : vector<1x256xbf16>, vector<256x256xbf16>, vector<1x256xf32> -> vector<1x256xf32>
      %c0_74 = arith.constant 0 : index
      %c0_75 = arith.constant 0 : index
      %157 = vector.load %arg13[%c0_74, %c0_75] : memref<1x256xf32, #tpu.memory_space<vmem>>, vector<1x256xf32>
      %158 = arith.addf %156, %157 : vector<1x256xf32>
      %159 = math.tanh %158 : vector<1x256xf32>
      %c0_76 = arith.constant 0 : index
      %c0_77 = arith.constant 0 : index
      %160 = vector.load %arg14[%c0_76, %c0_77] : memref<256x1xf32, #tpu.memory_space<vmem>>, vector<256x1xf32>
      %cst_78 = arith.constant dense<0.000000e+00> : vector<1x1xf32>
      %161 = tpu.matmul %159, %160, %cst_78 {dimension_numbers = #tpu.dot_dimension_numbers<[1], [0], [0], [1], [0, 0, 1, 1], [], []>} : vector<1x256xf32>, vector<256x1xf32>, vector<1x1xf32> -> vector<1x1xf32>
      %c0_79 = arith.constant 0 : index
      %c0_80 = arith.constant 0 : index
      %162 = vector.load %arg15[%c0_79, %c0_80] : memref<1x1xf32, #tpu.memory_space<vmem>>, vector<1x1xf32>
      %163 = arith.addf %161, %162 : vector<1x1xf32>
      %c0_81 = arith.constant 0 : index
      %c0_82 = arith.constant 0 : index
      %c0_83 = arith.constant 0 : index
      %164 = vector.load %arg16[%c0_81, %c0_82, %c0_83] : memref<1x1x1xf32, #tpu.memory_space<vmem>>, vector<1x1x1xf32>
      %165 = vector.shape_cast %164 : vector<1x1x1xf32> to vector<1x1xf32>
      %166 = vector.shape_cast %163 : vector<1x1xf32> to vector<1x1x1xf32>
      tpu.vector_store %arg16[%c0_81, %c0_82, %c0_83], %166 {strides = array<i32>} : memref<1x1x1xf32, #tpu.memory_space<vmem>>, vector<1x1x1xf32>,
    } else {
    }
    return
  }
  func.func @transform_0(%arg0: i32, %arg1: i32) -> (i32, i32) {
    %c0_i32 = arith.constant 0 : i32
    %c0_i32_0 = arith.constant 0 : i32
    return %arg0, %c0_i32 : i32, i32
  }
  func.func @transform_1(%arg0: i32, %arg1: i32) -> (i32, i32, i32) {
    %c0_i32 = arith.constant 0 : i32
    %c0_i32_0 = arith.constant 0 : i32
    %c0_i32_1 = arith.constant 0 : i32
    return %arg0, %c0_i32, %c0_i32_0 : i32, i32, i32
  }
  func.func @transform_2(%arg0: i32, %arg1: i32) -> (i32, i32) {
    %c0_i32 = arith.constant 0 : i32
    %c0_i32_0 = arith.constant 0 : i32
    %c0_i32_1 = arith.constant 0 : i32
    return %c0_i32, %c0_i32_0 : i32, i32
  }
  func.func @transform_3(%arg0: i32, %arg1: i32) -> (i32, i32, i32) {
    %c0_i32 = arith.constant 0 : i32
    %c0_i32_0 = arith.constant 0 : i32
    %c0_i32_1 = arith.constant 0 : i32
    return %arg1, %c0_i32, %c0_i32_0 : i32, i32, i32
  }
  func.func @transform_4(%arg0: i32, %arg1: i32) -> (i32, i32, i32) {
    %c0_i32 = arith.constant 0 : i32
    %c0_i32_0 = arith.constant 0 : i32
    %c0_i32_1 = arith.constant 0 : i32
    return %arg1, %c0_i32, %c0_i32_0 : i32, i32, i32
  }
  func.func @transform_5(%arg0: i32, %arg1: i32) -> (i32, i32, i32) {
    %c0_i32 = arith.constant 0 : i32
    %c0_i32_0 = arith.constant 0 : i32
    %c0_i32_1 = arith.constant 0 : i32
    return %arg1, %c0_i32, %c0_i32_0 : i32, i32, i32
  }
  func.func @transform_6(%arg0: i32, %arg1: i32) -> (i32, i32, i32) {
    %c0_i32 = arith.constant 0 : i32
    %c0_i32_0 = arith.constant 0 : i32
    %c0_i32_1 = arith.constant 0 : i32
    return %arg1, %c0_i32, %c0_i32_0 : i32, i32, i32
  }
  func.func @transform_7(%arg0: i32, %arg1: i32) -> (i32, i32, i32) {
    %c0_i32 = arith.constant 0 : i32
    %c0_i32_0 = arith.constant 0 : i32
    %c0_i32_1 = arith.constant 0 : i32
    return %arg1, %c0_i32, %c0_i32_0 : i32, i32, i32
  }
  func.func @transform_8(%arg0: i32, %arg1: i32) -> (i32, i32, i32) {
    %c0_i32 = arith.constant 0 : i32
    %c0_i32_0 = arith.constant 0 : i32
    %c0_i32_1 = arith.constant 0 : i32
    return %arg1, %c0_i32, %c0_i32_0 : i32, i32, i32
  }
  func.func @transform_9(%arg0: i32, %arg1: i32) -> (i32, i32, i32) {
    %c0_i32 = arith.constant 0 : i32
    %c0_i32_0 = arith.constant 0 : i32
    %c0_i32_1 = arith.constant 0 : i32
    return %arg1, %c0_i32, %c0_i32_0 : i32, i32, i32
  }
  func.func @transform_10(%arg0: i32, %arg1: i32) -> (i32, i32) {
    %c0_i32 = arith.constant 0 : i32
    %c0_i32_0 = arith.constant 0 : i32
    %c0_i32_1 = arith.constant 0 : i32
    return %c0_i32, %c0_i32_0 : i32, i32
  }
  func.func @transform_11(%arg0: i32, %arg1: i32) -> (i32, i32) {
    %c0_i32 = arith.constant 0 : i32
    %c0_i32_0 = arith.constant 0 : i32
    %c0_i32_1 = arith.constant 0 : i32
    return %c0_i32, %c0_i32_0 : i32, i32
  }
  func.func @transform_12(%arg0: i32, %arg1: i32) -> (i32, i32) {
    %c0_i32 = arith.constant 0 : i32
    %c0_i32_0 = arith.constant 0 : i32
    %c0_i32_1 = arith.constant 0 : i32
    return %c0_i32, %c0_i32_0 : i32, i32
  }
  func.func @transform_13(%arg0: i32, %arg1: i32) -> (i32, i32) {
    %c0_i32 = arith.constant 0 : i32
    %c0_i32_0 = arith.constant 0 : i32
    %c0_i32_1 = arith.constant 0 : i32
    return %c0_i32, %c0_i32_0 : i32, i32
  }
  func.func @transform_14(%arg0: i32, %arg1: i32) -> (i32, i32, i32) {
    %c0_i32 = arith.constant 0 : i32
    %c0_i32_0 = arith.constant 0 : i32
    %c0_i32_1 = arith.constant 0 : i32
    return %arg0, %c0_i32, %c0_i32_0 : i32, i32, i32
  }
}

</mosaic_0001>

<llo_original>
// kernel: tpu_custom_call.1
$region0: #{tpu_custom_call.1}
  #allocation0 [shape = 'u32[]', space=smem, size = 0x4, offset = 0x4, fixed_abs, tag = 'smem constant byte address 0x4 - core index']
  #allocation1 [shape = 'u32[144,128]{1,0:T(1,128)}', space=vmem, size = 0x12000, scoped, tag = 'internal scratch']
  #allocation2 [shape = 'f32[8,256]{1,0:T(8,128)}', space=vmem, size = 0x2000, scoped, tag = 'scratch operand']
  #allocation3 [shape = 'f32[8,256]{1,0:T(8,128)}', space=vmem, size = 0x2000, scoped, tag = 'scratch operand']
  #allocation4 [shape = 'f32[1,1]{1,0:T(1,128)S(1)}', space=vmem, size = 0x200, scoped, tag = 'scoped memory for tpu_custom_call.1']
  %s0 = inlined_call_operand.vmem [shape: f32[16,256], index: 0, kind: input, shape index: {}]
  %s1 = inlined_call_operand.vmem [shape: s32[2,1,8], index: 1, kind: input, shape index: {}]
  %s2 = inlined_call_operand.vmem [shape: f32[2,256], index: 2, kind: input, shape index: {}]
  %s3 = inlined_call_operand.hbm [shape: bf16[2,256,768], index: 3, kind: input, shape index: {}]
  %s4 = inlined_call_operand.hbm [shape: bf16[2,256,256], index: 4, kind: input, shape index: {}]
  %s5 = inlined_call_operand.hbm [shape: bf16[2,256,512], index: 5, kind: input, shape index: {}]
  %s6 = inlined_call_operand.hbm [shape: bf16[2,512,256], index: 6, kind: input, shape index: {}]
  %s7 = inlined_call_operand.vmem [shape: f32[2,1,768], index: 7, kind: input, shape index: {}]
  %s8 = inlined_call_operand.vmem [shape: f32[2,1,512], index: 8, kind: input, shape index: {}]
  %s9 = inlined_call_operand.vmem [shape: f32[2,6,256], index: 9, kind: input, shape index: {}]
  %s10 = inlined_call_operand.vmem [shape: bf16[256,256], index: 10, kind: input, shape index: {}]
  %s11 = inlined_call_operand.vmem [shape: f32[1,256], index: 11, kind: input, shape index: {}]
  %s12 = inlined_call_operand.vmem [shape: f32[256,1], index: 12, kind: input, shape index: {}]
  %s13 = inlined_call_operand.<no memory space> [shape: f32[1,1], index: 13, kind: input, shape index: {}]
  %s14 = inlined_call_operand.vmem [shape: f32[2,1,1], index: 14, kind: output, shape index: {}]
  %s15 = sld [smem:[#allocation0]]
  $region113: #{tpu_custom_call.1} parent=0
    _
  %s17 = ssub.s32 1, %s15
  %s18 = scalar_select 0, %s17, %s15
  %v19 = vstv %s13
  %20 = vst [vmem:[#allocation4] sm:$0x1] %v19
  $region1: #{tpu_custom_call.1} parent=0
    #allocation5 [shape = 'u8[786432]{0}', space=vmem, size = 0xc0000, scoped, tag = 'input window, operand 3']
    #allocation6 [shape = 's32[2]{0}', space=sflag, size = 0x8, scoped, tag = 'scoped memory for tpu_custom_call.1']
    #allocation7 [shape = 'u8[262144]{0}', space=vmem, size = 0x40000, scoped, tag = 'input window, operand 4']
    #allocation8 [shape = 's32[2]{0}', space=sflag, size = 0x8, scoped, tag = 'scoped memory for tpu_custom_call.1']
    #allocation9 [shape = 'u8[524288]{0}', space=vmem, size = 0x80000, scoped, tag = 'input window, operand 5']
    #allocation10 [shape = 'u8[524288]{0}', space=vmem, size = 0x80000, scoped, tag = 'input window, operand 6']
    #allocation11 [shape = 's32[2]{0}', space=sflag, size = 0x8, scoped, tag = 'scoped memory for tpu_custom_call.1']
    %21 = vsyncpa [#allocation6], 0
    %s22 = scalar_lea.sflag [#allocation6], 1
    %23 = vsyncpa %s22, 0
    %24 = vsyncpa [#allocation8], 0
    %s25 = scalar_lea.sflag [#allocation8], 1
    %26 = vsyncpa %s25, 0
    %27 = vsyncpa [#allocation11], 0
    %s28 = scalar_lea.sflag [#allocation11], 1
    %29 = vsyncpa %s28, 0
    loop: start=0, step=1, limit=6
    $region2: #{tpu_custom_call.1} parent=1 // loop_pre_header
      _
    $region3: #{tpu_custom_call.1} parent=1 // loop_header
      %s31 = sphi 0, %s35
      %p32 = scmp.ge.s32.totalorder %s31, 6
      %s38 = sphi 0, %s50
      %s39 = sphi 0, %s46
      %s40 = sphi 0, %s38
      %s41 = sphi 0, %s39
      %s42 = sphi 0, %s40
      %s43 = sphi 0, %s41
      %s53 = sphi 0, %s55
      %s56 = sphi 0, %s53
      %s57 = sphi 0, %s56
      %s73 = sphi 0, %s57
      %s79 = sphi 0, %s81
      %s82 = sphi 0, %s79
      %s83 = sphi 0, %s82
      %s99 = sphi 0, %s83
      %s103 = sphi 0, %s103
      %s105 = sphi 0, %s103
      %s106 = sphi 0, %s105
      %s120 = sphi 0, %s106
      %s126 = sphi 0, %s128
      %s129 = sphi 0, %s126
      %s130 = sphi 0, %s129
      %s146 = sphi 0, %s130
      %s152 = sphi 0, %s154
      %s155 = sphi 0, %s152
      %s156 = sphi 0, %s155
      %s172 = sphi 0, %s156
      %s178 = sphi 0, %s180
      %s181 = sphi 0, %s178
      %s182 = sphi 0, %s181
      %s198 = sphi 0, %s182
      %s204 = sphi 0, %s206
      %s207 = sphi 0, %s204
      %s208 = sphi 0, %s207
      %s224 = sphi 0, %s208
      %s230 = sphi 0, %s232
      %s233 = sphi 0, %s230
      %s234 = sphi 0, %s233
      %s250 = sphi 0, %s234
      %s256 = sphi 0, %s258
      %s259 = sphi 0, %s256
      %s260 = sphi 0, %s259
      %s276 = sphi 0, %s260
      %s282 = sphi 0, %s284
      %s285 = sphi 0, %s282
      %s286 = sphi 0, %s285
      %s302 = sphi 0, %s286
      %s306 = sphi 0, %s306
      %s308 = sphi 0, %s306
      %s309 = sphi 0, %s308
      %s323 = sphi 0, %s309
      %s327 = sphi 0, %s327
      %s329 = sphi 0, %s327
      %s330 = sphi 0, %s329
      %s344 = sphi 0, %s330
      %s348 = sphi 0, %s348
      %s350 = sphi 0, %s348
      %s351 = sphi 0, %s350
      %s365 = sphi 0, %s351
      %s369 = sphi 0, %s369
      %s371 = sphi 0, %s369
      %s372 = sphi 0, %s371
      %s386 = sphi 0, %s372
      %s392 = sphi 0, %s394
      %s395 = sphi 0, %s392
      %s396 = sphi 0, %s395
      %s412 = sphi 0, %s396
    $region4: #{tpu_custom_call.1} parent=1 // loop_header_branch
      %34 = sbr.rel (%p32) target = $region8
    $region5: #{tpu_custom_call.1} parent=1 // loop_body
      %s36 = ssub.s32 %s31, 1
      %s37 = ssub.s32 %s31, 2
      %s44 = sadd.s32 1, %s39
      %p45 = scmp.ge.s32.totalorder %s44, 2
      %s46 = scalar_select %p45, 0, %s44
      %s47 = sadd.s32 1, %s38
      %s48 = scalar_select %p45, %s47, %s38
      %p49 = scmp.ge.s32.totalorder %s48, 2
      %s50 = scalar_select %p49, 0, %s48
      %s51 = ssub.s32 %s38, %s50
      %p52 = scmp.eq.s32.totalorder %s51, 0
      %s54 = sadd.s32 %s53, 1
      %s55 = scalar_select %p52, %s53, %s54
      %p58 = pneg %p52
      %p59 = scmp.eq.s32.totalorder %s31, 3
      %p60 = por %p58, %p59
      %p61 = scmp.ne.s32.totalorder %s53, %s56
      %p62 = scmp.eq.s32.totalorder %s31, 0
      %p63 = por %p61, %p62
      %p64 = scmp.ne.s32.totalorder %s53, %s56
      %p65 = scmp.eq.s32.totalorder %s36, 3
      %p66 = por %p64, %p65
      %p67 = scmp.ne.s32.totalorder %s56, %s57
      %p68 = scmp.eq.s32.totalorder %s36, 0
      %p69 = por %p67, %p68
      %p70 = scmp.ne.s32.totalorder %s56, %s57
      %p71 = scmp.eq.s32.totalorder %s37, 3
      %p72 = por %p70, %p71
      %p74 = scmp.ne.s32.totalorder %s57, %s73
      %p75 = scmp.eq.s32.totalorder %s37, 0
      %p76 = por %p74, %p75
      %s77 = ssub.s32 %s38, %s50
      %p78 = scmp.eq.s32.totalorder %s77, 0
      %s80 = sadd.s32 %s79, 1
      %s81 = scalar_select %p78, %s79, %s80
      %p84 = pneg %p78
      %p85 = scmp.eq.s32.totalorder %s31, 3
      %p86 = por %p84, %p85
      %p87 = scmp.ne.s32.totalorder %s79, %s82
      %p88 = scmp.eq.s32.totalorder %s31, 0
      %p89 = por %p87, %p88
      %p90 = scmp.ne.s32.totalorder %s79, %s82
      %p91 = scmp.eq.s32.totalorder %s36, 3
      %p92 = por %p90, %p91
      %p93 = scmp.ne.s32.totalorder %s82, %s83
      %p94 = scmp.eq.s32.totalorder %s36, 0
      %p95 = por %p93, %p94
      %p96 = scmp.ne.s32.totalorder %s82, %s83
      %p97 = scmp.eq.s32.totalorder %s37, 3
      %p98 = por %p96, %p97
      %p100 = scmp.ne.s32.totalorder %s83, %s99
      %p101 = scmp.eq.s32.totalorder %s37, 0
      %p102 = por %p100, %p101
      %s104 = sadd.s32 %s103, 1
      %p107 = scmp.eq.s32.totalorder %s31, 3
      %p108 = scmp.ne.s32.totalorder %s103, %s105
      %p109 = scmp.eq.s32.totalorder %s31, 0
      %p110 = por %p108, %p109
      %p111 = scmp.ne.s32.totalorder %s103, %s105
      %p112 = scmp.eq.s32.totalorder %s36, 3
      %p113 = por %p111, %p112
      %p114 = scmp.ne.s32.totalorder %s105, %s106
      %p115 = scmp.eq.s32.totalorder %s36, 0
      %p116 = por %p114, %p115
      %p117 = scmp.ne.s32.totalorder %s105, %s106
      %p118 = scmp.eq.s32.totalorder %s37, 3
      %p119 = por %p117, %p118
      %p121 = scmp.ne.s32.totalorder %s106, %s120
      %p122 = scmp.eq.s32.totalorder %s37, 0
      %p123 = por %p121, %p122
      %s124 = ssub.s32 %s39, %s46
      %p125 = scmp.eq.s32.totalorder %s124, 0
      %s127 = sadd.s32 %s126, 1
      %s128 = scalar_select %p125, %s126, %s127
      %p131 = pneg %p125
      %p132 = scmp.eq.s32.totalorder %s31, 3
      %p133 = por %p131, %p132
      %p134 = scmp.ne.s32.totalorder %s126, %s129
      %p135 = scmp.eq.s32.totalorder %s31, 0
      %p136 = por %p134, %p135
      %p137 = scmp.ne.s32.totalorder %s126, %s129
      %p138 = scmp.eq.s32.totalorder %s36, 3
      %p139 = por %p137, %p138
      %p140 = scmp.ne.s32.totalorder %s129, %s130
      %p141 = scmp.eq.s32.totalorder %s36, 0
      %p142 = por %p140, %p141
      %p143 = scmp.ne.s32.totalorder %s129, %s130
      %p144 = scmp.eq.s32.totalorder %s37, 3
      %p145 = por %p143, %p144
      %p147 = scmp.ne.s32.totalorder %s130, %s146
      %p148 = scmp.eq.s32.totalorder %s37, 0
      %p149 = por %p147, %p148
      %s150 = ssub.s32 %s39, %s46
      %p151 = scmp.eq.s32.totalorder %s150, 0
      %s153 = sadd.s32 %s152, 1
      %s154 = scalar_select %p151, %s152, %s153
      %p157 = pneg %p151
      %p158 = scmp.eq.s32.totalorder %s31, 3
      %p159 = por %p157, %p158
      %p160 = scmp.ne.s32.totalorder %s152, %s155
      %p161 = scmp.eq.s32.totalorder %s31, 0
      %p162 = por %p160, %p161
      %p163 = scmp.ne.s32.totalorder %s152, %s155
      %p164 = scmp.eq.s32.totalorder %s36, 3
      %p165 = por %p163, %p164
      %p166 = scmp.ne.s32.totalorder %s155, %s156
      %p167 = scmp.eq.s32.totalorder %s36, 0
      %p168 = por %p166, %p167
      %p169 = scmp.ne.s32.totalorder %s155, %s156
      %p170 = scmp.eq.s32.totalorder %s37, 3
      %p171 = por %p169, %p170
      %p173 = scmp.ne.s32.totalorder %s156, %s172
      %p174 = scmp.eq.s32.totalorder %s37, 0
      %p175 = por %p173, %p174
      %s176 = ssub.s32 %s39, %s46
      %p177 = scmp.eq.s32.totalorder %s176, 0
      %s179 = sadd.s32 %s178, 1
      %s180 = scalar_select %p177, %s178, %s179
      %p183 = pneg %p177
      %p184 = scmp.eq.s32.totalorder %s31, 3
      %p185 = por %p183, %p184
      %p186 = scmp.ne.s32.totalorder %s178, %s181
      %p187 = scmp.eq.s32.totalorder %s31, 0
      %p188 = por %p186, %p187
      %p189 = scmp.ne.s32.totalorder %s178, %s181
      %p190 = scmp.eq.s32.totalorder %s36, 3
      %p191 = por %p189, %p190
      %p192 = scmp.ne.s32.totalorder %s181, %s182
      %p193 = scmp.eq.s32.totalorder %s36, 0
      %p194 = por %p192, %p193
      %p195 = scmp.ne.s32.totalorder %s181, %s182
      %p196 = scmp.eq.s32.totalorder %s37, 3
      %p197 = por %p195, %p196
      %p199 = scmp.ne.s32.totalorder %s182, %s198
      %p200 = scmp.eq.s32.totalorder %s37, 0
      %p201 = por %p199, %p200
      %s202 = ssub.s32 %s39, %s46
      %p203 = scmp.eq.s32.totalorder %s202, 0
      %s205 = sadd.s32 %s204, 1
      %s206 = scalar_select %p203, %s204, %s205
      %p209 = pneg %p203
      %p210 = scmp.eq.s32.totalorder %s31, 3
      %p211 = por %p209, %p210
      %p212 = scmp.ne.s32.totalorder %s204, %s207
      %p213 = scmp.eq.s32.totalorder %s31, 0
      %p214 = por %p212, %p213
      %p215 = scmp.ne.s32.totalorder %s204, %s207
      %p216 = scmp.eq.s32.totalorder %s36, 3
      %p217 = por %p215, %p216
      %p218 = scmp.ne.s32.totalorder %s207, %s208
      %p219 = scmp.eq.s32.totalorder %s36, 0
      %p220 = por %p218, %p219
      %p221 = scmp.ne.s32.totalorder %s207, %s208
      %p222 = scmp.eq.s32.totalorder %s37, 3
      %p223 = por %p221, %p222
      %p225 = scmp.ne.s32.totalorder %s208, %s224
      %p226 = scmp.eq.s32.totalorder %s37, 0
      %p227 = por %p225, %p226
      %s228 = ssub.s32 %s39, %s46
      %p229 = scmp.eq.s32.totalorder %s228, 0
      %s231 = sadd.s32 %s230, 1
      %s232 = scalar_select %p229, %s230, %s231
      %p235 = pneg %p229
      %p236 = scmp.eq.s32.totalorder %s31, 3
      %p237 = por %p235, %p236
      %p238 = scmp.ne.s32.totalorder %s230, %s233
      %p239 = scmp.eq.s32.totalorder %s31, 0
      %p240 = por %p238, %p239
      %p241 = scmp.ne.s32.totalorder %s230, %s233
      %p242 = scmp.eq.s32.totalorder %s36, 3
      %p243 = por %p241, %p242
      %p244 = scmp.ne.s32.totalorder %s233, %s234
      %p245 = scmp.eq.s32.totalorder %s36, 0
      %p246 = por %p244, %p245
      %p247 = scmp.ne.s32.totalorder %s233, %s234
      %p248 = scmp.eq.s32.totalorder %s37, 3
      %p249 = por %p247, %p248
      %p251 = scmp.ne.s32.totalorder %s234, %s250
      %p252 = scmp.eq.s32.totalorder %s37, 0
      %p253 = por %p251, %p252
      %s254 = ssub.s32 %s39, %s46
      %p255 = scmp.eq.s32.totalorder %s254, 0
      %s257 = sadd.s32 %s256, 1
      %s258 = scalar_select %p255, %s256, %s257
      %p261 = pneg %p255
      %p262 = scmp.eq.s32.totalorder %s31, 3
      %p263 = por %p261, %p262
      %p264 = scmp.ne.s32.totalorder %s256, %s259
      %p265 = scmp.eq.s32.totalorder %s31, 0
      %p266 = por %p264, %p265
      %p267 = scmp.ne.s32.totalorder %s256, %s259
      %p268 = scmp.eq.s32.totalorder %s36, 3
      %p269 = por %p267, %p268
      %p270 = scmp.ne.s32.totalorder %s259, %s260
      %p271 = scmp.eq.s32.totalorder %s36, 0
      %p272 = por %p270, %p271
      %p273 = scmp.ne.s32.totalorder %s259, %s260
      %p274 = scmp.eq.s32.totalorder %s37, 3
      %p275 = por %p273, %p274
      %p277 = scmp.ne.s32.totalorder %s260, %s276
      %p278 = scmp.eq.s32.totalorder %s37, 0
      %p279 = por %p277, %p278
      %s280 = ssub.s32 %s39, %s46
      %p281 = scmp.eq.s32.totalorder %s280, 0
      %s283 = sadd.s32 %s282, 1
      %s284 = scalar_select %p281, %s282, %s283
      %p287 = pneg %p281
      %p288 = scmp.eq.s32.totalorder %s31, 3
      %p289 = por %p287, %p288
      %p290 = scmp.ne.s32.totalorder %s282, %s285
      %p291 = scmp.eq.s32.totalorder %s31, 0
      %p292 = por %p290, %p291
      %p293 = scmp.ne.s32.totalorder %s282, %s285
      %p294 = scmp.eq.s32.totalorder %s36, 3
      %p295 = por %p293, %p294
      %p296 = scmp.ne.s32.totalorder %s285, %s286
      %p297 = scmp.eq.s32.totalorder %s36, 0
      %p298 = por %p296, %p297
      %p299 = scmp.ne.s32.totalorder %s285, %s286
      %p300 = scmp.eq.s32.totalorder %s37, 3
      %p301 = por %p299, %p300
      %p303 = scmp.ne.s32.totalorder %s286, %s302
      %p304 = scmp.eq.s32.totalorder %s37, 0
      %p305 = por %p303, %p304
      %s307 = sadd.s32 %s306, 1
      %p310 = scmp.eq.s32.totalorder %s31, 3
      %p311 = scmp.ne.s32.totalorder %s306, %s308
      %p312 = scmp.eq.s32.totalorder %s31, 0
      %p313 = por %p311, %p312
      %p314 = scmp.ne.s32.totalorder %s306, %s308
      %p315 = scmp.eq.s32.totalorder %s36, 3
      %p316 = por %p314, %p315
      %p317 = scmp.ne.s32.totalorder %s308, %s309
      %p318 = scmp.eq.s32.totalorder %s36, 0
      %p319 = por %p317, %p318
      %p320 = scmp.ne.s32.totalorder %s308, %s309
      %p321 = scmp.eq.s32.totalorder %s37, 3
      %p322 = por %p320, %p321
      %p324 = scmp.ne.s32.totalorder %s309, %s323
      %p325 = scmp.eq.s32.totalorder %s37, 0
      %p326 = por %p324, %p325
      %s328 = sadd.s32 %s327, 1
      %p331 = scmp.eq.s32.totalorder %s31, 3
      %p332 = scmp.ne.s32.totalorder %s327, %s329
      %p333 = scmp.eq.s32.totalorder %s31, 0
      %p334 = por %p332, %p333
      %p335 = scmp.ne.s32.totalorder %s327, %s329
      %p336 = scmp.eq.s32.totalorder %s36, 3
      %p337 = por %p335, %p336
      %p338 = scmp.ne.s32.totalorder %s329, %s330
      %p339 = scmp.eq.s32.totalorder %s36, 0
      %p340 = por %p338, %p339
      %p341 = scmp.ne.s32.totalorder %s329, %s330
      %p342 = scmp.eq.s32.totalorder %s37, 3
      %p343 = por %p341, %p342
      %p345 = scmp.ne.s32.totalorder %s330, %s344
      %p346 = scmp.eq.s32.totalorder %s37, 0
      %p347 = por %p345, %p346
      %s349 = sadd.s32 %s348, 1
      %p352 = scmp.eq.s32.totalorder %s31, 3
      %p353 = scmp.ne.s32.totalorder %s348, %s350
      %p354 = scmp.eq.s32.totalorder %s31, 0
      %p355 = por %p353, %p354
      %p356 = scmp.ne.s32.totalorder %s348, %s350
      %p357 = scmp.eq.s32.totalorder %s36, 3
      %p358 = por %p356, %p357
      %p359 = scmp.ne.s32.totalorder %s350, %s351
      %p360 = scmp.eq.s32.totalorder %s36, 0
      %p361 = por %p359, %p360
      %p362 = scmp.ne.s32.totalorder %s350, %s351
      %p363 = scmp.eq.s32.totalorder %s37, 3
      %p364 = por %p362, %p363
      %p366 = scmp.ne.s32.totalorder %s351, %s365
      %p367 = scmp.eq.s32.totalorder %s37, 0
      %p368 = por %p366, %p367
      %s370 = sadd.s32 %s369, 1
      %p373 = scmp.eq.s32.totalorder %s31, 3
      %p374 = scmp.ne.s32.totalorder %s369, %s371
      %p375 = scmp.eq.s32.totalorder %s31, 0
      %p376 = por %p374, %p375
      %p377 = scmp.ne.s32.totalorder %s369, %s371
      %p378 = scmp.eq.s32.totalorder %s36, 3
      %p379 = por %p377, %p378
      %p380 = scmp.ne.s32.totalorder %s371, %s372
      %p381 = scmp.eq.s32.totalorder %s36, 0
      %p382 = por %p380, %p381
      %p383 = scmp.ne.s32.totalorder %s371, %s372
      %p384 = scmp.eq.s32.totalorder %s37, 3
      %p385 = por %p383, %p384
      %p387 = scmp.ne.s32.totalorder %s372, %s386
      %p388 = scmp.eq.s32.totalorder %s37, 0
      %p389 = por %p387, %p388
      %s390 = ssub.s32 %s38, %s50
      %p391 = scmp.eq.s32.totalorder %s390, 0
      %s393 = sadd.s32 %s392, 1
      %s394 = scalar_select %p391, %s392, %s393
      %p397 = pneg %p391
      %p398 = scmp.eq.s32.totalorder %s31, 3
      %p399 = por %p397, %p398
      %p400 = scmp.ne.s32.totalorder %s392, %s395
      %p401 = scmp.eq.s32.totalorder %s31, 0
      %p402 = por %p400, %p401
      %p403 = scmp.ne.s32.totalorder %s392, %s395
      %p404 = scmp.eq.s32.totalorder %s36, 3
      %p405 = por %p403, %p404
      %p406 = scmp.ne.s32.totalorder %s395, %s396
      %p407 = scmp.eq.s32.totalorder %s36, 0
      %p408 = por %p406, %p407
      %p409 = scmp.ne.s32.totalorder %s395, %s396
      %p410 = scmp.eq.s32.totalorder %s37, 3
      %p411 = por %p409, %p410
      %p413 = scmp.ne.s32.totalorder %s396, %s412
      %p414 = scmp.eq.s32.totalorder %s37, 0
      %p415 = por %p413, %p414
      %p416 = scmp.le.s32.totalorder 1, %s31
      %p417 = scmp.lt.s32.totalorder %s31, 5
      %p418 = pnand %p416, %p417
      %p419 = pneg %p418
      // Predicated region
      $region9: #{tpu_custom_call.1} parent=5 // pred_check
        _
      $region10: #{tpu_custom_call.1} parent=5 // pred_check_branch
        %421 = sbr.rel (%p418) target = $region12
      $region11: #{tpu_custom_call.1} parent=5 // pred_region
        %s422 = ssub.s32 %s31, 1
        // Predicated region
        $region13: #{tpu_custom_call.1} parent=11 // pred_check
          %p423 = pneg %p116
        $region14: #{tpu_custom_call.1} parent=11 // pred_check_branch
          %425 = sbr.rel (%p423) target = $region16
        $region15: #{tpu_custom_call.1} parent=11 // pred_region
          _
        $region16: #{tpu_custom_call.1} parent=11 // pred_fallthru
          _
        // Predicated region
        $region17: #{tpu_custom_call.1} parent=11 // pred_check
          %p426 = pneg %p319
        $region18: #{tpu_custom_call.1} parent=11 // pred_check_branch
          %428 = sbr.rel (%p426) target = $region20
        $region19: #{tpu_custom_call.1} parent=11 // pred_region
          _
        $region20: #{tpu_custom_call.1} parent=11 // pred_fallthru
          _
        // Predicated region
        $region21: #{tpu_custom_call.1} parent=11 // pred_check
          %p429 = pneg %p340
        $region22: #{tpu_custom_call.1} parent=11 // pred_check_branch
          %431 = sbr.rel (%p429) target = $region24
        $region23: #{tpu_custom_call.1} parent=11 // pred_region
          _
        $region24: #{tpu_custom_call.1} parent=11 // pred_fallthru
          _
        // Predicated region
        $region25: #{tpu_custom_call.1} parent=11 // pred_check
          %p432 = pneg %p361
        $region26: #{tpu_custom_call.1} parent=11 // pred_check_branch
          %434 = sbr.rel (%p432) target = $region28
        $region27: #{tpu_custom_call.1} parent=11 // pred_region
          _
        $region28: #{tpu_custom_call.1} parent=11 // pred_fallthru
          _
        // Predicated region
        $region29: #{tpu_custom_call.1} parent=11 // pred_check
          %p435 = pneg %p382
        $region30: #{tpu_custom_call.1} parent=11 // pred_check_branch
          %437 = sbr.rel (%p435) target = $region32
        $region31: #{tpu_custom_call.1} parent=11 // pred_region
          _
        $region32: #{tpu_custom_call.1} parent=11 // pred_fallthru
          _
      $region12: #{tpu_custom_call.1} parent=5 // pred_fallthru
        _
      %p438 = scmp.lt.s32.totalorder %s31, 4
      // Predicated region
      $region33: #{tpu_custom_call.1} parent=5 // pred_check
        %p439 = pneg %p438
      $region34: #{tpu_custom_call.1} parent=5 // pred_check_branch
        %441 = sbr.rel (%p439) target = $region36
      $region35: #{tpu_custom_call.1} parent=5 // pred_region
        // Predicated region
        $region37: #{tpu_custom_call.1} parent=35 // pred_check
          %p442 = pneg %p63
        $region38: #{tpu_custom_call.1} parent=35 // pred_check_branch
          %444 = sbr.rel (%p442) target = $region40
        $region39: #{tpu_custom_call.1} parent=35 // pred_region
          %p445 = scmp.lt.s32.totalorder %s38, 1
          %s446 = scalar_select %p445, %s38, 1
          %s447 = smul.addr %s446, 2
          %s448 = smul.addr %s447, 8
          %s449 = scalar_lea.vmem %s0, %s448
        $region40: #{tpu_custom_call.1} parent=35 // pred_fallthru
          _
        // Predicated region
        $region41: #{tpu_custom_call.1} parent=35 // pred_check
          %p450 = pneg %p89
        $region42: #{tpu_custom_call.1} parent=35 // pred_check_branch
          %452 = sbr.rel (%p450) target = $region44
        $region43: #{tpu_custom_call.1} parent=35 // pred_region
          %p453 = scmp.lt.s32.totalorder %s38, 1
          %s454 = scalar_select %p453, %s38, 1
          %s455 = scalar_lea.vmem %s1, %s454
        $region44: #{tpu_custom_call.1} parent=35 // pred_fallthru
          _
        // Predicated region
        $region45: #{tpu_custom_call.1} parent=35 // pred_check
          %p456 = pneg %p136
        $region46: #{tpu_custom_call.1} parent=35 // pred_check_branch
          %458 = sbr.rel (%p456) target = $region48
        $region47: #{tpu_custom_call.1} parent=35 // pred_region
          %s459 = sand.u32 %s126, 1
          %s460 = scalar_lea.sflag [#allocation6], %s459
          %s461 = sand.u32 %s126, 1
          %s462 = smul.addr %s461, 768
          %s463 = scalar_lea.vmem [#allocation5], %s462
          %s465 = ssub.s32 12288, 12288
          %466 = vsyncadd %s460, %s465
          %s467 = smul.addr %s39, 192
          %s468 = smul.addr %s467, 64
          %s469 = scalar_lea.hbm %s3, %s468
          %s470 = sshll.u32 %s463, 4
          %s471 = int_to_ptr.vmem [resolvable:$true] %s470
          %476 = dma.hbm_to_vmem [thread:$0]  %s469, 12288, %s471, %s460, 384, 384, 24
        $region48: #{tpu_custom_call.1} parent=35 // pred_fallthru
          _
        // Predicated region
        $region49: #{tpu_custom_call.1} parent=35 // pred_check
          %p477 = pneg %p162
        $region50: #{tpu_custom_call.1} parent=35 // pred_check_branch
          %479 = sbr.rel (%p477) target = $region52
        $region51: #{tpu_custom_call.1} parent=35 // pred_region
          %s480 = sand.u32 %s31, 1
          %s481 = scalar_lea.sflag [#allocation8], %s480
          %s482 = sand.u32 %s152, 1
          %s483 = smul.addr %s482, 256
          %s484 = scalar_lea.vmem [#allocation7], %s483
          %s486 = ssub.s32 4096, 4096
          %487 = vsyncadd %s481, %s486
          %s488 = smul.addr %s39, 64
          %s489 = smul.addr %s488, 64
          %s490 = scalar_lea.hbm %s4, %s489
          %s491 = sshll.u32 %s484, 4
          %s492 = int_to_ptr.vmem [resolvable:$true] %s491
          %497 = dma.hbm_to_vmem [thread:$0]  %s490, 4096, %s492, %s481, 128, 128, 8
        $region52: #{tpu_custom_call.1} parent=35 // pred_fallthru
          _
        // Predicated region
        $region53: #{tpu_custom_call.1} parent=35 // pred_check
          %p498 = pneg %p188
        $region54: #{tpu_custom_call.1} parent=35 // pred_check_branch
          %500 = sbr.rel (%p498) target = $region56
        $region55: #{tpu_custom_call.1} parent=35 // pred_region
          %s501 = sand.u32 %s31, 1
          %s502 = scalar_lea.sflag [#allocation8], %s501
          %s503 = sand.u32 %s178, 1
          %s504 = smul.addr %s503, 512
          %s505 = scalar_lea.vmem [#allocation9], %s504
          %s507 = ssub.s32 8192, 8192
          %508 = vsyncadd %s502, %s507
          %s509 = smul.addr %s39, 128
          %s510 = smul.addr %s509, 64
          %s511 = scalar_lea.hbm %s5, %s510
          %s512 = sshll.u32 %s505, 4
          %s513 = int_to_ptr.vmem [resolvable:$true] %s512
          %518 = dma.hbm_to_vmem [thread:$0]  %s511, 8192, %s513, %s502, 256, 256, 16
        $region56: #{tpu_custom_call.1} parent=35 // pred_fallthru
          _
        // Predicated region
        $region57: #{tpu_custom_call.1} parent=35 // pred_check
          %p519 = pneg %p214
        $region58: #{tpu_custom_call.1} parent=35 // pred_check_branch
          %521 = sbr.rel (%p519) target = $region60
        $region59: #{tpu_custom_call.1} parent=35 // pred_region
          %s522 = sand.u32 %s204, 1
          %s523 = scalar_lea.sflag [#allocation11], %s522
          %s524 = sand.u32 %s204, 1
          %s525 = smul.addr %s524, 512
          %s526 = scalar_lea.vmem [#allocation10], %s525
          %s528 = ssub.s32 8192, 8192
          %529 = vsyncadd %s523, %s528
          %s530 = smul.addr %s39, 128
          %s531 = smul.addr %s530, 64
          %s532 = scalar_lea.hbm %s6, %s531
          %s533 = sshll.u32 %s526, 4
          %s534 = int_to_ptr.vmem [resolvable:$true] %s533
          %539 = dma.hbm_to_vmem [thread:$0]  %s532, 8192, %s534, %s523, 128, 128, 8
        $region60: #{tpu_custom_call.1} parent=35 // pred_fallthru
          _
        // Predicated region
        $region61: #{tpu_custom_call.1} parent=35 // pred_check
          %p540 = pneg %p240
        $region62: #{tpu_custom_call.1} parent=35 // pred_check_branch
          %542 = sbr.rel (%p540) target = $region64
        $region63: #{tpu_custom_call.1} parent=35 // pred_region
          %p543 = scmp.lt.s32.totalorder %s39, 1
          %s544 = scalar_select %p543, %s39, 1
          %s545 = smul.addr %s544, 6
          %s546 = scalar_lea.vmem %s7, %s545
        $region64: #{tpu_custom_call.1} parent=35 // pred_fallthru
          _
        // Predicated region
        $region65: #{tpu_custom_call.1} parent=35 // pred_check
          %p547 = pneg %p266
        $region66: #{tpu_custom_call.1} parent=35 // pred_check_branch
          %549 = sbr.rel (%p547) target = $region68
        $region67: #{tpu_custom_call.1} parent=35 // pred_region
          %p550 = scmp.lt.s32.totalorder %s39, 1
          %s551 = scalar_select %p550, %s39, 1
          %s552 = smul.addr %s551, 4
          %s553 = scalar_lea.vmem %s8, %s552
        $region68: #{tpu_custom_call.1} parent=35 // pred_fallthru
          _
        // Predicated region
        $region69: #{tpu_custom_call.1} parent=35 // pred_check
          %p554 = pneg %p292
        $region70: #{tpu_custom_call.1} parent=35 // pred_check_branch
          %556 = sbr.rel (%p554) target = $region72
        $region71: #{tpu_custom_call.1} parent=35 // pred_region
          %p557 = scmp.lt.s32.totalorder %s39, 1
          %s558 = scalar_select %p557, %s39, 1
          %s559 = smul.addr %s558, 2
          %s560 = smul.addr %s559, 8
          %s561 = scalar_lea.vmem %s9, %s560
        $region72: #{tpu_custom_call.1} parent=35 // pred_fallthru
          _
      $region36: #{tpu_custom_call.1} parent=5 // pred_fallthru
        _
      %p562 = scmp.le.s32.totalorder 1, %s31
      %p563 = scmp.lt.s32.totalorder %s31, 5
      %p564 = pnand %p562, %p563
      %p565 = pneg %p564
      // Predicated region
      $region73: #{tpu_custom_call.1} parent=5 // pred_check
        _
      $region74: #{tpu_custom_call.1} parent=5 // pred_check_branch
        %567 = sbr.rel (%p564) target = $region76
      $region75: #{tpu_custom_call.1} parent=5 // pred_region
        %s568 = ssub.s32 %s31, 1
        %s569 = sand.u32 %s129, 1
        %s570 = scalar_lea.sflag [#allocation6], %s569
        %s571 = sand.u32 %s129, 1
        %s572 = smul.addr %s571, 768
        %s573 = scalar_lea.vmem [#allocation5], %s572
        // Predicated region
        $region77: #{tpu_custom_call.1} parent=75 // pred_check
          %p574 = pneg %p142
        $region78: #{tpu_custom_call.1} parent=75 // pred_check_branch
          %576 = sbr.rel (%p574) target = $region80
        $region79: #{tpu_custom_call.1} parent=75 // pred_region
          %577 = dma.done %s570, 12288
        $region80: #{tpu_custom_call.1} parent=75 // pred_fallthru
          _
        %s578 = sand.u32 %s36, 1
        %s579 = scalar_lea.sflag [#allocation8], %s578
        %s580 = sand.u32 %s155, 1
        %s581 = smul.addr %s580, 256
        %s582 = scalar_lea.vmem [#allocation7], %s581
        // Predicated region
        $region81: #{tpu_custom_call.1} parent=75 // pred_check
          %p583 = pneg %p168
        $region82: #{tpu_custom_call.1} parent=75 // pred_check_branch
          %585 = sbr.rel (%p583) target = $region84
        $region83: #{tpu_custom_call.1} parent=75 // pred_region
          %586 = dma.done %s579, 4096
        $region84: #{tpu_custom_call.1} parent=75 // pred_fallthru
          _
        %s587 = sand.u32 %s36, 1
        %s588 = scalar_lea.sflag [#allocation8], %s587
        %s589 = sand.u32 %s181, 1
        %s590 = smul.addr %s589, 512
        %s591 = scalar_lea.vmem [#allocation9], %s590
        // Predicated region
        $region85: #{tpu_custom_call.1} parent=75 // pred_check
          %p592 = pneg %p194
        $region86: #{tpu_custom_call.1} parent=75 // pred_check_branch
          %594 = sbr.rel (%p592) target = $region88
        $region87: #{tpu_custom_call.1} parent=75 // pred_region
          %595 = dma.done %s588, 8192
        $region88: #{tpu_custom_call.1} parent=75 // pred_fallthru
          _
        %s596 = sand.u32 %s207, 1
        %s597 = scalar_lea.sflag [#allocation11], %s596
        %s598 = sand.u32 %s207, 1
        %s599 = smul.addr %s598, 512
        %s600 = scalar_lea.vmem [#allocation10], %s599
        // Predicated region
        $region89: #{tpu_custom_call.1} parent=75 // pred_check
          %p601 = pneg %p220
        $region90: #{tpu_custom_call.1} parent=75 // pred_check_branch
          %603 = sbr.rel (%p601) target = $region92
        $region91: #{tpu_custom_call.1} parent=75 // pred_region
          %604 = dma.done %s597, 8192
        $region92: #{tpu_custom_call.1} parent=75 // pred_fallthru
          _
        %p605 = scmp.lt.s32.totalorder %s40, 1
        %s606 = scalar_select %p605, %s40, 1
        %s607 = smul.addr %s606, 2
        %s608 = smul.addr %s607, 8
        %s609 = scalar_lea.vmem %s0, %s608
        %p610 = pneg %p69
        %p611 = pneg %p66
        %p612 = scmp.lt.s32.totalorder %s40, 1
        %s613 = scalar_select %p612, %s40, 1
        %s614 = scalar_lea.vmem %s1, %s613
        %p615 = pneg %p95
        %p616 = pneg %p92
        %p617 = pneg %p116
        %p618 = pneg %p113
        %s619 = sand.u32 %s129, 1
        %s620 = scalar_lea.sflag [#allocation6], %s619
        %s621 = sand.u32 %s129, 1
        %s622 = smul.addr %s621, 768
        %s623 = scalar_lea.vmem [#allocation5], %s622
        %p624 = pneg %p142
        %p625 = pneg %p139
        %s626 = sand.u32 %s36, 1
        %s627 = scalar_lea.sflag [#allocation8], %s626
        %s628 = sand.u32 %s155, 1
        %s629 = smul.addr %s628, 256
        %s630 = scalar_lea.vmem [#allocation7], %s629
        %p631 = pneg %p168
        %p632 = pneg %p165
        %s633 = sand.u32 %s36, 1
        %s634 = scalar_lea.sflag [#allocation8], %s633
        %s635 = sand.u32 %s181, 1
        %s636 = smul.addr %s635, 512
        %s637 = scalar_lea.vmem [#allocation9], %s636
        %p638 = pneg %p194
        %p639 = pneg %p191
        %s640 = sand.u32 %s207, 1
        %s641 = scalar_lea.sflag [#allocation11], %s640
        %s642 = sand.u32 %s207, 1
        %s643 = smul.addr %s642, 512
        %s644 = scalar_lea.vmem [#allocation10], %s643
        %p645 = pneg %p220
        %p646 = pneg %p217
        %p647 = scmp.lt.s32.totalorder %s41, 1
        %s648 = scalar_select %p647, %s41, 1
        %s649 = smul.addr %s648, 6
        %s650 = scalar_lea.vmem %s7, %s649
        %p651 = pneg %p246
        %p652 = pneg %p243
        %p653 = scmp.lt.s32.totalorder %s41, 1
        %s654 = scalar_select %p653, %s41, 1
        %s655 = smul.addr %s654, 4
        %s656 = scalar_lea.vmem %s8, %s655
        %p657 = pneg %p272
        %p658 = pneg %p269
        %p659 = scmp.lt.s32.totalorder %s41, 1
        %s660 = scalar_select %p659, %s41, 1
        %s661 = smul.addr %s660, 2
        %s662 = smul.addr %s661, 8
        %s663 = scalar_lea.vmem %s9, %s662
        %p664 = pneg %p298
        %p665 = pneg %p295
        %p666 = pneg %p319
        %p667 = pneg %p316
        %p668 = pneg %p340
        %p669 = pneg %p337
        %p670 = pneg %p361
        %p671 = pneg %p358
        %p672 = pneg %p382
        %p673 = pneg %p379
        %p674 = pneg %p408
        %p675 = pneg %p405
        %p676 = scmp.lt.s32.totalorder %s40, 1
        %s677 = scalar_select %p676, %s40, 1
        %s678 = scalar_lea.vmem %s14, %s677
        %p679 = scmp.lt.s32.totalorder %s40, 1
        %s680 = scalar_select %p679, %s40, 1
        %s681 = smul.addr %s680, 2
        %s682 = smul.addr %s681, 8
        %s683 = scalar_lea.vmem %s0, %s682
        %p684 = scmp.lt.s32.totalorder %s40, 1
        %s685 = scalar_select %p684, %s40, 1
        %s686 = scalar_lea.vmem %s1, %s685
        %p687 = scmp.lt.s32.totalorder %s41, 1
        %s688 = scalar_select %p687, %s41, 1
        %s689 = smul.addr %s688, 6
        %s690 = scalar_lea.vmem %s7, %s689
        %p691 = scmp.lt.s32.totalorder %s41, 1
        %s692 = scalar_select %p691, %s41, 1
        %s693 = smul.addr %s692, 4
        %s694 = scalar_lea.vmem %s8, %s693
        %p695 = scmp.lt.s32.totalorder %s41, 1
        %s696 = scalar_select %p695, %s41, 1
        %s697 = smul.addr %s696, 2
        %s698 = smul.addr %s697, 8
        %s699 = scalar_lea.vmem %s9, %s698
        %p700 = scmp.lt.s32.totalorder %s40, 1
        %s701 = scalar_select %p700, %s40, 1
        %s702 = scalar_lea.vmem %s14, %s701
        %p704 = scmp.eq.s32.totalorder %s41, 0
        // Predicated region
        $region93: #{tpu_custom_call.1} parent=75 // pred_check
          %p705 = pneg %p704
        $region94: #{tpu_custom_call.1} parent=75 // pred_check_branch
          %707 = sbr.rel (%p705) target = $region96
        $region95: #{tpu_custom_call.1} parent=75 // pred_region
          %v708 = vld [vmem:[%s683] sm:$0xff]
          %v709 = vld [vmem:[%s683 + $0x8] sm:$0xff]
          %v710 = vld [vmem:[%s2] ss:$2 sm:$0x3]
          %s711 = scalar_lea.vmem %s2, 1
          %v712 = vld [vmem:[%s711] ss:$2 sm:$0x3]
          %v713 = vadd.f32 %v708, %v709
          %714 = vadd.xlane.f32.xlu0 %v713
          %v715 = vpop.xlane.xlu0 %714
          %v716 = vrcp.pop 256.0
          %v717 = vmul.f32 %v715, %v716
          %v718 = vsub.f32 %v708, %v717
          %v719 = vsub.f32 %v709, %v717
          %v720 = vmul.f32 %v718, %v718
          %v721 = vmul.f32 %v719, %v719
          %v722 = vadd.f32 %v720, %v721
          %723 = vadd.xlane.f32.xlu0 %v722
          %v724 = vpop.xlane.xlu0 %723
          %v725 = vmul.f32 %v724, %v716
          %v726 = vadd.f32 %v725, 1e-12
          %v727 = vrsqrt.pop %v726
          %v728 = vmul.f32 %v718, %v727
          %v729 = vmul.f32 %v719, %v727
          %v731 = vlaneseq
          %v732 = vshrl.u32 %v731, 7
          %v733 = vsub.s32 0, %v732
          %v734 = vrot.slane %v710, %v733
          %v735 = vlaneseq
          %v736 = vshrl.u32 %v735, 7
          %v737 = vsub.s32 1, %v736
          %v738 = vrot.slane %v710, %v737
          %v741 = vmul.f32 %v728, %v734
          %v742 = vmul.f32 %v729, %v738
          %v744 = vlaneseq
          %v745 = vshrl.u32 %v744, 7
          %v746 = vsub.s32 0, %v745
          %v747 = vrot.slane %v712, %v746
          %v748 = vlaneseq
          %v749 = vshrl.u32 %v748, 7
          %v750 = vsub.s32 1, %v749
          %v751 = vrot.slane %v712, %v750
          %v754 = vadd.f32 %v741, %v747
          %v755 = vadd.f32 %v742, %v751
          %756 = vst [vmem:[#allocation2] sm:$0xff] %v754
          %757 = vst [vmem:[#allocation2 + $0x8] sm:$0xff] %v755
        $region96: #{tpu_custom_call.1} parent=75 // pred_fallthru
          _
        %v758 = vld [vmem:[#allocation2] sm:$0xff]
        %v759 = vld [vmem:[#allocation2 + $0x8] sm:$0xff]
        %v760 = vld [vmem:[%s686] sm:$0x1]
        %v761 = vcvt.s32.f32 %v760
        %v762 = vsub.f32 1.0, %v761
        %v763 = vmul.f32 %v762, -10000.0
        %v764 = vld [vmem:[%s573] sm:$0xff]
        %v765 = vld [vmem:[%s573 + $0x8] sm:$0xff]
        %v766 = vld [vmem:[%s573 + $0x10] sm:$0xff]
        %v767 = vld [vmem:[%s573 + $0x18] sm:$0xff]
        %v768 = vld [vmem:[%s573 + $0x20] sm:$0xff]
        %v769 = vld [vmem:[%s573 + $0x28] sm:$0xff]
        %v770 = vld [vmem:[%s573 + $0x30] sm:$0xff]
        %v771 = vld [vmem:[%s573 + $0x38] sm:$0xff]
        %v772 = vld [vmem:[%s573 + $0x40] sm:$0xff]
        %v773 = vld [vmem:[%s573 + $0x48] sm:$0xff]
        %v774 = vld [vmem:[%s573 + $0x50] sm:$0xff]
        %v775 = vld [vmem:[%s573 + $0x58] sm:$0xff]
        %v776 = vld [vmem:[%s573 + $0x60] sm:$0xff]
        %v777 = vld [vmem:[%s573 + $0x68] sm:$0xff]
        %v778 = vld [vmem:[%s573 + $0x70] sm:$0xff]
        %v779 = vld [vmem:[%s573 + $0x78] sm:$0xff]
        %v780 = vld [vmem:[%s573 + $0x80] sm:$0xff]
        %v781 = vld [vmem:[%s573 + $0x88] sm:$0xff]
        %v782 = vld [vmem:[%s573 + $0x90] sm:$0xff]
        %v783 = vld [vmem:[%s573 + $0x98] sm:$0xff]
        %v784 = vld [vmem:[%s573 + $0xa0] sm:$0xff]
        %v785 = vld [vmem:[%s573 + $0xa8] sm:$0xff]
        %v786 = vld [vmem:[%s573 + $0xb0] sm:$0xff]
        %v787 = vld [vmem:[%s573 + $0xb8] sm:$0xff]
        %v788 = vld [vmem:[%s573 + $0xc0] sm:$0xff]
        %v789 = vld [vmem:[%s573 + $0xc8] sm:$0xff]
        %v790 = vld [vmem:[%s573 + $0xd0] sm:$0xff]
        %v791 = vld [vmem:[%s573 + $0xd8] sm:$0xff]
        %v792 = vld [vmem:[%s573 + $0xe0] sm:$0xff]
        %v793 = vld [vmem:[%s573 + $0xe8] sm:$0xff]
        %v794 = vld [vmem:[%s573 + $0xf0] sm:$0xff]
        %v795 = vld [vmem:[%s573 + $0xf8] sm:$0xff]
        %v796 = vld [vmem:[%s573 + $0x100] sm:$0xff]
        %v797 = vld [vmem:[%s573 + $0x108] sm:$0xff]
        %v798 = vld [vmem:[%s573 + $0x110] sm:$0xff]
        %v799 = vld [vmem:[%s573 + $0x118] sm:$0xff]
        %v800 = vld [vmem:[%s573 + $0x120] sm:$0xff]
        %v801 = vld [vmem:[%s573 + $0x128] sm:$0xff]
        %v802 = vld [vmem:[%s573 + $0x130] sm:$0xff]
        %v803 = vld [vmem:[%s573 + $0x138] sm:$0xff]
        %v804 = vld [vmem:[%s573 + $0x140] sm:$0xff]
        %v805 = vld [vmem:[%s573 + $0x148] sm:$0xff]
        %v806 = vld [vmem:[%s573 + $0x150] sm:$0xff]
        %v807 = vld [vmem:[%s573 + $0x158] sm:$0xff]
        %v808 = vld [vmem:[%s573 + $0x160] sm:$0xff]
        %v809 = vld [vmem:[%s573 + $0x168] sm:$0xff]
        %v810 = vld [vmem:[%s573 + $0x170] sm:$0xff]
        %v811 = vld [vmem:[%s573 + $0x178] sm:$0xff]
        %v812 = vld [vmem:[%s573 + $0x180] sm:$0xff]
        %v813 = vld [vmem:[%s573 + $0x188] sm:$0xff]
        %v814 = vld [vmem:[%s573 + $0x190] sm:$0xff]
        %v815 = vld [vmem:[%s573 + $0x198] sm:$0xff]
        %v816 = vld [vmem:[%s573 + $0x1a0] sm:$0xff]
        %v817 = vld [vmem:[%s573 + $0x1a8] sm:$0xff]
        %v818 = vld [vmem:[%s573 + $0x1b0] sm:$0xff]
        %v819 = vld [vmem:[%s573 + $0x1b8] sm:$0xff]
        %v820 = vld [vmem:[%s573 + $0x1c0] sm:$0xff]
        %v821 = vld [vmem:[%s573 + $0x1c8] sm:$0xff]
        %v822 = vld [vmem:[%s573 + $0x1d0] sm:$0xff]
        %v823 = vld [vmem:[%s573 + $0x1d8] sm:$0xff]
        %v824 = vld [vmem:[%s573 + $0x1e0] sm:$0xff]
        %v825 = vld [vmem:[%s573 + $0x1e8] sm:$0xff]
        %v826 = vld [vmem:[%s573 + $0x1f0] sm:$0xff]
        %v827 = vld [vmem:[%s573 + $0x1f8] sm:$0xff]
        %v828 = vld [vmem:[%s573 + $0x200] sm:$0xff]
        %v829 = vld [vmem:[%s573 + $0x208] sm:$0xff]
        %v830 = vld [vmem:[%s573 + $0x210] sm:$0xff]
        %v831 = vld [vmem:[%s573 + $0x218] sm:$0xff]
        %v832 = vld [vmem:[%s573 + $0x220] sm:$0xff]
        %v833 = vld [vmem:[%s573 + $0x228] sm:$0xff]
        %v834 = vld [vmem:[%s573 + $0x230] sm:$0xff]
        %v835 = vld [vmem:[%s573 + $0x238] sm:$0xff]
        %v836 = vld [vmem:[%s573 + $0x240] sm:$0xff]
        %v837 = vld [vmem:[%s573 + $0x248] sm:$0xff]
        %v838 = vld [vmem:[%s573 + $0x250] sm:$0xff]
        %v839 = vld [vmem:[%s573 + $0x258] sm:$0xff]
        %v840 = vld [vmem:[%s573 + $0x260] sm:$0xff]
        %v841 = vld [vmem:[%s573 + $0x268] sm:$0xff]
        %v842 = vld [vmem:[%s573 + $0x270] sm:$0xff]
        %v843 = vld [vmem:[%s573 + $0x278] sm:$0xff]
        %v844 = vld [vmem:[%s573 + $0x280] sm:$0xff]
        %v845 = vld [vmem:[%s573 + $0x288] sm:$0xff]
        %v846 = vld [vmem:[%s573 + $0x290] sm:$0xff]
        %v847 = vld [vmem:[%s573 + $0x298] sm:$0xff]
        %v848 = vld [vmem:[%s573 + $0x2a0] sm:$0xff]
        %v849 = vld [vmem:[%s573 + $0x2a8] sm:$0xff]
        %v850 = vld [vmem:[%s573 + $0x2b0] sm:$0xff]
        %v851 = vld [vmem:[%s573 + $0x2b8] sm:$0xff]
        %v852 = vld [vmem:[%s573 + $0x2c0] sm:$0xff]
        %v853 = vld [vmem:[%s573 + $0x2c8] sm:$0xff]
        %v854 = vld [vmem:[%s573 + $0x2d0] sm:$0xff]
        %v855 = vld [vmem:[%s573 + $0x2d8] sm:$0xff]
        %v856 = vld [vmem:[%s573 + $0x2e0] sm:$0xff]
        %v857 = vld [vmem:[%s573 + $0x2e8] sm:$0xff]
        %v858 = vld [vmem:[%s573 + $0x2f0] sm:$0xff]
        %v859 = vld [vmem:[%s573 + $0x2f8] sm:$0xff]
        %v860 = vpack.c.bf16 %v758, %v758
        %v861 = vpack.c.bf16 %v759, %v759
        %v862 = vld [vmem:[%s690] sm:$0x3f]
        %v864 = vlaneseq
        %v865 = vshrl.u32 %v864, 7
        %v866 = vsub.s32 0, %v865
        %v867 = vrot.slane %v862, %v866
        %v868 = vlaneseq
        %v869 = vshrl.u32 %v868, 7
        %v870 = vsub.s32 1, %v869
        %v871 = vrot.slane %v862, %v870
        %v872 = vlaneseq
        %v873 = vshrl.u32 %v872, 7
        %v874 = vsub.s32 2, %v873
        %v875 = vrot.slane %v862, %v874
        %v876 = vlaneseq
        %v877 = vshrl.u32 %v876, 7
        %v878 = vsub.s32 3, %v877
        %v879 = vrot.slane %v862, %v878
        %v880 = vlaneseq
        %v881 = vshrl.u32 %v880, 7
        %v882 = vsub.s32 4, %v881
        %v883 = vrot.slane %v862, %v882
        %v884 = vlaneseq
        %v885 = vshrl.u32 %v884, 7
        %v886 = vsub.s32 5, %v885
        %v887 = vrot.slane %v862, %v886
        %v990 = vunpack.c.l.b16 %v764
        %v991 = vunpack.c.h.b16 %v764
        %v992 = vunpack.c.l.b16 %v765
        %v993 = vunpack.c.h.b16 %v765
        %v994 = vunpack.c.l.b16 %v766
        %v995 = vunpack.c.h.b16 %v766
        %v996 = vunpack.c.l.b16 %v767
        %v997 = vunpack.c.h.b16 %v767
        %v998 = vunpack.c.l.b16 %v768
        %v999 = vunpack.c.h.b16 %v768
        %v1000 = vunpack.c.l.b16 %v769
        %v1001 = vunpack.c.h.b16 %v769
        %v1002 = vunpack.c.l.b16 %v770
        %v1003 = vunpack.c.h.b16 %v770
        %v1004 = vunpack.c.l.b16 %v771
        %v1005 = vunpack.c.h.b16 %v771
        %v1006 = vunpack.c.l.b16 %v772
        %v1007 = vunpack.c.h.b16 %v772
        %v1008 = vunpack.c.l.b16 %v773
        %v1009 = vunpack.c.h.b16 %v773
        %v1010 = vunpack.c.l.b16 %v774
        %v1011 = vunpack.c.h.b16 %v774
        %v1012 = vunpack.c.l.b16 %v775
        %v1013 = vunpack.c.h.b16 %v775
        %v1014 = vunpack.c.l.b16 %v776
        %v1015 = vunpack.c.h.b16 %v776
        %v1016 = vunpack.c.l.b16 %v777
        %v1017 = vunpack.c.h.b16 %v777
        %v1018 = vunpack.c.l.b16 %v778
        %v1019 = vunpack.c.h.b16 %v778
        %v1020 = vunpack.c.l.b16 %v779
        %v1021 = vunpack.c.h.b16 %v779
        %v1022 = vunpack.c.l.b16 %v780
        %v1023 = vunpack.c.h.b16 %v780
        %v1024 = vunpack.c.l.b16 %v781
        %v1025 = vunpack.c.h.b16 %v781
        %v1026 = vunpack.c.l.b16 %v782
        %v1027 = vunpack.c.h.b16 %v782
        %v1028 = vunpack.c.l.b16 %v783
        %v1029 = vunpack.c.h.b16 %v783
        %v1030 = vunpack.c.l.b16 %v784
        %v1031 = vunpack.c.h.b16 %v784
        %v1032 = vunpack.c.l.b16 %v785
        %v1033 = vunpack.c.h.b16 %v785
        %v1034 = vunpack.c.l.b16 %v786
        %v1035 = vunpack.c.h.b16 %v786
        %v1036 = vunpack.c.l.b16 %v787
        %v1037 = vunpack.c.h.b16 %v787
        %v1038 = vunpack.c.l.b16 %v788
        %v1039 = vunpack.c.h.b16 %v788
        %v1040 = vunpack.c.l.b16 %v789
        %v1041 = vunpack.c.h.b16 %v789
        %v1042 = vunpack.c.l.b16 %v790
        %v1043 = vunpack.c.h.b16 %v790
        %v1044 = vunpack.c.l.b16 %v791
        %v1045 = vunpack.c.h.b16 %v791
        %v1046 = vunpack.c.l.b16 %v792
        %v1047 = vunpack.c.h.b16 %v792
        %v1048 = vunpack.c.l.b16 %v793
        %v1049 = vunpack.c.h.b16 %v793
        %v1050 = vunpack.c.l.b16 %v794
        %v1051 = vunpack.c.h.b16 %v794
        %v1052 = vunpack.c.l.b16 %v795
        %v1053 = vunpack.c.h.b16 %v795
        %v1054 = vunpack.c.l.b16 %v796
        %v1055 = vunpack.c.h.b16 %v796
        %v1056 = vunpack.c.l.b16 %v797
        %v1057 = vunpack.c.h.b16 %v797
        %v1058 = vunpack.c.l.b16 %v798
        %v1059 = vunpack.c.h.b16 %v798
        %v1060 = vunpack.c.l.b16 %v799
        %v1061 = vunpack.c.h.b16 %v799
        %v1062 = vunpack.c.l.b16 %v800
        %v1063 = vunpack.c.h.b16 %v800
        %v1064 = vunpack.c.l.b16 %v801
        %v1065 = vunpack.c.h.b16 %v801
        %v1066 = vunpack.c.l.b16 %v802
        %v1067 = vunpack.c.h.b16 %v802
        %v1068 = vunpack.c.l.b16 %v803
        %v1069 = vunpack.c.h.b16 %v803
        %v1070 = vunpack.c.l.b16 %v804
        %v1071 = vunpack.c.h.b16 %v804
        %v1072 = vunpack.c.l.b16 %v805
        %v1073 = vunpack.c.h.b16 %v805
        %v1074 = vunpack.c.l.b16 %v806
        %v1075 = vunpack.c.h.b16 %v806
        %v1076 = vunpack.c.l.b16 %v807
        %v1077 = vunpack.c.h.b16 %v807
        %v1078 = vunpack.c.l.b16 %v808
        %v1079 = vunpack.c.h.b16 %v808
        %v1080 = vunpack.c.l.b16 %v809
        %v1081 = vunpack.c.h.b16 %v809
        %v1082 = vunpack.c.l.b16 %v810
        %v1083 = vunpack.c.h.b16 %v810
        %v1084 = vunpack.c.l.b16 %v811
        %v1085 = vunpack.c.h.b16 %v811
        %v1086 = vunpack.c.l.b16 %v812
        %v1087 = vunpack.c.h.b16 %v812
        %v1088 = vunpack.c.l.b16 %v813
        %v1089 = vunpack.c.h.b16 %v813
        %v1090 = vunpack.c.l.b16 %v814
        %v1091 = vunpack.c.h.b16 %v814
        %v1092 = vunpack.c.l.b16 %v815
        %v1093 = vunpack.c.h.b16 %v815
        %v1094 = vunpack.c.l.b16 %v816
        %v1095 = vunpack.c.h.b16 %v816
        %v1096 = vunpack.c.l.b16 %v817
        %v1097 = vunpack.c.h.b16 %v817
        %v1098 = vunpack.c.l.b16 %v818
        %v1099 = vunpack.c.h.b16 %v818
        %v1100 = vunpack.c.l.b16 %v819
        %v1101 = vunpack.c.h.b16 %v819
        %v1102 = vunpack.c.l.b16 %v820
        %v1103 = vunpack.c.h.b16 %v820
        %v1104 = vunpack.c.l.b16 %v821
        %v1105 = vunpack.c.h.b16 %v821
        %v1106 = vunpack.c.l.b16 %v822
        %v1107 = vunpack.c.h.b16 %v822
        %v1108 = vunpack.c.l.b16 %v823
        %v1109 = vunpack.c.h.b16 %v823
        %v1110 = vunpack.c.l.b16 %v824
        %v1111 = vunpack.c.h.b16 %v824
        %v1112 = vunpack.c.l.b16 %v825
        %v1113 = vunpack.c.h.b16 %v825
        %v1114 = vunpack.c.l.b16 %v826
        %v1115 = vunpack.c.h.b16 %v826
        %v1116 = vunpack.c.l.b16 %v827
        %v1117 = vunpack.c.h.b16 %v827
        %v1118 = vunpack.c.l.b16 %v828
        %v1119 = vunpack.c.h.b16 %v828
        %v1120 = vunpack.c.l.b16 %v829
        %v1121 = vunpack.c.h.b16 %v829
        %v1122 = vunpack.c.l.b16 %v830
        %v1123 = vunpack.c.h.b16 %v830
        %v1124 = vunpack.c.l.b16 %v831
        %v1125 = vunpack.c.h.b16 %v831
        %v1126 = vunpack.c.l.b16 %v832
        %v1127 = vunpack.c.h.b16 %v832
        %v1128 = vunpack.c.l.b16 %v833
        %v1129 = vunpack.c.h.b16 %v833
        %v1130 = vunpack.c.l.b16 %v834
        %v1131 = vunpack.c.h.b16 %v834
        %v1132 = vunpack.c.l.b16 %v835
        %v1133 = vunpack.c.h.b16 %v835
        %v1134 = vunpack.c.l.b16 %v836
        %v1135 = vunpack.c.h.b16 %v836
        %v1136 = vunpack.c.l.b16 %v837
        %v1137 = vunpack.c.h.b16 %v837
        %v1138 = vunpack.c.l.b16 %v838
        %v1139 = vunpack.c.h.b16 %v838
        %v1140 = vunpack.c.l.b16 %v839
        %v1141 = vunpack.c.h.b16 %v839
        %v1142 = vunpack.c.l.b16 %v840
        %v1143 = vunpack.c.h.b16 %v840
        %v1144 = vunpack.c.l.b16 %v841
        %v1145 = vunpack.c.h.b16 %v841
        %v1146 = vunpack.c.l.b16 %v842
        %v1147 = vunpack.c.h.b16 %v842
        %v1148 = vunpack.c.l.b16 %v843
        %v1149 = vunpack.c.h.b16 %v843
        %v1150 = vunpack.c.l.b16 %v844
        %v1151 = vunpack.c.h.b16 %v844
        %v1152 = vunpack.c.l.b16 %v845
        %v1153 = vunpack.c.h.b16 %v845
        %v1154 = vunpack.c.l.b16 %v846
        %v1155 = vunpack.c.h.b16 %v846
        %v1156 = vunpack.c.l.b16 %v847
        %v1157 = vunpack.c.h.b16 %v847
        %v1158 = vunpack.c.l.b16 %v848
        %v1159 = vunpack.c.h.b16 %v848
        %v1160 = vunpack.c.l.b16 %v849
        %v1161 = vunpack.c.h.b16 %v849
        %v1162 = vunpack.c.l.b16 %v850
        %v1163 = vunpack.c.h.b16 %v850
        %v1164 = vunpack.c.l.b16 %v851
        %v1165 = vunpack.c.h.b16 %v851
        %v1166 = vunpack.c.l.b16 %v852
        %v1167 = vunpack.c.h.b16 %v852
        %v1168 = vunpack.c.l.b16 %v853
        %v1169 = vunpack.c.h.b16 %v853
        %v1170 = vunpack.c.l.b16 %v854
        %v1171 = vunpack.c.h.b16 %v854
        %v1172 = vunpack.c.l.b16 %v855
        %v1173 = vunpack.c.h.b16 %v855
        %v1174 = vunpack.c.l.b16 %v856
        %v1175 = vunpack.c.h.b16 %v856
        %v1176 = vunpack.c.l.b16 %v857
        %v1177 = vunpack.c.h.b16 %v857
        %v1178 = vunpack.c.l.b16 %v858
        %v1179 = vunpack.c.h.b16 %v858
        %v1180 = vunpack.c.l.b16 %v859
        %v1181 = vunpack.c.h.b16 %v859
        %v1182 = vpack.c.b16 %v996, %v990
        %v1183 = vpack.c.b16 %v997, %v991
        %v1184 = vpack.c.b16 %v998, %v992
        %v1185 = vpack.c.b16 %v999, %v993
        %v1186 = vpack.c.b16 %v1000, %v994
        %v1187 = vpack.c.b16 %v1001, %v995
        %v1188 = vpack.c.b16 %v1008, %v1002
        %v1189 = vpack.c.b16 %v1009, %v1003
        %v1190 = vpack.c.b16 %v1010, %v1004
        %v1191 = vpack.c.b16 %v1011, %v1005
        %v1192 = vpack.c.b16 %v1012, %v1006
        %v1193 = vpack.c.b16 %v1013, %v1007
        %v1194 = vpack.c.b16 %v1020, %v1014
        %v1195 = vpack.c.b16 %v1021, %v1015
        %v1196 = vpack.c.b16 %v1022, %v1016
        %v1197 = vpack.c.b16 %v1023, %v1017
        %v1198 = vpack.c.b16 %v1024, %v1018
        %v1199 = vpack.c.b16 %v1025, %v1019
        %v1200 = vpack.c.b16 %v1032, %v1026
        %v1201 = vpack.c.b16 %v1033, %v1027
        %v1202 = vpack.c.b16 %v1034, %v1028
        %v1203 = vpack.c.b16 %v1035, %v1029
        %v1204 = vpack.c.b16 %v1036, %v1030
        %v1205 = vpack.c.b16 %v1037, %v1031
        %v1206 = vpack.c.b16 %v1044, %v1038
        %v1207 = vpack.c.b16 %v1045, %v1039
        %v1208 = vpack.c.b16 %v1046, %v1040
        %v1209 = vpack.c.b16 %v1047, %v1041
        %v1210 = vpack.c.b16 %v1048, %v1042
        %v1211 = vpack.c.b16 %v1049, %v1043
        %v1212 = vpack.c.b16 %v1056, %v1050
        %v1213 = vpack.c.b16 %v1057, %v1051
        %v1214 = vpack.c.b16 %v1058, %v1052
        %v1215 = vpack.c.b16 %v1059, %v1053
        %v1216 = vpack.c.b16 %v1060, %v1054
        %v1217 = vpack.c.b16 %v1061, %v1055
        %v1218 = vpack.c.b16 %v1068, %v1062
        %v1219 = vpack.c.b16 %v1069, %v1063
        %v1220 = vpack.c.b16 %v1070, %v1064
        %v1221 = vpack.c.b16 %v1071, %v1065
        %v1222 = vpack.c.b16 %v1072, %v1066
        %v1223 = vpack.c.b16 %v1073, %v1067
        %v1224 = vpack.c.b16 %v1080, %v1074
        %v1225 = vpack.c.b16 %v1081, %v1075
        %v1226 = vpack.c.b16 %v1082, %v1076
        %v1227 = vpack.c.b16 %v1083, %v1077
        %v1228 = vpack.c.b16 %v1084, %v1078
        %v1229 = vpack.c.b16 %v1085, %v1079
        %v1230 = vpack.c.b16 %v1092, %v1086
        %v1231 = vpack.c.b16 %v1093, %v1087
        %v1232 = vpack.c.b16 %v1094, %v1088
        %v1233 = vpack.c.b16 %v1095, %v1089
        %v1234 = vpack.c.b16 %v1096, %v1090
        %v1235 = vpack.c.b16 %v1097, %v1091
        %v1236 = vpack.c.b16 %v1104, %v1098
        %v1237 = vpack.c.b16 %v1105, %v1099
        %v1238 = vpack.c.b16 %v1106, %v1100
        %v1239 = vpack.c.b16 %v1107, %v1101
        %v1240 = vpack.c.b16 %v1108, %v1102
        %v1241 = vpack.c.b16 %v1109, %v1103
        %v1242 = vpack.c.b16 %v1116, %v1110
        %v1243 = vpack.c.b16 %v1117, %v1111
        %v1244 = vpack.c.b16 %v1118, %v1112
        %v1245 = vpack.c.b16 %v1119, %v1113
        %v1246 = vpack.c.b16 %v1120, %v1114
        %v1247 = vpack.c.b16 %v1121, %v1115
        %v1248 = vpack.c.b16 %v1128, %v1122
        %v1249 = vpack.c.b16 %v1129, %v1123
        %v1250 = vpack.c.b16 %v1130, %v1124
        %v1251 = vpack.c.b16 %v1131, %v1125
        %v1252 = vpack.c.b16 %v1132, %v1126
        %v1253 = vpack.c.b16 %v1133, %v1127
        %v1254 = vpack.c.b16 %v1140, %v1134
        %v1255 = vpack.c.b16 %v1141, %v1135
        %v1256 = vpack.c.b16 %v1142, %v1136
        %v1257 = vpack.c.b16 %v1143, %v1137
        %v1258 = vpack.c.b16 %v1144, %v1138
        %v1259 = vpack.c.b16 %v1145, %v1139
        %v1260 = vpack.c.b16 %v1152, %v1146
        %v1261 = vpack.c.b16 %v1153, %v1147
        %v1262 = vpack.c.b16 %v1154, %v1148
        %v1263 = vpack.c.b16 %v1155, %v1149
        %v1264 = vpack.c.b16 %v1156, %v1150
        %v1265 = vpack.c.b16 %v1157, %v1151
        %v1266 = vpack.c.b16 %v1164, %v1158
        %v1267 = vpack.c.b16 %v1165, %v1159
        %v1268 = vpack.c.b16 %v1166, %v1160
        %v1269 = vpack.c.b16 %v1167, %v1161
        %v1270 = vpack.c.b16 %v1168, %v1162
        %v1271 = vpack.c.b16 %v1169, %v1163
        %v1272 = vpack.c.b16 %v1176, %v1170
        %v1273 = vpack.c.b16 %v1177, %v1171
        %v1274 = vpack.c.b16 %v1178, %v1172
        %v1275 = vpack.c.b16 %v1179, %v1173
        %v1276 = vpack.c.b16 %v1180, %v1174
        %v1277 = vpack.c.b16 %v1181, %v1175
        %1374 = vmatprep.subr.bf16.mxu0 %v1183
        %1375 = vmatpush1.bf16.msra.mxu0 %v1182
        %1376 = vmatprep.subr.bf16.mxu0 %v1189
        %1377 = vmatpush1.bf16.msra.mxu0 %v1188
        %1378 = vmatprep.subr.bf16.mxu0 %v1195
        %1379 = vmatpush1.bf16.msra.mxu0 %v1194
        %1380 = vmatprep.subr.bf16.mxu0 %v1201
        %1381 = vmatpush1.bf16.msra.mxu0 %v1200
        %1382 = vmatprep.subr.bf16.mxu0 %v1207
        %1383 = vmatpush1.bf16.msra.mxu0 %v1206
        %1384 = vmatprep.subr.bf16.mxu0 %v1213
        %1385 = vmatpush1.bf16.msra.mxu0 %v1212
        %1386 = vmatprep.subr.bf16.mxu0 %v1219
        %1387 = vmatpush1.bf16.msra.mxu0 %v1218
        %1388 = vmatprep.subr.bf16.mxu0 %v1225
        %1389 = vmatpush1.bf16.msra.mxu0 %v1224
        %1390 = vmatprep.subr.bf16.mxu0 %v1231
        %1391 = vmatpush1.bf16.msra.mxu0 %v1230
        %1392 = vmatprep.subr.bf16.mxu0 %v1237
        %1393 = vmatpush1.bf16.msra.mxu0 %v1236
        %1394 = vmatprep.subr.bf16.mxu0 %v1243
        %1395 = vmatpush1.bf16.msra.mxu0 %v1242
        %1396 = vmatprep.subr.bf16.mxu0 %v1249
        %1397 = vmatpush1.bf16.msra.mxu0 %v1248
        %1398 = vmatprep.subr.bf16.mxu0 %v1255
        %1399 = vmatpush1.bf16.msra.mxu0 %v1254
        %1400 = vmatprep.subr.bf16.mxu0 %v1261
        %1401 = vmatpush1.bf16.msra.mxu0 %v1260
        %1402 = vmatprep.subr.bf16.mxu0 %v1267
        %1403 = vmatpush1.bf16.msra.mxu0 %v1266
        %1404 = vmatprep.subr.bf16.mxu0 %v1273
        %1405 = vmatpush1.bf16.msra.mxu0 %v1272
        %1406 = vmatprep.mubr.bf16.mxu0 %v861
        %1407 = vmatmul.mubr.bf16.gmra.mrb[0].mxu0 %v860
        %v1408 = vpop.f32.mrb[0].mxu0
        %v1409 = vadd.f32 %v867, %v1408
        %v1410 = vpop.f32.mrb[0].mxu0
        %v1411 = vadd.f32 %v871, %v1410
        %v1412 = vpop.f32.mrb[0].mxu0
        %v1413 = vpop.f32.mrb[0].mxu0
        %1414 = vdwg.mxu0
        %1415 = vmatprep.subr.bf16.mxu0 %v1185
        %1416 = vmatpush1.bf16.msra.mxu0 %v1184
        %1417 = vmatprep.subr.bf16.mxu0 %v1191
        %1418 = vmatpush1.bf16.msra.mxu0 %v1190
        %1419 = vmatprep.subr.bf16.mxu0 %v1197
        %1420 = vmatpush1.bf16.msra.mxu0 %v1196
        %1421 = vmatprep.subr.bf16.mxu0 %v1203
        %1422 = vmatpush1.bf16.msra.mxu0 %v1202
        %1423 = vmatprep.subr.bf16.mxu0 %v1209
        %1424 = vmatpush1.bf16.msra.mxu0 %v1208
        %1425 = vmatprep.subr.bf16.mxu0 %v1215
        %1426 = vmatpush1.bf16.msra.mxu0 %v1214
        %1427 = vmatprep.subr.bf16.mxu0 %v1221
        %1428 = vmatpush1.bf16.msra.mxu0 %v1220
        %1429 = vmatprep.subr.bf16.mxu0 %v1227
        %1430 = vmatpush1.bf16.msra.mxu0 %v1226
        %1431 = vmatprep.subr.bf16.mxu0 %v1233
        %1432 = vmatpush1.bf16.msra.mxu0 %v1232
        %1433 = vmatprep.subr.bf16.mxu0 %v1239
        %1434 = vmatpush1.bf16.msra.mxu0 %v1238
        %1435 = vmatprep.subr.bf16.mxu0 %v1245
        %1436 = vmatpush1.bf16.msra.mxu0 %v1244
        %1437 = vmatprep.subr.bf16.mxu0 %v1251
        %1438 = vmatpush1.bf16.msra.mxu0 %v1250
        %1439 = vmatprep.subr.bf16.mxu0 %v1257
        %1440 = vmatpush1.bf16.msra.mxu0 %v1256
        %1441 = vmatprep.subr.bf16.mxu0 %v1263
        %1442 = vmatpush1.bf16.msra.mxu0 %v1262
        %1443 = vmatprep.subr.bf16.mxu0 %v1269
        %1444 = vmatpush1.bf16.msra.mxu0 %v1268
        %1445 = vmatprep.subr.bf16.mxu0 %v1275
        %1446 = vmatpush1.bf16.msra.mxu0 %v1274
        %1447 = vmatprep.mubr.bf16.mxu0 %v861
        %1448 = vmatmul.mubr.bf16.gmra.mrb[0].mxu0 %v860
        %v1449 = vpop.f32.mrb[0].mxu0
        %v1450 = vadd.f32 %v875, %v1449
        %v1451 = vpop.f32.mrb[0].mxu0
        %v1452 = vadd.f32 %v879, %v1451
        %v1453 = vpop.f32.mrb[0].mxu0
        %v1454 = vpop.f32.mrb[0].mxu0
        %1455 = vdwg.mxu0
        %1456 = vmatprep.subr.bf16.mxu0 %v1187
        %1457 = vmatpush1.bf16.msra.mxu0 %v1186
        %1458 = vmatprep.subr.bf16.mxu0 %v1193
        %1459 = vmatpush1.bf16.msra.mxu0 %v1192
        %1460 = vmatprep.subr.bf16.mxu0 %v1199
        %1461 = vmatpush1.bf16.msra.mxu0 %v1198
        %1462 = vmatprep.subr.bf16.mxu0 %v1205
        %1463 = vmatpush1.bf16.msra.mxu0 %v1204
        %1464 = vmatprep.subr.bf16.mxu0 %v1211
        %1465 = vmatpush1.bf16.msra.mxu0 %v1210
        %1466 = vmatprep.subr.bf16.mxu0 %v1217
        %1467 = vmatpush1.bf16.msra.mxu0 %v1216
        %1468 = vmatprep.subr.bf16.mxu0 %v1223
        %1469 = vmatpush1.bf16.msra.mxu0 %v1222
        %1470 = vmatprep.subr.bf16.mxu0 %v1229
        %1471 = vmatpush1.bf16.msra.mxu0 %v1228
        %1472 = vmatprep.subr.bf16.mxu0 %v1235
        %1473 = vmatpush1.bf16.msra.mxu0 %v1234
        %1474 = vmatprep.subr.bf16.mxu0 %v1241
        %1475 = vmatpush1.bf16.msra.mxu0 %v1240
        %1476 = vmatprep.subr.bf16.mxu0 %v1247
        %1477 = vmatpush1.bf16.msra.mxu0 %v1246
        %1478 = vmatprep.subr.bf16.mxu0 %v1253
        %1479 = vmatpush1.bf16.msra.mxu0 %v1252
        %1480 = vmatprep.subr.bf16.mxu0 %v1259
        %1481 = vmatpush1.bf16.msra.mxu0 %v1258
        %1482 = vmatprep.subr.bf16.mxu0 %v1265
        %1483 = vmatpush1.bf16.msra.mxu0 %v1264
        %1484 = vmatprep.subr.bf16.mxu0 %v1271
        %1485 = vmatpush1.bf16.msra.mxu0 %v1270
        %1486 = vmatprep.subr.bf16.mxu0 %v1277
        %1487 = vmatpush1.bf16.msra.mxu0 %v1276
        %1488 = vmatprep.mubr.bf16.mxu0 %v861
        %1489 = vmatmul.mubr.bf16.gmra.mrb[0].mxu0 %v860
        %v1490 = vpop.f32.mrb[0].mxu0
        %v1491 = vadd.f32 %v883, %v1490
        %v1492 = vpop.f32.mrb[0].mxu0
        %v1493 = vadd.f32 %v887, %v1492
        %v1494 = vpop.f32.mrb[0].mxu0
        %v1495 = vpop.f32.mrb[0].mxu0
        %1496 = vdwg.mxu0
        %v1497 = vpack.c.bf16 %v1409, %v1409
        %v1498 = vpack.c.bf16 %v1450, %v1450
        %v1499 = vpack.c.bf16 %v1491, %v1491
        %v1501 = vlaneseq
        %v1502 = vshrl.u32 %v1501, 7
        %v1503 = vsub.s32 0, %v1502
        %v1504 = vrot.slane %v763, %v1503
        %1506 = vmatprep.subr.bf16.mxu0 0
        %1507 = vmatpush1.bf16.xpose.msra.mxu0 %v1498
        %1508 = vmatprep.subr.bf16.mxu0 0
        %1509 = vmatpush1.bf16.xpose.msra.mxu0 0
        %1510 = vmatprep.subr.bf16.mxu0 0
        %1511 = vmatpush1.bf16.xpose.msra.mxu0 0
        %1512 = vmatprep.subr.bf16.mxu0 0
        %1513 = vmatpush1.bf16.xpose.msra.mxu0 0
        %1514 = vmatprep.subr.bf16.mxu0 0
        %1515 = vmatpush1.bf16.xpose.msra.mxu0 0
        %1516 = vmatprep.subr.bf16.mxu0 0
        %1517 = vmatpush1.bf16.xpose.msra.mxu0 0
        %1518 = vmatprep.subr.bf16.mxu0 0
        %1519 = vmatpush1.bf16.xpose.msra.mxu0 0
        %1520 = vmatprep.subr.bf16.mxu0 0
        %1521 = vmatpush1.bf16.xpose.msra.mxu0 0
        %1522 = vmatprep.subr.bf16.mxu0 0
        %1523 = vmatpush1.bf16.xpose.msra.mxu0 0
        %1524 = vmatprep.subr.bf16.mxu0 0
        %1525 = vmatpush1.bf16.xpose.msra.mxu0 0
        %1526 = vmatprep.subr.bf16.mxu0 0
        %1527 = vmatpush1.bf16.xpose.msra.mxu0 0
        %1528 = vmatprep.subr.bf16.mxu0 0
        %1529 = vmatpush1.bf16.xpose.msra.mxu0 0
        %1530 = vmatprep.subr.bf16.mxu0 0
        %1531 = vmatpush1.bf16.xpose.msra.mxu0 0
        %1532 = vmatprep.subr.bf16.mxu0 0
        %1533 = vmatpush1.bf16.xpose.msra.mxu0 0
        %1534 = vmatprep.subr.bf16.mxu0 0
        %1535 = vmatpush1.bf16.xpose.msra.mxu0 0
        %1536 = vmatprep.subr.bf16.mxu0 0
        %1537 = vmatpush1.bf16.xpose.msra.mxu0 0
        %1538 = vmatprep.mubr.bf16.mxu0 0
        %1539 = vmatmul.mubr.bf16.gmra.mrb[0].mxu0 %v1497
        %v1540 = vpop.f32.mrb[0].mxu0
        %v1541 = vadd.f32 %v1504, %v1540
        %v1542 = vpop.f32.mrb[0].mxu0
        %v1543 = vpop.f32.mrb[0].mxu0
        %v1544 = vpop.f32.mrb[0].mxu0
        %1545 = vdwg.mxu0
        %vm1546 = vcmask 64512
        %v1547 = vsel %vm1546, %v1541, -inf
        %1548 = vmax.xlane.f32.xlu0 %v1547
        %v1549 = vpop.xlane.xlu0 %1548
        %v1550 = vsub.f32 %v1541, %v1549
        %v1551 = vmul.f32 %v1550, 1.442695
        %v1552 = vpow.pop %v1551
        %v1553 = vsel %vm1546, %v1552, 0.0
        %1554 = vadd.xlane.f32.xlu0 %v1553
        %v1555 = vpop.xlane.xlu0 %1554
        %v1556 = vrcp.pop %v1555
        %v1557 = vmul.f32 %v1552, %v1556
        %v1558 = vpack.c.bf16 %v1557, %v1557
        %v1560 = vsel %vm1546, %v1558, 0
        %vm1562 = vcmask 1043456
        %v1564 = vsel %vm1562, %v1499, 0
        %1566 = vmatprep.subr.bf16.mxu0 0
        %1567 = vmatpush1.bf16.msra.mxu0 %v1564
        %1568 = vmatprep.subr.bf16.mxu0 0
        %1569 = vmatpush1.bf16.msra.mxu0 0
        %1570 = vmatprep.subr.bf16.mxu0 0
        %1571 = vmatpush1.bf16.msra.mxu0 0
        %1572 = vmatprep.subr.bf16.mxu0 0
        %1573 = vmatpush1.bf16.msra.mxu0 0
        %1574 = vmatprep.subr.bf16.mxu0 0
        %1575 = vmatpush1.bf16.msra.mxu0 0
        %1576 = vmatprep.subr.bf16.mxu0 0
        %1577 = vmatpush1.bf16.msra.mxu0 0
        %1578 = vmatprep.subr.bf16.mxu0 0
        %1579 = vmatpush1.bf16.msra.mxu0 0
        %1580 = vmatprep.subr.bf16.mxu0 0
        %1581 = vmatpush1.bf16.msra.mxu0 0
        %1582 = vmatprep.subr.bf16.mxu0 0
        %1583 = vmatpush1.bf16.msra.mxu0 0
        %1584 = vmatprep.subr.bf16.mxu0 0
        %1585 = vmatpush1.bf16.msra.mxu0 0
        %1586 = vmatprep.subr.bf16.mxu0 0
        %1587 = vmatpush1.bf16.msra.mxu0 0
        %1588 = vmatprep.subr.bf16.mxu0 0
        %1589 = vmatpush1.bf16.msra.mxu0 0
        %1590 = vmatprep.subr.bf16.mxu0 0
        %1591 = vmatpush1.bf16.msra.mxu0 0
        %1592 = vmatprep.subr.bf16.mxu0 0
        %1593 = vmatpush1.bf16.msra.mxu0 0
        %1594 = vmatprep.subr.bf16.mxu0 0
        %1595 = vmatpush1.bf16.msra.mxu0 0
        %1596 = vmatprep.subr.bf16.mxu0 0
        %1597 = vmatpush1.bf16.msra.mxu0 0
        %1598 = vmatprep.mubr.bf16.mxu0 0
        %1599 = vmatmul.mubr.bf16.gmra.mrb[0].mxu0 %v1560
        %v1600 = vpop.f32.mrb[0].mxu0
        %v1601 = vadd.f32 0.0, %v1600
        %v1602 = vpop.f32.mrb[0].mxu0
        %v1603 = vpop.f32.mrb[0].mxu0
        %v1604 = vpop.f32.mrb[0].mxu0
        %1605 = vdwg.mxu0
        %1606 = vst [vmem:[#allocation3] sm:$0xff] %v1601
        %v1607 = vpack.c.bf16 %v1411, %v1411
        %v1608 = vpack.c.bf16 %v1452, %v1452
        %v1609 = vpack.c.bf16 %v1493, %v1493
        %1610 = vmatprep.subr.bf16.mxu0 0
        %1611 = vmatpush1.bf16.xpose.msra.mxu0 %v1608
        %1612 = vmatprep.subr.bf16.mxu0 0
        %1613 = vmatpush1.bf16.xpose.msra.mxu0 0
        %1614 = vmatprep.subr.bf16.mxu0 0
        %1615 = vmatpush1.bf16.xpose.msra.mxu0 0
        %1616 = vmatprep.subr.bf16.mxu0 0
        %1617 = vmatpush1.bf16.xpose.msra.mxu0 0
        %1618 = vmatprep.subr.bf16.mxu0 0
        %1619 = vmatpush1.bf16.xpose.msra.mxu0 0
        %1620 = vmatprep.subr.bf16.mxu0 0
        %1621 = vmatpush1.bf16.xpose.msra.mxu0 0
        %1622 = vmatprep.subr.bf16.mxu0 0
        %1623 = vmatpush1.bf16.xpose.msra.mxu0 0
        %1624 = vmatprep.subr.bf16.mxu0 0
        %1625 = vmatpush1.bf16.xpose.msra.mxu0 0
        %1626 = vmatprep.subr.bf16.mxu0 0
        %1627 = vmatpush1.bf16.xpose.msra.mxu0 0
        %1628 = vmatprep.subr.bf16.mxu0 0
        %1629 = vmatpush1.bf16.xpose.msra.mxu0 0
        %1630 = vmatprep.subr.bf16.mxu0 0
        %1631 = vmatpush1.bf16.xpose.msra.mxu0 0
        %1632 = vmatprep.subr.bf16.mxu0 0
        %1633 = vmatpush1.bf16.xpose.msra.mxu0 0
        %1634 = vmatprep.subr.bf16.mxu0 0
        %1635 = vmatpush1.bf16.xpose.msra.mxu0 0
        %1636 = vmatprep.subr.bf16.mxu0 0
        %1637 = vmatpush1.bf16.xpose.msra.mxu0 0
        %1638 = vmatprep.subr.bf16.mxu0 0
        %1639 = vmatpush1.bf16.xpose.msra.mxu0 0
        %1640 = vmatprep.subr.bf16.mxu0 0
        %1641 = vmatpush1.bf16.xpose.msra.mxu0 0
        %1642 = vmatprep.mubr.bf16.mxu0 0
        %1643 = vmatmul.mubr.bf16.gmra.mrb[0].mxu0 %v1607
        %v1644 = vpop.f32.mrb[0].mxu0
        %v1645 = vadd.f32 %v1504, %v1644
        %v1646 = vpop.f32.mrb[0].mxu0
        %v1647 = vpop.f32.mrb[0].mxu0
        %v1648 = vpop.f32.mrb[0].mxu0
        %1649 = vdwg.mxu0
        %v1650 = vsel %vm1546, %v1645, -inf
        %1651 = vmax.xlane.f32.xlu0 %v1650
        %v1652 = vpop.xlane.xlu0 %1651
        %v1653 = vsub.f32 %v1645, %v1652
        %v1654 = vmul.f32 %v1653, 1.442695
        %v1655 = vpow.pop %v1654
        %v1656 = vsel %vm1546, %v1655, 0.0
        %1657 = vadd.xlane.f32.xlu0 %v1656
        %v1658 = vpop.xlane.xlu0 %1657
        %v1659 = vrcp.pop %v1658
        %v1660 = vmul.f32 %v1655, %v1659
        %v1661 = vpack.c.bf16 %v1660, %v1660
        %v1663 = vsel %vm1546, %v1661, 0
        %v1666 = vsel %vm1562, %v1609, 0
        %1668 = vmatprep.subr.bf16.mxu0 0
        %1669 = vmatpush1.bf16.msra.mxu0 %v1666
        %1670 = vmatprep.subr.bf16.mxu0 0
        %1671 = vmatpush1.bf16.msra.mxu0 0
        %1672 = vmatprep.subr.bf16.mxu0 0
        %1673 = vmatpush1.bf16.msra.mxu0 0
        %1674 = vmatprep.subr.bf16.mxu0 0
        %1675 = vmatpush1.bf16.msra.mxu0 0
        %1676 = vmatprep.subr.bf16.mxu0 0
        %1677 = vmatpush1.bf16.msra.mxu0 0
        %1678 = vmatprep.subr.bf16.mxu0 0
        %1679 = vmatpush1.bf16.msra.mxu0 0
        %1680 = vmatprep.subr.bf16.mxu0 0
        %1681 = vmatpush1.bf16.msra.mxu0 0
        %1682 = vmatprep.subr.bf16.mxu0 0
        %1683 = vmatpush1.bf16.msra.mxu0 0
        %1684 = vmatprep.subr.bf16.mxu0 0
        %1685 = vmatpush1.bf16.msra.mxu0 0
        %1686 = vmatprep.subr.bf16.mxu0 0
        %1687 = vmatpush1.bf16.msra.mxu0 0
        %1688 = vmatprep.subr.bf16.mxu0 0
        %1689 = vmatpush1.bf16.msra.mxu0 0
        %1690 = vmatprep.subr.bf16.mxu0 0
        %1691 = vmatpush1.bf16.msra.mxu0 0
        %1692 = vmatprep.subr.bf16.mxu0 0
        %1693 = vmatpush1.bf16.msra.mxu0 0
        %1694 = vmatprep.subr.bf16.mxu0 0
        %1695 = vmatpush1.bf16.msra.mxu0 0
        %1696 = vmatprep.subr.bf16.mxu0 0
        %1697 = vmatpush1.bf16.msra.mxu0 0
        %1698 = vmatprep.subr.bf16.mxu0 0
        %1699 = vmatpush1.bf16.msra.mxu0 0
        %1700 = vmatprep.mubr.bf16.mxu0 0
        %1701 = vmatmul.mubr.bf16.gmra.mrb[0].mxu0 %v1663
        %v1702 = vpop.f32.mrb[0].mxu0
        %v1703 = vadd.f32 0.0, %v1702
        %v1704 = vpop.f32.mrb[0].mxu0
        %v1705 = vpop.f32.mrb[0].mxu0
        %v1706 = vpop.f32.mrb[0].mxu0
        %1707 = vdwg.mxu0
        %1708 = vst [vmem:[#allocation3 + $0x8] sm:$0xff] %v1703
        %v1709 = vld [vmem:[#allocation3] sm:$0xff]
        %v1710 = vld [vmem:[#allocation3 + $0x8] sm:$0xff]
        %v1711 = vld [vmem:[%s582] sm:$0xff]
        %v1712 = vld [vmem:[%s582 + $0x8] sm:$0xff]
        %v1713 = vld [vmem:[%s582 + $0x10] sm:$0xff]
        %v1714 = vld [vmem:[%s582 + $0x18] sm:$0xff]
        %v1715 = vld [vmem:[%s582 + $0x20] sm:$0xff]
        %v1716 = vld [vmem:[%s582 + $0x28] sm:$0xff]
        %v1717 = vld [vmem:[%s582 + $0x30] sm:$0xff]
        %v1718 = vld [vmem:[%s582 + $0x38] sm:$0xff]
        %v1719 = vld [vmem:[%s582 + $0x40] sm:$0xff]
        %v1720 = vld [vmem:[%s582 + $0x48] sm:$0xff]
        %v1721 = vld [vmem:[%s582 + $0x50] sm:$0xff]
        %v1722 = vld [vmem:[%s582 + $0x58] sm:$0xff]
        %v1723 = vld [vmem:[%s582 + $0x60] sm:$0xff]
        %v1724 = vld [vmem:[%s582 + $0x68] sm:$0xff]
        %v1725 = vld [vmem:[%s582 + $0x70] sm:$0xff]
        %v1726 = vld [vmem:[%s582 + $0x78] sm:$0xff]
        %v1727 = vld [vmem:[%s582 + $0x80] sm:$0xff]
        %v1728 = vld [vmem:[%s582 + $0x88] sm:$0xff]
        %v1729 = vld [vmem:[%s582 + $0x90] sm:$0xff]
        %v1730 = vld [vmem:[%s582 + $0x98] sm:$0xff]
        %v1731 = vld [vmem:[%s582 + $0xa0] sm:$0xff]
        %v1732 = vld [vmem:[%s582 + $0xa8] sm:$0xff]
        %v1733 = vld [vmem:[%s582 + $0xb0] sm:$0xff]
        %v1734 = vld [vmem:[%s582 + $0xb8] sm:$0xff]
        %v1735 = vld [vmem:[%s582 + $0xc0] sm:$0xff]
        %v1736 = vld [vmem:[%s582 + $0xc8] sm:$0xff]
        %v1737 = vld [vmem:[%s582 + $0xd0] sm:$0xff]
        %v1738 = vld [vmem:[%s582 + $0xd8] sm:$0xff]
        %v1739 = vld [vmem:[%s582 + $0xe0] sm:$0xff]
        %v1740 = vld [vmem:[%s582 + $0xe8] sm:$0xff]
        %v1741 = vld [vmem:[%s582 + $0xf0] sm:$0xff]
        %v1742 = vld [vmem:[%s582 + $0xf8] sm:$0xff]
        %v1743 = vpack.c.bf16 %v1709, %v1709
        %v1744 = vpack.c.bf16 %v1710, %v1710
        %v1745 = vld [vmem:[%s699] ss:$8 sm:$0x3]
        %v1747 = vlaneseq
        %v1748 = vshrl.u32 %v1747, 7
        %v1749 = vsub.s32 0, %v1748
        %v1750 = vrot.slane %v1745, %v1749
        %v1751 = vlaneseq
        %v1752 = vshrl.u32 %v1751, 7
        %v1753 = vsub.s32 1, %v1752
        %v1754 = vrot.slane %v1745, %v1753
        %v1789 = vunpack.c.l.b16 %v1711
        %v1790 = vunpack.c.h.b16 %v1711
        %v1791 = vunpack.c.l.b16 %v1712
        %v1792 = vunpack.c.h.b16 %v1712
        %v1793 = vunpack.c.l.b16 %v1713
        %v1794 = vunpack.c.h.b16 %v1713
        %v1795 = vunpack.c.l.b16 %v1714
        %v1796 = vunpack.c.h.b16 %v1714
        %v1797 = vunpack.c.l.b16 %v1715
        %v1798 = vunpack.c.h.b16 %v1715
        %v1799 = vunpack.c.l.b16 %v1716
        %v1800 = vunpack.c.h.b16 %v1716
        %v1801 = vunpack.c.l.b16 %v1717
        %v1802 = vunpack.c.h.b16 %v1717
        %v1803 = vunpack.c.l.b16 %v1718
        %v1804 = vunpack.c.h.b16 %v1718
        %v1805 = vunpack.c.l.b16 %v1719
        %v1806 = vunpack.c.h.b16 %v1719
        %v1807 = vunpack.c.l.b16 %v1720
        %v1808 = vunpack.c.h.b16 %v1720
        %v1809 = vunpack.c.l.b16 %v1721
        %v1810 = vunpack.c.h.b16 %v1721
        %v1811 = vunpack.c.l.b16 %v1722
        %v1812 = vunpack.c.h.b16 %v1722
        %v1813 = vunpack.c.l.b16 %v1723
        %v1814 = vunpack.c.h.b16 %v1723
        %v1815 = vunpack.c.l.b16 %v1724
        %v1816 = vunpack.c.h.b16 %v1724
        %v1817 = vunpack.c.l.b16 %v1725
        %v1818 = vunpack.c.h.b16 %v1725
        %v1819 = vunpack.c.l.b16 %v1726
        %v1820 = vunpack.c.h.b16 %v1726
        %v1821 = vunpack.c.l.b16 %v1727
        %v1822 = vunpack.c.h.b16 %v1727
        %v1823 = vunpack.c.l.b16 %v1728
        %v1824 = vunpack.c.h.b16 %v1728
        %v1825 = vunpack.c.l.b16 %v1729
        %v1826 = vunpack.c.h.b16 %v1729
        %v1827 = vunpack.c.l.b16 %v1730
        %v1828 = vunpack.c.h.b16 %v1730
        %v1829 = vunpack.c.l.b16 %v1731
        %v1830 = vunpack.c.h.b16 %v1731
        %v1831 = vunpack.c.l.b16 %v1732
        %v1832 = vunpack.c.h.b16 %v1732
        %v1833 = vunpack.c.l.b16 %v1733
        %v1834 = vunpack.c.h.b16 %v1733
        %v1835 = vunpack.c.l.b16 %v1734
        %v1836 = vunpack.c.h.b16 %v1734
        %v1837 = vunpack.c.l.b16 %v1735
        %v1838 = vunpack.c.h.b16 %v1735
        %v1839 = vunpack.c.l.b16 %v1736
        %v1840 = vunpack.c.h.b16 %v1736
        %v1841 = vunpack.c.l.b16 %v1737
        %v1842 = vunpack.c.h.b16 %v1737
        %v1843 = vunpack.c.l.b16 %v1738
        %v1844 = vunpack.c.h.b16 %v1738
        %v1845 = vunpack.c.l.b16 %v1739
        %v1846 = vunpack.c.h.b16 %v1739
        %v1847 = vunpack.c.l.b16 %v1740
        %v1848 = vunpack.c.h.b16 %v1740
        %v1849 = vunpack.c.l.b16 %v1741
        %v1850 = vunpack.c.h.b16 %v1741
        %v1851 = vunpack.c.l.b16 %v1742
        %v1852 = vunpack.c.h.b16 %v1742
        %v1853 = vpack.c.b16 %v1791, %v1789
        %v1854 = vpack.c.b16 %v1792, %v1790
        %v1855 = vpack.c.b16 %v1795, %v1793
        %v1856 = vpack.c.b16 %v1796, %v1794
        %v1857 = vpack.c.b16 %v1799, %v1797
        %v1858 = vpack.c.b16 %v1800, %v1798
        %v1859 = vpack.c.b16 %v1803, %v1801
        %v1860 = vpack.c.b16 %v1804, %v1802
        %v1861 = vpack.c.b16 %v1807, %v1805
        %v1862 = vpack.c.b16 %v1808, %v1806
        %v1863 = vpack.c.b16 %v1811, %v1809
        %v1864 = vpack.c.b16 %v1812, %v1810
        %v1865 = vpack.c.b16 %v1815, %v1813
        %v1866 = vpack.c.b16 %v1816, %v1814
        %v1867 = vpack.c.b16 %v1819, %v1817
        %v1868 = vpack.c.b16 %v1820, %v1818
        %v1869 = vpack.c.b16 %v1823, %v1821
        %v1870 = vpack.c.b16 %v1824, %v1822
        %v1871 = vpack.c.b16 %v1827, %v1825
        %v1872 = vpack.c.b16 %v1828, %v1826
        %v1873 = vpack.c.b16 %v1831, %v1829
        %v1874 = vpack.c.b16 %v1832, %v1830
        %v1875 = vpack.c.b16 %v1835, %v1833
        %v1876 = vpack.c.b16 %v1836, %v1834
        %v1877 = vpack.c.b16 %v1839, %v1837
        %v1878 = vpack.c.b16 %v1840, %v1838
        %v1879 = vpack.c.b16 %v1843, %v1841
        %v1880 = vpack.c.b16 %v1844, %v1842
        %v1881 = vpack.c.b16 %v1847, %v1845
        %v1882 = vpack.c.b16 %v1848, %v1846
        %v1883 = vpack.c.b16 %v1851, %v1849
        %v1884 = vpack.c.b16 %v1852, %v1850
        %1917 = vmatprep.subr.bf16.mxu0 %v1854
        %1918 = vmatpush1.bf16.msra.mxu0 %v1853
        %1919 = vmatprep.subr.bf16.mxu0 %v1856
        %1920 = vmatpush1.bf16.msra.mxu0 %v1855
        %1921 = vmatprep.subr.bf16.mxu0 %v1858
        %1922 = vmatpush1.bf16.msra.mxu0 %v1857
        %1923 = vmatprep.subr.bf16.mxu0 %v1860
        %1924 = vmatpush1.bf16.msra.mxu0 %v1859
        %1925 = vmatprep.subr.bf16.mxu0 %v1862
        %1926 = vmatpush1.bf16.msra.mxu0 %v1861
        %1927 = vmatprep.subr.bf16.mxu0 %v1864
        %1928 = vmatpush1.bf16.msra.mxu0 %v1863
        %1929 = vmatprep.subr.bf16.mxu0 %v1866
        %1930 = vmatpush1.bf16.msra.mxu0 %v1865
        %1931 = vmatprep.subr.bf16.mxu0 %v1868
        %1932 = vmatpush1.bf16.msra.mxu0 %v1867
        %1933 = vmatprep.subr.bf16.mxu0 %v1870
        %1934 = vmatpush1.bf16.msra.mxu0 %v1869
        %1935 = vmatprep.subr.bf16.mxu0 %v1872
        %1936 = vmatpush1.bf16.msra.mxu0 %v1871
        %1937 = vmatprep.subr.bf16.mxu0 %v1874
        %1938 = vmatpush1.bf16.msra.mxu0 %v1873
        %1939 = vmatprep.subr.bf16.mxu0 %v1876
        %1940 = vmatpush1.bf16.msra.mxu0 %v1875
        %1941 = vmatprep.subr.bf16.mxu0 %v1878
        %1942 = vmatpush1.bf16.msra.mxu0 %v1877
        %1943 = vmatprep.subr.bf16.mxu0 %v1880
        %1944 = vmatpush1.bf16.msra.mxu0 %v1879
        %1945 = vmatprep.subr.bf16.mxu0 %v1882
        %1946 = vmatpush1.bf16.msra.mxu0 %v1881
        %1947 = vmatprep.subr.bf16.mxu0 %v1884
        %1948 = vmatpush1.bf16.msra.mxu0 %v1883
        %1949 = vmatprep.mubr.bf16.mxu0 %v1744
        %1950 = vmatmul.mubr.bf16.gmra.mrb[0].mxu0 %v1743
        %v1951 = vpop.f32.mrb[0].mxu0
        %v1952 = vadd.f32 %v1750, %v1951
        %v1953 = vpop.f32.mrb[0].mxu0
        %v1954 = vadd.f32 %v1754, %v1953
        %v1955 = vpop.f32.mrb[0].mxu0
        %v1956 = vpop.f32.mrb[0].mxu0
        %1957 = vdwg.mxu0
        %v1958 = vadd.f32 %v758, %v1952
        %v1959 = vadd.f32 %v759, %v1954
        %s1960 = scalar_lea.vmem %s699, 2
        %v1961 = vld [vmem:[%s1960] ss:$8 sm:$0x3]
        %s1962 = scalar_lea.vmem %s699, 3
        %v1963 = vld [vmem:[%s1962] ss:$8 sm:$0x3]
        %v1964 = vadd.f32 %v1958, %v1959
        %1965 = vadd.xlane.f32.xlu0 %v1964
        %v1966 = vpop.xlane.xlu0 %1965
        %v1967 = vrcp.pop 256.0
        %v1968 = vmul.f32 %v1966, %v1967
        %v1969 = vsub.f32 %v1958, %v1968
        %v1970 = vsub.f32 %v1959, %v1968
        %v1971 = vmul.f32 %v1969, %v1969
        %v1972 = vmul.f32 %v1970, %v1970
        %v1973 = vadd.f32 %v1971, %v1972
        %1974 = vadd.xlane.f32.xlu0 %v1973
        %v1975 = vpop.xlane.xlu0 %1974
        %v1976 = vmul.f32 %v1975, %v1967
        %v1977 = vadd.f32 %v1976, 1e-12
        %v1978 = vrsqrt.pop %v1977
        %v1979 = vmul.f32 %v1969, %v1978
        %v1980 = vmul.f32 %v1970, %v1978
        %v1982 = vlaneseq
        %v1983 = vshrl.u32 %v1982, 7
        %v1984 = vsub.s32 0, %v1983
        %v1985 = vrot.slane %v1961, %v1984
        %v1986 = vlaneseq
        %v1987 = vshrl.u32 %v1986, 7
        %v1988 = vsub.s32 1, %v1987
        %v1989 = vrot.slane %v1961, %v1988
        %v1992 = vmul.f32 %v1979, %v1985
        %v1993 = vmul.f32 %v1980, %v1989
        %v1995 = vlaneseq
        %v1996 = vshrl.u32 %v1995, 7
        %v1997 = vsub.s32 0, %v1996
        %v1998 = vrot.slane %v1963, %v1997
        %v1999 = vlaneseq
        %v2000 = vshrl.u32 %v1999, 7
        %v2001 = vsub.s32 1, %v2000
        %v2002 = vrot.slane %v1963, %v2001
        %v2005 = vadd.f32 %v1992, %v1998
        %v2006 = vadd.f32 %v1993, %v2002
        %v2007 = vld [vmem:[%s591] sm:$0xff]
        %v2008 = vld [vmem:[%s591 + $0x8] sm:$0xff]
        %v2009 = vld [vmem:[%s591 + $0x10] sm:$0xff]
        %v2010 = vld [vmem:[%s591 + $0x18] sm:$0xff]
        %v2011 = vld [vmem:[%s591 + $0x20] sm:$0xff]
        %v2012 = vld [vmem:[%s591 + $0x28] sm:$0xff]
        %v2013 = vld [vmem:[%s591 + $0x30] sm:$0xff]
        %v2014 = vld [vmem:[%s591 + $0x38] sm:$0xff]
        %v2015 = vld [vmem:[%s591 + $0x40] sm:$0xff]
        %v2016 = vld [vmem:[%s591 + $0x48] sm:$0xff]
        %v2017 = vld [vmem:[%s591 + $0x50] sm:$0xff]
        %v2018 = vld [vmem:[%s591 + $0x58] sm:$0xff]
        %v2019 = vld [vmem:[%s591 + $0x60] sm:$0xff]
        %v2020 = vld [vmem:[%s591 + $0x68] sm:$0xff]
        %v2021 = vld [vmem:[%s591 + $0x70] sm:$0xff]
        %v2022 = vld [vmem:[%s591 + $0x78] sm:$0xff]
        %v2023 = vld [vmem:[%s591 + $0x80] sm:$0xff]
        %v2024 = vld [vmem:[%s591 + $0x88] sm:$0xff]
        %v2025 = vld [vmem:[%s591 + $0x90] sm:$0xff]
        %v2026 = vld [vmem:[%s591 + $0x98] sm:$0xff]
        %v2027 = vld [vmem:[%s591 + $0xa0] sm:$0xff]
        %v2028 = vld [vmem:[%s591 + $0xa8] sm:$0xff]
        %v2029 = vld [vmem:[%s591 + $0xb0] sm:$0xff]
        %v2030 = vld [vmem:[%s591 + $0xb8] sm:$0xff]
        %v2031 = vld [vmem:[%s591 + $0xc0] sm:$0xff]
        %v2032 = vld [vmem:[%s591 + $0xc8] sm:$0xff]
        %v2033 = vld [vmem:[%s591 + $0xd0] sm:$0xff]
        %v2034 = vld [vmem:[%s591 + $0xd8] sm:$0xff]
        %v2035 = vld [vmem:[%s591 + $0xe0] sm:$0xff]
        %v2036 = vld [vmem:[%s591 + $0xe8] sm:$0xff]
        %v2037 = vld [vmem:[%s591 + $0xf0] sm:$0xff]
        %v2038 = vld [vmem:[%s591 + $0xf8] sm:$0xff]
        %v2039 = vld [vmem:[%s591 + $0x100] sm:$0xff]
        %v2040 = vld [vmem:[%s591 + $0x108] sm:$0xff]
        %v2041 = vld [vmem:[%s591 + $0x110] sm:$0xff]
        %v2042 = vld [vmem:[%s591 + $0x118] sm:$0xff]
        %v2043 = vld [vmem:[%s591 + $0x120] sm:$0xff]
        %v2044 = vld [vmem:[%s591 + $0x128] sm:$0xff]
        %v2045 = vld [vmem:[%s591 + $0x130] sm:$0xff]
        %v2046 = vld [vmem:[%s591 + $0x138] sm:$0xff]
        %v2047 = vld [vmem:[%s591 + $0x140] sm:$0xff]
        %v2048 = vld [vmem:[%s591 + $0x148] sm:$0xff]
        %v2049 = vld [vmem:[%s591 + $0x150] sm:$0xff]
        %v2050 = vld [vmem:[%s591 + $0x158] sm:$0xff]
        %v2051 = vld [vmem:[%s591 + $0x160] sm:$0xff]
        %v2052 = vld [vmem:[%s591 + $0x168] sm:$0xff]
        %v2053 = vld [vmem:[%s591 + $0x170] sm:$0xff]
        %v2054 = vld [vmem:[%s591 + $0x178] sm:$0xff]
        %v2055 = vld [vmem:[%s591 + $0x180] sm:$0xff]
        %v2056 = vld [vmem:[%s591 + $0x188] sm:$0xff]
        %v2057 = vld [vmem:[%s591 + $0x190] sm:$0xff]
        %v2058 = vld [vmem:[%s591 + $0x198] sm:$0xff]
        %v2059 = vld [vmem:[%s591 + $0x1a0] sm:$0xff]
        %v2060 = vld [vmem:[%s591 + $0x1a8] sm:$0xff]
        %v2061 = vld [vmem:[%s591 + $0x1b0] sm:$0xff]
        %v2062 = vld [vmem:[%s591 + $0x1b8] sm:$0xff]
        %v2063 = vld [vmem:[%s591 + $0x1c0] sm:$0xff]
        %v2064 = vld [vmem:[%s591 + $0x1c8] sm:$0xff]
        %v2065 = vld [vmem:[%s591 + $0x1d0] sm:$0xff]
        %v2066 = vld [vmem:[%s591 + $0x1d8] sm:$0xff]
        %v2067 = vld [vmem:[%s591 + $0x1e0] sm:$0xff]
        %v2068 = vld [vmem:[%s591 + $0x1e8] sm:$0xff]
        %v2069 = vld [vmem:[%s591 + $0x1f0] sm:$0xff]
        %v2070 = vld [vmem:[%s591 + $0x1f8] sm:$0xff]
        %v2071 = vpack.c.bf16 %v2005, %v2005
        %v2072 = vpack.c.bf16 %v2006, %v2006
        %v2073 = vld [vmem:[%s694] sm:$0xf]
        %v2075 = vlaneseq
        %v2076 = vshrl.u32 %v2075, 7
        %v2077 = vsub.s32 0, %v2076
        %v2078 = vrot.slane %v2073, %v2077
        %v2079 = vlaneseq
        %v2080 = vshrl.u32 %v2079, 7
        %v2081 = vsub.s32 1, %v2080
        %v2082 = vrot.slane %v2073, %v2081
        %v2083 = vlaneseq
        %v2084 = vshrl.u32 %v2083, 7
        %v2085 = vsub.s32 2, %v2084
        %v2086 = vrot.slane %v2073, %v2085
        %v2087 = vlaneseq
        %v2088 = vshrl.u32 %v2087, 7
        %v2089 = vsub.s32 3, %v2088
        %v2090 = vrot.slane %v2073, %v2089
        %v2159 = vunpack.c.l.b16 %v2007
        %v2160 = vunpack.c.h.b16 %v2007
        %v2161 = vunpack.c.l.b16 %v2008
        %v2162 = vunpack.c.h.b16 %v2008
        %v2163 = vunpack.c.l.b16 %v2009
        %v2164 = vunpack.c.h.b16 %v2009
        %v2165 = vunpack.c.l.b16 %v2010
        %v2166 = vunpack.c.h.b16 %v2010
        %v2167 = vunpack.c.l.b16 %v2011
        %v2168 = vunpack.c.h.b16 %v2011
        %v2169 = vunpack.c.l.b16 %v2012
        %v2170 = vunpack.c.h.b16 %v2012
        %v2171 = vunpack.c.l.b16 %v2013
        %v2172 = vunpack.c.h.b16 %v2013
        %v2173 = vunpack.c.l.b16 %v2014
        %v2174 = vunpack.c.h.b16 %v2014
        %v2175 = vunpack.c.l.b16 %v2015
        %v2176 = vunpack.c.h.b16 %v2015
        %v2177 = vunpack.c.l.b16 %v2016
        %v2178 = vunpack.c.h.b16 %v2016
        %v2179 = vunpack.c.l.b16 %v2017
        %v2180 = vunpack.c.h.b16 %v2017
        %v2181 = vunpack.c.l.b16 %v2018
        %v2182 = vunpack.c.h.b16 %v2018
        %v2183 = vunpack.c.l.b16 %v2019
        %v2184 = vunpack.c.h.b16 %v2019
        %v2185 = vunpack.c.l.b16 %v2020
        %v2186 = vunpack.c.h.b16 %v2020
        %v2187 = vunpack.c.l.b16 %v2021
        %v2188 = vunpack.c.h.b16 %v2021
        %v2189 = vunpack.c.l.b16 %v2022
        %v2190 = vunpack.c.h.b16 %v2022
        %v2191 = vunpack.c.l.b16 %v2023
        %v2192 = vunpack.c.h.b16 %v2023
        %v2193 = vunpack.c.l.b16 %v2024
        %v2194 = vunpack.c.h.b16 %v2024
        %v2195 = vunpack.c.l.b16 %v2025
        %v2196 = vunpack.c.h.b16 %v2025
        %v2197 = vunpack.c.l.b16 %v2026
        %v2198 = vunpack.c.h.b16 %v2026
        %v2199 = vunpack.c.l.b16 %v2027
        %v2200 = vunpack.c.h.b16 %v2027
        %v2201 = vunpack.c.l.b16 %v2028
        %v2202 = vunpack.c.h.b16 %v2028
        %v2203 = vunpack.c.l.b16 %v2029
        %v2204 = vunpack.c.h.b16 %v2029
        %v2205 = vunpack.c.l.b16 %v2030
        %v2206 = vunpack.c.h.b16 %v2030
        %v2207 = vunpack.c.l.b16 %v2031
        %v2208 = vunpack.c.h.b16 %v2031
        %v2209 = vunpack.c.l.b16 %v2032
        %v2210 = vunpack.c.h.b16 %v2032
        %v2211 = vunpack.c.l.b16 %v2033
        %v2212 = vunpack.c.h.b16 %v2033
        %v2213 = vunpack.c.l.b16 %v2034
        %v2214 = vunpack.c.h.b16 %v2034
        %v2215 = vunpack.c.l.b16 %v2035
        %v2216 = vunpack.c.h.b16 %v2035
        %v2217 = vunpack.c.l.b16 %v2036
        %v2218 = vunpack.c.h.b16 %v2036
        %v2219 = vunpack.c.l.b16 %v2037
        %v2220 = vunpack.c.h.b16 %v2037
        %v2221 = vunpack.c.l.b16 %v2038
        %v2222 = vunpack.c.h.b16 %v2038
        %v2223 = vunpack.c.l.b16 %v2039
        %v2224 = vunpack.c.h.b16 %v2039
        %v2225 = vunpack.c.l.b16 %v2040
        %v2226 = vunpack.c.h.b16 %v2040
        %v2227 = vunpack.c.l.b16 %v2041
        %v2228 = vunpack.c.h.b16 %v2041
        %v2229 = vunpack.c.l.b16 %v2042
        %v2230 = vunpack.c.h.b16 %v2042
        %v2231 = vunpack.c.l.b16 %v2043
        %v2232 = vunpack.c.h.b16 %v2043
        %v2233 = vunpack.c.l.b16 %v2044
        %v2234 = vunpack.c.h.b16 %v2044
        %v2235 = vunpack.c.l.b16 %v2045
        %v2236 = vunpack.c.h.b16 %v2045
        %v2237 = vunpack.c.l.b16 %v2046
        %v2238 = vunpack.c.h.b16 %v2046
        %v2239 = vunpack.c.l.b16 %v2047
        %v2240 = vunpack.c.h.b16 %v2047
        %v2241 = vunpack.c.l.b16 %v2048
        %v2242 = vunpack.c.h.b16 %v2048
        %v2243 = vunpack.c.l.b16 %v2049
        %v2244 = vunpack.c.h.b16 %v2049
        %v2245 = vunpack.c.l.b16 %v2050
        %v2246 = vunpack.c.h.b16 %v2050
        %v2247 = vunpack.c.l.b16 %v2051
        %v2248 = vunpack.c.h.b16 %v2051
        %v2249 = vunpack.c.l.b16 %v2052
        %v2250 = vunpack.c.h.b16 %v2052
        %v2251 = vunpack.c.l.b16 %v2053
        %v2252 = vunpack.c.h.b16 %v2053
        %v2253 = vunpack.c.l.b16 %v2054
        %v2254 = vunpack.c.h.b16 %v2054
        %v2255 = vunpack.c.l.b16 %v2055
        %v2256 = vunpack.c.h.b16 %v2055
        %v2257 = vunpack.c.l.b16 %v2056
        %v2258 = vunpack.c.h.b16 %v2056
        %v2259 = vunpack.c.l.b16 %v2057
        %v2260 = vunpack.c.h.b16 %v2057
        %v2261 = vunpack.c.l.b16 %v2058
        %v2262 = vunpack.c.h.b16 %v2058
        %v2263 = vunpack.c.l.b16 %v2059
        %v2264 = vunpack.c.h.b16 %v2059
        %v2265 = vunpack.c.l.b16 %v2060
        %v2266 = vunpack.c.h.b16 %v2060
        %v2267 = vunpack.c.l.b16 %v2061
        %v2268 = vunpack.c.h.b16 %v2061
        %v2269 = vunpack.c.l.b16 %v2062
        %v2270 = vunpack.c.h.b16 %v2062
        %v2271 = vunpack.c.l.b16 %v2063
        %v2272 = vunpack.c.h.b16 %v2063
        %v2273 = vunpack.c.l.b16 %v2064
        %v2274 = vunpack.c.h.b16 %v2064
        %v2275 = vunpack.c.l.b16 %v2065
        %v2276 = vunpack.c.h.b16 %v2065
        %v2277 = vunpack.c.l.b16 %v2066
        %v2278 = vunpack.c.h.b16 %v2066
        %v2279 = vunpack.c.l.b16 %v2067
        %v2280 = vunpack.c.h.b16 %v2067
        %v2281 = vunpack.c.l.b16 %v2068
        %v2282 = vunpack.c.h.b16 %v2068
        %v2283 = vunpack.c.l.b16 %v2069
        %v2284 = vunpack.c.h.b16 %v2069
        %v2285 = vunpack.c.l.b16 %v2070
        %v2286 = vunpack.c.h.b16 %v2070
        %v2287 = vpack.c.b16 %v2163, %v2159
        %v2288 = vpack.c.b16 %v2164, %v2160
        %v2289 = vpack.c.b16 %v2165, %v2161
        %v2290 = vpack.c.b16 %v2166, %v2162
        %v2291 = vpack.c.b16 %v2171, %v2167
        %v2292 = vpack.c.b16 %v2172, %v2168
        %v2293 = vpack.c.b16 %v2173, %v2169
        %v2294 = vpack.c.b16 %v2174, %v2170
        %v2295 = vpack.c.b16 %v2179, %v2175
        %v2296 = vpack.c.b16 %v2180, %v2176
        %v2297 = vpack.c.b16 %v2181, %v2177
        %v2298 = vpack.c.b16 %v2182, %v2178
        %v2299 = vpack.c.b16 %v2187, %v2183
        %v2300 = vpack.c.b16 %v2188, %v2184
        %v2301 = vpack.c.b16 %v2189, %v2185
        %v2302 = vpack.c.b16 %v2190, %v2186
        %v2303 = vpack.c.b16 %v2195, %v2191
        %v2304 = vpack.c.b16 %v2196, %v2192
        %v2305 = vpack.c.b16 %v2197, %v2193
        %v2306 = vpack.c.b16 %v2198, %v2194
        %v2307 = vpack.c.b16 %v2203, %v2199
        %v2308 = vpack.c.b16 %v2204, %v2200
        %v2309 = vpack.c.b16 %v2205, %v2201
        %v2310 = vpack.c.b16 %v2206, %v2202
        %v2311 = vpack.c.b16 %v2211, %v2207
        %v2312 = vpack.c.b16 %v2212, %v2208
        %v2313 = vpack.c.b16 %v2213, %v2209
        %v2314 = vpack.c.b16 %v2214, %v2210
        %v2315 = vpack.c.b16 %v2219, %v2215
        %v2316 = vpack.c.b16 %v2220, %v2216
        %v2317 = vpack.c.b16 %v2221, %v2217
        %v2318 = vpack.c.b16 %v2222, %v2218
        %v2319 = vpack.c.b16 %v2227, %v2223
        %v2320 = vpack.c.b16 %v2228, %v2224
        %v2321 = vpack.c.b16 %v2229, %v2225
        %v2322 = vpack.c.b16 %v2230, %v2226
        %v2323 = vpack.c.b16 %v2235, %v2231
        %v2324 = vpack.c.b16 %v2236, %v2232
        %v2325 = vpack.c.b16 %v2237, %v2233
        %v2326 = vpack.c.b16 %v2238, %v2234
        %v2327 = vpack.c.b16 %v2243, %v2239
        %v2328 = vpack.c.b16 %v2244, %v2240
        %v2329 = vpack.c.b16 %v2245, %v2241
        %v2330 = vpack.c.b16 %v2246, %v2242
        %v2331 = vpack.c.b16 %v2251, %v2247
        %v2332 = vpack.c.b16 %v2252, %v2248
        %v2333 = vpack.c.b16 %v2253, %v2249
        %v2334 = vpack.c.b16 %v2254, %v2250
        %v2335 = vpack.c.b16 %v2259, %v2255
        %v2336 = vpack.c.b16 %v2260, %v2256
        %v2337 = vpack.c.b16 %v2261, %v2257
        %v2338 = vpack.c.b16 %v2262, %v2258
        %v2339 = vpack.c.b16 %v2267, %v2263
        %v2340 = vpack.c.b16 %v2268, %v2264
        %v2341 = vpack.c.b16 %v2269, %v2265
        %v2342 = vpack.c.b16 %v2270, %v2266
        %v2343 = vpack.c.b16 %v2275, %v2271
        %v2344 = vpack.c.b16 %v2276, %v2272
        %v2345 = vpack.c.b16 %v2277, %v2273
        %v2346 = vpack.c.b16 %v2278, %v2274
        %v2347 = vpack.c.b16 %v2283, %v2279
        %v2348 = vpack.c.b16 %v2284, %v2280
        %v2349 = vpack.c.b16 %v2285, %v2281
        %v2350 = vpack.c.b16 %v2286, %v2282
        %2415 = vmatprep.subr.bf16.mxu0 %v2288
        %2416 = vmatpush1.bf16.msra.mxu0 %v2287
        %2417 = vmatprep.subr.bf16.mxu0 %v2292
        %2418 = vmatpush1.bf16.msra.mxu0 %v2291
        %2419 = vmatprep.subr.bf16.mxu0 %v2296
        %2420 = vmatpush1.bf16.msra.mxu0 %v2295
        %2421 = vmatprep.subr.bf16.mxu0 %v2300
        %2422 = vmatpush1.bf16.msra.mxu0 %v2299
        %2423 = vmatprep.subr.bf16.mxu0 %v2304
        %2424 = vmatpush1.bf16.msra.mxu0 %v2303
        %2425 = vmatprep.subr.bf16.mxu0 %v2308
        %2426 = vmatpush1.bf16.msra.mxu0 %v2307
        %2427 = vmatprep.subr.bf16.mxu0 %v2312
        %2428 = vmatpush1.bf16.msra.mxu0 %v2311
        %2429 = vmatprep.subr.bf16.mxu0 %v2316
        %2430 = vmatpush1.bf16.msra.mxu0 %v2315
        %2431 = vmatprep.subr.bf16.mxu0 %v2320
        %2432 = vmatpush1.bf16.msra.mxu0 %v2319
        %2433 = vmatprep.subr.bf16.mxu0 %v2324
        %2434 = vmatpush1.bf16.msra.mxu0 %v2323
        %2435 = vmatprep.subr.bf16.mxu0 %v2328
        %2436 = vmatpush1.bf16.msra.mxu0 %v2327
        %2437 = vmatprep.subr.bf16.mxu0 %v2332
        %2438 = vmatpush1.bf16.msra.mxu0 %v2331
        %2439 = vmatprep.subr.bf16.mxu0 %v2336
        %2440 = vmatpush1.bf16.msra.mxu0 %v2335
        %2441 = vmatprep.subr.bf16.mxu0 %v2340
        %2442 = vmatpush1.bf16.msra.mxu0 %v2339
        %2443 = vmatprep.subr.bf16.mxu0 %v2344
        %2444 = vmatpush1.bf16.msra.mxu0 %v2343
        %2445 = vmatprep.subr.bf16.mxu0 %v2348
        %2446 = vmatpush1.bf16.msra.mxu0 %v2347
        %2447 = vmatprep.mubr.bf16.mxu0 %v2072
        %2448 = vmatmul.mubr.bf16.gmra.mrb[0].mxu0 %v2071
        %v2449 = vpop.f32.mrb[0].mxu0
        %v2450 = vadd.f32 %v2078, %v2449
        %v2451 = vpop.f32.mrb[0].mxu0
        %v2452 = vadd.f32 %v2082, %v2451
        %v2453 = vpop.f32.mrb[0].mxu0
        %v2454 = vpop.f32.mrb[0].mxu0
        %2455 = vdwg.mxu0
        %2456 = vmatprep.subr.bf16.mxu0 %v2290
        %2457 = vmatpush1.bf16.msra.mxu0 %v2289
        %2458 = vmatprep.subr.bf16.mxu0 %v2294
        %2459 = vmatpush1.bf16.msra.mxu0 %v2293
        %2460 = vmatprep.subr.bf16.mxu0 %v2298
        %2461 = vmatpush1.bf16.msra.mxu0 %v2297
        %2462 = vmatprep.subr.bf16.mxu0 %v2302
        %2463 = vmatpush1.bf16.msra.mxu0 %v2301
        %2464 = vmatprep.subr.bf16.mxu0 %v2306
        %2465 = vmatpush1.bf16.msra.mxu0 %v2305
        %2466 = vmatprep.subr.bf16.mxu0 %v2310
        %2467 = vmatpush1.bf16.msra.mxu0 %v2309
        %2468 = vmatprep.subr.bf16.mxu0 %v2314
        %2469 = vmatpush1.bf16.msra.mxu0 %v2313
        %2470 = vmatprep.subr.bf16.mxu0 %v2318
        %2471 = vmatpush1.bf16.msra.mxu0 %v2317
        %2472 = vmatprep.subr.bf16.mxu0 %v2322
        %2473 = vmatpush1.bf16.msra.mxu0 %v2321
        %2474 = vmatprep.subr.bf16.mxu0 %v2326
        %2475 = vmatpush1.bf16.msra.mxu0 %v2325
        %2476 = vmatprep.subr.bf16.mxu0 %v2330
        %2477 = vmatpush1.bf16.msra.mxu0 %v2329
        %2478 = vmatprep.subr.bf16.mxu0 %v2334
        %2479 = vmatpush1.bf16.msra.mxu0 %v2333
        %2480 = vmatprep.subr.bf16.mxu0 %v2338
        %2481 = vmatpush1.bf16.msra.mxu0 %v2337
        %2482 = vmatprep.subr.bf16.mxu0 %v2342
        %2483 = vmatpush1.bf16.msra.mxu0 %v2341
        %2484 = vmatprep.subr.bf16.mxu0 %v2346
        %2485 = vmatpush1.bf16.msra.mxu0 %v2345
        %2486 = vmatprep.subr.bf16.mxu0 %v2350
        %2487 = vmatpush1.bf16.msra.mxu0 %v2349
        %2488 = vmatprep.mubr.bf16.mxu0 %v2072
        %2489 = vmatmul.mubr.bf16.gmra.mrb[0].mxu0 %v2071
        %v2490 = vpop.f32.mrb[0].mxu0
        %v2491 = vadd.f32 %v2086, %v2490
        %v2492 = vpop.f32.mrb[0].mxu0
        %v2493 = vadd.f32 %v2090, %v2492
        %v2494 = vpop.f32.mrb[0].mxu0
        %v2495 = vpop.f32.mrb[0].mxu0
        %2496 = vdwg.mxu0
        %v2497 = vmul.f32 %v2450, 0.5
        %v2498 = vmul.f32 %v2452, 0.5
        %v2499 = vmul.f32 %v2491, 0.5
        %v2500 = vmul.f32 %v2493, 0.5
        %v2501 = vmul.f32 %v2450, 0.044715
        %v2502 = vmul.f32 %v2452, 0.044715
        %v2503 = vmul.f32 %v2491, 0.044715
        %v2504 = vmul.f32 %v2493, 0.044715
        %v2505 = vmul.f32 %v2501, %v2450
        %v2506 = vmul.f32 %v2502, %v2452
        %v2507 = vmul.f32 %v2503, %v2491
        %v2508 = vmul.f32 %v2504, %v2493
        %v2509 = vmul.f32 %v2505, %v2450
        %v2510 = vmul.f32 %v2506, %v2452
        %v2511 = vmul.f32 %v2507, %v2491
        %v2512 = vmul.f32 %v2508, %v2493
        %v2513 = vadd.f32 %v2450, %v2509
        %v2514 = vadd.f32 %v2452, %v2510
        %v2515 = vadd.f32 %v2491, %v2511
        %v2516 = vadd.f32 %v2493, %v2512
        %v2517 = vmul.f32 %v2513, 0.7978846
        %v2518 = vmul.f32 %v2514, 0.7978846
        %v2519 = vmul.f32 %v2515, 0.7978846
        %v2520 = vmul.f32 %v2516, 0.7978846
        %v2521 = vtanh.pop %v2517
        %v2522 = vtanh.pop %v2518
        %v2523 = vtanh.pop %v2519
        %v2524 = vtanh.pop %v2520
        %v2525 = vadd.f32 %v2521, 1.0
        %v2526 = vadd.f32 %v2522, 1.0
        %v2527 = vadd.f32 %v2523, 1.0
        %v2528 = vadd.f32 %v2524, 1.0
        %v2529 = vmul.f32 %v2497, %v2525
        %v2530 = vmul.f32 %v2498, %v2526
        %v2531 = vmul.f32 %v2499, %v2527
        %v2532 = vmul.f32 %v2500, %v2528
        %v2533 = vld [vmem:[%s600] sm:$0xff]
        %v2534 = vld [vmem:[%s600 + $0x8] sm:$0xff]
        %v2535 = vld [vmem:[%s600 + $0x10] sm:$0xff]
        %v2536 = vld [vmem:[%s600 + $0x18] sm:$0xff]
        %v2537 = vld [vmem:[%s600 + $0x20] sm:$0xff]
        %v2538 = vld [vmem:[%s600 + $0x28] sm:$0xff]
        %v2539 = vld [vmem:[%s600 + $0x30] sm:$0xff]
        %v2540 = vld [vmem:[%s600 + $0x38] sm:$0xff]
        %v2541 = vld [vmem:[%s600 + $0x40] sm:$0xff]
        %v2542 = vld [vmem:[%s600 + $0x48] sm:$0xff]
        %v2543 = vld [vmem:[%s600 + $0x50] sm:$0xff]
        %v2544 = vld [vmem:[%s600 + $0x58] sm:$0xff]
        %v2545 = vld [vmem:[%s600 + $0x60] sm:$0xff]
        %v2546 = vld [vmem:[%s600 + $0x68] sm:$0xff]
        %v2547 = vld [vmem:[%s600 + $0x70] sm:$0xff]
        %v2548 = vld [vmem:[%s600 + $0x78] sm:$0xff]
        %v2549 = vld [vmem:[%s600 + $0x80] sm:$0xff]
        %v2550 = vld [vmem:[%s600 + $0x88] sm:$0xff]
        %v2551 = vld [vmem:[%s600 + $0x90] sm:$0xff]
        %v2552 = vld [vmem:[%s600 + $0x98] sm:$0xff]
        %v2553 = vld [vmem:[%s600 + $0xa0] sm:$0xff]
        %v2554 = vld [vmem:[%s600 + $0xa8] sm:$0xff]
        %v2555 = vld [vmem:[%s600 + $0xb0] sm:$0xff]
        %v2556 = vld [vmem:[%s600 + $0xb8] sm:$0xff]
        %v2557 = vld [vmem:[%s600 + $0xc0] sm:$0xff]
        %v2558 = vld [vmem:[%s600 + $0xc8] sm:$0xff]
        %v2559 = vld [vmem:[%s600 + $0xd0] sm:$0xff]
        %v2560 = vld [vmem:[%s600 + $0xd8] sm:$0xff]
        %v2561 = vld [vmem:[%s600 + $0xe0] sm:$0xff]
        %v2562 = vld [vmem:[%s600 + $0xe8] sm:$0xff]
        %v2563 = vld [vmem:[%s600 + $0xf0] sm:$0xff]
        %v2564 = vld [vmem:[%s600 + $0xf8] sm:$0xff]
        %v2565 = vld [vmem:[%s600 + $0x100] sm:$0xff]
        %v2566 = vld [vmem:[%s600 + $0x108] sm:$0xff]
        %v2567 = vld [vmem:[%s600 + $0x110] sm:$0xff]
        %v2568 = vld [vmem:[%s600 + $0x118] sm:$0xff]
        %v2569 = vld [vmem:[%s600 + $0x120] sm:$0xff]
        %v2570 = vld [vmem:[%s600 + $0x128] sm:$0xff]
        %v2571 = vld [vmem:[%s600 + $0x130] sm:$0xff]
        %v2572 = vld [vmem:[%s600 + $0x138] sm:$0xff]
        %v2573 = vld [vmem:[%s600 + $0x140] sm:$0xff]
        %v2574 = vld [vmem:[%s600 + $0x148] sm:$0xff]
        %v2575 = vld [vmem:[%s600 + $0x150] sm:$0xff]
        %v2576 = vld [vmem:[%s600 + $0x158] sm:$0xff]
        %v2577 = vld [vmem:[%s600 + $0x160] sm:$0xff]
        %v2578 = vld [vmem:[%s600 + $0x168] sm:$0xff]
        %v2579 = vld [vmem:[%s600 + $0x170] sm:$0xff]
        %v2580 = vld [vmem:[%s600 + $0x178] sm:$0xff]
        %v2581 = vld [vmem:[%s600 + $0x180] sm:$0xff]
        %v2582 = vld [vmem:[%s600 + $0x188] sm:$0xff]
        %v2583 = vld [vmem:[%s600 + $0x190] sm:$0xff]
        %v2584 = vld [vmem:[%s600 + $0x198] sm:$0xff]
        %v2585 = vld [vmem:[%s600 + $0x1a0] sm:$0xff]
        %v2586 = vld [vmem:[%s600 + $0x1a8] sm:$0xff]
        %v2587 = vld [vmem:[%s600 + $0x1b0] sm:$0xff]
        %v2588 = vld [vmem:[%s600 + $0x1b8] sm:$0xff]
        %v2589 = vld [vmem:[%s600 + $0x1c0] sm:$0xff]
        %v2590 = vld [vmem:[%s600 + $0x1c8] sm:$0xff]
        %v2591 = vld [vmem:[%s600 + $0x1d0] sm:$0xff]
        %v2592 = vld [vmem:[%s600 + $0x1d8] sm:$0xff]
        %v2593 = vld [vmem:[%s600 + $0x1e0] sm:$0xff]
        %v2594 = vld [vmem:[%s600 + $0x1e8] sm:$0xff]
        %v2595 = vld [vmem:[%s600 + $0x1f0] sm:$0xff]
        %v2596 = vld [vmem:[%s600 + $0x1f8] sm:$0xff]
        %v2597 = vpack.c.bf16 %v2529, %v2529
        %v2598 = vpack.c.bf16 %v2530, %v2530
        %v2599 = vpack.c.bf16 %v2531, %v2531
        %v2600 = vpack.c.bf16 %v2532, %v2532
        %s2601 = scalar_lea.vmem %s699, 1
        %v2602 = vld [vmem:[%s2601] ss:$8 sm:$0x3]
        %v2604 = vlaneseq
        %v2605 = vshrl.u32 %v2604, 7
        %v2606 = vsub.s32 0, %v2605
        %v2607 = vrot.slane %v2602, %v2606
        %v2608 = vlaneseq
        %v2609 = vshrl.u32 %v2608, 7
        %v2610 = vsub.s32 1, %v2609
        %v2611 = vrot.slane %v2602, %v2610
        %v2678 = vunpack.c.l.b16 %v2533
        %v2679 = vunpack.c.h.b16 %v2533
        %v2680 = vunpack.c.l.b16 %v2534
        %v2681 = vunpack.c.h.b16 %v2534
        %v2682 = vunpack.c.l.b16 %v2535
        %v2683 = vunpack.c.h.b16 %v2535
        %v2684 = vunpack.c.l.b16 %v2536
        %v2685 = vunpack.c.h.b16 %v2536
        %v2686 = vunpack.c.l.b16 %v2537
        %v2687 = vunpack.c.h.b16 %v2537
        %v2688 = vunpack.c.l.b16 %v2538
        %v2689 = vunpack.c.h.b16 %v2538
        %v2690 = vunpack.c.l.b16 %v2539
        %v2691 = vunpack.c.h.b16 %v2539
        %v2692 = vunpack.c.l.b16 %v2540
        %v2693 = vunpack.c.h.b16 %v2540
        %v2694 = vunpack.c.l.b16 %v2541
        %v2695 = vunpack.c.h.b16 %v2541
        %v2696 = vunpack.c.l.b16 %v2542
        %v2697 = vunpack.c.h.b16 %v2542
        %v2698 = vunpack.c.l.b16 %v2543
        %v2699 = vunpack.c.h.b16 %v2543
        %v2700 = vunpack.c.l.b16 %v2544
        %v2701 = vunpack.c.h.b16 %v2544
        %v2702 = vunpack.c.l.b16 %v2545
        %v2703 = vunpack.c.h.b16 %v2545
        %v2704 = vunpack.c.l.b16 %v2546
        %v2705 = vunpack.c.h.b16 %v2546
        %v2706 = vunpack.c.l.b16 %v2547
        %v2707 = vunpack.c.h.b16 %v2547
        %v2708 = vunpack.c.l.b16 %v2548
        %v2709 = vunpack.c.h.b16 %v2548
        %v2710 = vunpack.c.l.b16 %v2549
        %v2711 = vunpack.c.h.b16 %v2549
        %v2712 = vunpack.c.l.b16 %v2550
        %v2713 = vunpack.c.h.b16 %v2550
        %v2714 = vunpack.c.l.b16 %v2551
        %v2715 = vunpack.c.h.b16 %v2551
        %v2716 = vunpack.c.l.b16 %v2552
        %v2717 = vunpack.c.h.b16 %v2552
        %v2718 = vunpack.c.l.b16 %v2553
        %v2719 = vunpack.c.h.b16 %v2553
        %v2720 = vunpack.c.l.b16 %v2554
        %v2721 = vunpack.c.h.b16 %v2554
        %v2722 = vunpack.c.l.b16 %v2555
        %v2723 = vunpack.c.h.b16 %v2555
        %v2724 = vunpack.c.l.b16 %v2556
        %v2725 = vunpack.c.h.b16 %v2556
        %v2726 = vunpack.c.l.b16 %v2557
        %v2727 = vunpack.c.h.b16 %v2557
        %v2728 = vunpack.c.l.b16 %v2558
        %v2729 = vunpack.c.h.b16 %v2558
        %v2730 = vunpack.c.l.b16 %v2559
        %v2731 = vunpack.c.h.b16 %v2559
        %v2732 = vunpack.c.l.b16 %v2560
        %v2733 = vunpack.c.h.b16 %v2560
        %v2734 = vunpack.c.l.b16 %v2561
        %v2735 = vunpack.c.h.b16 %v2561
        %v2736 = vunpack.c.l.b16 %v2562
        %v2737 = vunpack.c.h.b16 %v2562
        %v2738 = vunpack.c.l.b16 %v2563
        %v2739 = vunpack.c.h.b16 %v2563
        %v2740 = vunpack.c.l.b16 %v2564
        %v2741 = vunpack.c.h.b16 %v2564
        %v2742 = vunpack.c.l.b16 %v2565
        %v2743 = vunpack.c.h.b16 %v2565
        %v2744 = vunpack.c.l.b16 %v2566
        %v2745 = vunpack.c.h.b16 %v2566
        %v2746 = vunpack.c.l.b16 %v2567
        %v2747 = vunpack.c.h.b16 %v2567
        %v2748 = vunpack.c.l.b16 %v2568
        %v2749 = vunpack.c.h.b16 %v2568
        %v2750 = vunpack.c.l.b16 %v2569
        %v2751 = vunpack.c.h.b16 %v2569
        %v2752 = vunpack.c.l.b16 %v2570
        %v2753 = vunpack.c.h.b16 %v2570
        %v2754 = vunpack.c.l.b16 %v2571
        %v2755 = vunpack.c.h.b16 %v2571
        %v2756 = vunpack.c.l.b16 %v2572
        %v2757 = vunpack.c.h.b16 %v2572
        %v2758 = vunpack.c.l.b16 %v2573
        %v2759 = vunpack.c.h.b16 %v2573
        %v2760 = vunpack.c.l.b16 %v2574
        %v2761 = vunpack.c.h.b16 %v2574
        %v2762 = vunpack.c.l.b16 %v2575
        %v2763 = vunpack.c.h.b16 %v2575
        %v2764 = vunpack.c.l.b16 %v2576
        %v2765 = vunpack.c.h.b16 %v2576
        %v2766 = vunpack.c.l.b16 %v2577
        %v2767 = vunpack.c.h.b16 %v2577
        %v2768 = vunpack.c.l.b16 %v2578
        %v2769 = vunpack.c.h.b16 %v2578
        %v2770 = vunpack.c.l.b16 %v2579
        %v2771 = vunpack.c.h.b16 %v2579
        %v2772 = vunpack.c.l.b16 %v2580
        %v2773 = vunpack.c.h.b16 %v2580
        %v2774 = vunpack.c.l.b16 %v2581
        %v2775 = vunpack.c.h.b16 %v2581
        %v2776 = vunpack.c.l.b16 %v2582
        %v2777 = vunpack.c.h.b16 %v2582
        %v2778 = vunpack.c.l.b16 %v2583
        %v2779 = vunpack.c.h.b16 %v2583
        %v2780 = vunpack.c.l.b16 %v2584
        %v2781 = vunpack.c.h.b16 %v2584
        %v2782 = vunpack.c.l.b16 %v2585
        %v2783 = vunpack.c.h.b16 %v2585
        %v2784 = vunpack.c.l.b16 %v2586
        %v2785 = vunpack.c.h.b16 %v2586
        %v2786 = vunpack.c.l.b16 %v2587
        %v2787 = vunpack.c.h.b16 %v2587
        %v2788 = vunpack.c.l.b16 %v2588
        %v2789 = vunpack.c.h.b16 %v2588
        %v2790 = vunpack.c.l.b16 %v2589
        %v2791 = vunpack.c.h.b16 %v2589
        %v2792 = vunpack.c.l.b16 %v2590
        %v2793 = vunpack.c.h.b16 %v2590
        %v2794 = vunpack.c.l.b16 %v2591
        %v2795 = vunpack.c.h.b16 %v2591
        %v2796 = vunpack.c.l.b16 %v2592
        %v2797 = vunpack.c.h.b16 %v2592
        %v2798 = vunpack.c.l.b16 %v2593
        %v2799 = vunpack.c.h.b16 %v2593
        %v2800 = vunpack.c.l.b16 %v2594
        %v2801 = vunpack.c.h.b16 %v2594
        %v2802 = vunpack.c.l.b16 %v2595
        %v2803 = vunpack.c.h.b16 %v2595
        %v2804 = vunpack.c.l.b16 %v2596
        %v2805 = vunpack.c.h.b16 %v2596
        %v2806 = vpack.c.b16 %v2680, %v2678
        %v2807 = vpack.c.b16 %v2681, %v2679
        %v2808 = vpack.c.b16 %v2684, %v2682
        %v2809 = vpack.c.b16 %v2685, %v2683
        %v2810 = vpack.c.b16 %v2688, %v2686
        %v2811 = vpack.c.b16 %v2689, %v2687
        %v2812 = vpack.c.b16 %v2692, %v2690
        %v2813 = vpack.c.b16 %v2693, %v2691
        %v2814 = vpack.c.b16 %v2696, %v2694
        %v2815 = vpack.c.b16 %v2697, %v2695
        %v2816 = vpack.c.b16 %v2700, %v2698
        %v2817 = vpack.c.b16 %v2701, %v2699
        %v2818 = vpack.c.b16 %v2704, %v2702
        %v2819 = vpack.c.b16 %v2705, %v2703
        %v2820 = vpack.c.b16 %v2708, %v2706
        %v2821 = vpack.c.b16 %v2709, %v2707
        %v2822 = vpack.c.b16 %v2712, %v2710
        %v2823 = vpack.c.b16 %v2713, %v2711
        %v2824 = vpack.c.b16 %v2716, %v2714
        %v2825 = vpack.c.b16 %v2717, %v2715
        %v2826 = vpack.c.b16 %v2720, %v2718
        %v2827 = vpack.c.b16 %v2721, %v2719
        %v2828 = vpack.c.b16 %v2724, %v2722
        %v2829 = vpack.c.b16 %v2725, %v2723
        %v2830 = vpack.c.b16 %v2728, %v2726
        %v2831 = vpack.c.b16 %v2729, %v2727
        %v2832 = vpack.c.b16 %v2732, %v2730
        %v2833 = vpack.c.b16 %v2733, %v2731
        %v2834 = vpack.c.b16 %v2736, %v2734
        %v2835 = vpack.c.b16 %v2737, %v2735
        %v2836 = vpack.c.b16 %v2740, %v2738
        %v2837 = vpack.c.b16 %v2741, %v2739
        %v2838 = vpack.c.b16 %v2744, %v2742
        %v2839 = vpack.c.b16 %v2745, %v2743
        %v2840 = vpack.c.b16 %v2748, %v2746
        %v2841 = vpack.c.b16 %v2749, %v2747
        %v2842 = vpack.c.b16 %v2752, %v2750
        %v2843 = vpack.c.b16 %v2753, %v2751
        %v2844 = vpack.c.b16 %v2756, %v2754
        %v2845 = vpack.c.b16 %v2757, %v2755
        %v2846 = vpack.c.b16 %v2760, %v2758
        %v2847 = vpack.c.b16 %v2761, %v2759
        %v2848 = vpack.c.b16 %v2764, %v2762
        %v2849 = vpack.c.b16 %v2765, %v2763
        %v2850 = vpack.c.b16 %v2768, %v2766
        %v2851 = vpack.c.b16 %v2769, %v2767
        %v2852 = vpack.c.b16 %v2772, %v2770
        %v2853 = vpack.c.b16 %v2773, %v2771
        %v2854 = vpack.c.b16 %v2776, %v2774
        %v2855 = vpack.c.b16 %v2777, %v2775
        %v2856 = vpack.c.b16 %v2780, %v2778
        %v2857 = vpack.c.b16 %v2781, %v2779
        %v2858 = vpack.c.b16 %v2784, %v2782
        %v2859 = vpack.c.b16 %v2785, %v2783
        %v2860 = vpack.c.b16 %v2788, %v2786
        %v2861 = vpack.c.b16 %v2789, %v2787
        %v2862 = vpack.c.b16 %v2792, %v2790
        %v2863 = vpack.c.b16 %v2793, %v2791
        %v2864 = vpack.c.b16 %v2796, %v2794
        %v2865 = vpack.c.b16 %v2797, %v2795
        %v2866 = vpack.c.b16 %v2800, %v2798
        %v2867 = vpack.c.b16 %v2801, %v2799
        %v2868 = vpack.c.b16 %v2804, %v2802
        %v2869 = vpack.c.b16 %v2805, %v2803
        %2934 = vmatprep.subr.bf16.mxu0 %v2807
        %2935 = vmatpush1.bf16.msra.mxu0 %v2806
        %2936 = vmatprep.subr.bf16.mxu0 %v2809
        %2937 = vmatpush1.bf16.msra.mxu0 %v2808
        %2938 = vmatprep.subr.bf16.mxu0 %v2811
        %2939 = vmatpush1.bf16.msra.mxu0 %v2810
        %2940 = vmatprep.subr.bf16.mxu0 %v2813
        %2941 = vmatpush1.bf16.msra.mxu0 %v2812
        %2942 = vmatprep.subr.bf16.mxu0 %v2815
        %2943 = vmatpush1.bf16.msra.mxu0 %v2814
        %2944 = vmatprep.subr.bf16.mxu0 %v2817
        %2945 = vmatpush1.bf16.msra.mxu0 %v2816
        %2946 = vmatprep.subr.bf16.mxu0 %v2819
        %2947 = vmatpush1.bf16.msra.mxu0 %v2818
        %2948 = vmatprep.subr.bf16.mxu0 %v2821
        %2949 = vmatpush1.bf16.msra.mxu0 %v2820
        %2950 = vmatprep.subr.bf16.mxu0 %v2823
        %2951 = vmatpush1.bf16.msra.mxu0 %v2822
        %2952 = vmatprep.subr.bf16.mxu0 %v2825
        %2953 = vmatpush1.bf16.msra.mxu0 %v2824
        %2954 = vmatprep.subr.bf16.mxu0 %v2827
        %2955 = vmatpush1.bf16.msra.mxu0 %v2826
        %2956 = vmatprep.subr.bf16.mxu0 %v2829
        %2957 = vmatpush1.bf16.msra.mxu0 %v2828
        %2958 = vmatprep.subr.bf16.mxu0 %v2831
        %2959 = vmatpush1.bf16.msra.mxu0 %v2830
        %2960 = vmatprep.subr.bf16.mxu0 %v2833
        %2961 = vmatpush1.bf16.msra.mxu0 %v2832
        %2962 = vmatprep.subr.bf16.mxu0 %v2835
        %2963 = vmatpush1.bf16.msra.mxu0 %v2834
        %2964 = vmatprep.subr.bf16.mxu0 %v2837
        %2965 = vmatpush1.bf16.msra.mxu0 %v2836
        %2966 = vmatprep.mubr.bf16.mxu0 %v2598
        %2967 = vmatmul.mubr.bf16.gmra.mrb[0].mxu0 %v2597
        %v2968 = vpop.f32.mrb[0].mxu0
        %v2969 = vadd.f32 %v2607, %v2968
        %v2970 = vpop.f32.mrb[0].mxu0
        %v2971 = vadd.f32 %v2611, %v2970
        %v2972 = vpop.f32.mrb[0].mxu0
        %v2973 = vpop.f32.mrb[0].mxu0
        %2974 = vdwg.mxu0
        %2975 = vmatprep.subr.bf16.mxu0 %v2839
        %2976 = vmatpush1.bf16.msra.mxu0 %v2838
        %2977 = vmatprep.subr.bf16.mxu0 %v2841
        %2978 = vmatpush1.bf16.msra.mxu0 %v2840
        %2979 = vmatprep.subr.bf16.mxu0 %v2843
        %2980 = vmatpush1.bf16.msra.mxu0 %v2842
        %2981 = vmatprep.subr.bf16.mxu0 %v2845
        %2982 = vmatpush1.bf16.msra.mxu0 %v2844
        %2983 = vmatprep.subr.bf16.mxu0 %v2847
        %2984 = vmatpush1.bf16.msra.mxu0 %v2846
        %2985 = vmatprep.subr.bf16.mxu0 %v2849
        %2986 = vmatpush1.bf16.msra.mxu0 %v2848
        %2987 = vmatprep.subr.bf16.mxu0 %v2851
        %2988 = vmatpush1.bf16.msra.mxu0 %v2850
        %2989 = vmatprep.subr.bf16.mxu0 %v2853
        %2990 = vmatpush1.bf16.msra.mxu0 %v2852
        %2991 = vmatprep.subr.bf16.mxu0 %v2855
        %2992 = vmatpush1.bf16.msra.mxu0 %v2854
        %2993 = vmatprep.subr.bf16.mxu0 %v2857
        %2994 = vmatpush1.bf16.msra.mxu0 %v2856
        %2995 = vmatprep.subr.bf16.mxu0 %v2859
        %2996 = vmatpush1.bf16.msra.mxu0 %v2858
        %2997 = vmatprep.subr.bf16.mxu0 %v2861
        %2998 = vmatpush1.bf16.msra.mxu0 %v2860
        %2999 = vmatprep.subr.bf16.mxu0 %v2863
        %3000 = vmatpush1.bf16.msra.mxu0 %v2862
        %3001 = vmatprep.subr.bf16.mxu0 %v2865
        %3002 = vmatpush1.bf16.msra.mxu0 %v2864
        %3003 = vmatprep.subr.bf16.mxu0 %v2867
        %3004 = vmatpush1.bf16.msra.mxu0 %v2866
        %3005 = vmatprep.subr.bf16.mxu0 %v2869
        %3006 = vmatpush1.bf16.msra.mxu0 %v2868
        %3007 = vmatprep.mubr.bf16.mxu0 %v2600
        %3008 = vmatmul.mubr.bf16.gmra.mrb[0].mxu0 %v2599
        %v3009 = vpop.f32.mrb[0].mxu0
        %v3010 = vadd.f32 %v2969, %v3009
        %v3011 = vpop.f32.mrb[0].mxu0
        %v3012 = vadd.f32 %v2971, %v3011
        %v3013 = vpop.f32.mrb[0].mxu0
        %v3014 = vpop.f32.mrb[0].mxu0
        %3015 = vdwg.mxu0
        %v3016 = vadd.f32 %v2005, %v3010
        %v3017 = vadd.f32 %v2006, %v3012
        %s3018 = scalar_lea.vmem %s699, 4
        %v3019 = vld [vmem:[%s3018] ss:$8 sm:$0x3]
        %s3020 = scalar_lea.vmem %s699, 5
        %v3021 = vld [vmem:[%s3020] ss:$8 sm:$0x3]
        %v3022 = vadd.f32 %v3016, %v3017
        %3023 = vadd.xlane.f32.xlu0 %v3022
        %v3024 = vpop.xlane.xlu0 %3023
        %v3025 = vmul.f32 %v3024, %v1967
        %v3026 = vsub.f32 %v3016, %v3025
        %v3027 = vsub.f32 %v3017, %v3025
        %v3028 = vmul.f32 %v3026, %v3026
        %v3029 = vmul.f32 %v3027, %v3027
        %v3030 = vadd.f32 %v3028, %v3029
        %3031 = vadd.xlane.f32.xlu0 %v3030
        %v3032 = vpop.xlane.xlu0 %3031
        %v3033 = vmul.f32 %v3032, %v1967
        %v3034 = vadd.f32 %v3033, 1e-12
        %v3035 = vrsqrt.pop %v3034
        %v3036 = vmul.f32 %v3026, %v3035
        %v3037 = vmul.f32 %v3027, %v3035
        %v3039 = vlaneseq
        %v3040 = vshrl.u32 %v3039, 7
        %v3041 = vsub.s32 0, %v3040
        %v3042 = vrot.slane %v3019, %v3041
        %v3043 = vlaneseq
        %v3044 = vshrl.u32 %v3043, 7
        %v3045 = vsub.s32 1, %v3044
        %v3046 = vrot.slane %v3019, %v3045
        %v3049 = vmul.f32 %v3036, %v3042
        %v3050 = vmul.f32 %v3037, %v3046
        %v3052 = vlaneseq
        %v3053 = vshrl.u32 %v3052, 7
        %v3054 = vsub.s32 0, %v3053
        %v3055 = vrot.slane %v3021, %v3054
        %v3056 = vlaneseq
        %v3057 = vshrl.u32 %v3056, 7
        %v3058 = vsub.s32 1, %v3057
        %v3059 = vrot.slane %v3021, %v3058
        %v3062 = vadd.f32 %v3049, %v3055
        %v3063 = vadd.f32 %v3050, %v3059
        %3064 = vst [vmem:[#allocation2] sm:$0xff] %v3062
        %3065 = vst [vmem:[#allocation2 + $0x8] sm:$0xff] %v3063
        %p3066 = scmp.eq.s32.totalorder %s41, 1
        // Predicated region
        $region97: #{tpu_custom_call.1} parent=75 // pred_check
          %p3067 = pneg %p3066
        $region98: #{tpu_custom_call.1} parent=75 // pred_check_branch
          %3069 = sbr.rel (%p3067) target = $region100
        $region99: #{tpu_custom_call.1} parent=75 // pred_region
          %v3070 = vld [vmem:[%s10] sm:$0xff]
          %v3071 = vld [vmem:[%s10 + $0x8] sm:$0xff]
          %v3072 = vld [vmem:[%s10 + $0x10] sm:$0xff]
          %v3073 = vld [vmem:[%s10 + $0x18] sm:$0xff]
          %v3074 = vld [vmem:[%s10 + $0x20] sm:$0xff]
          %v3075 = vld [vmem:[%s10 + $0x28] sm:$0xff]
          %v3076 = vld [vmem:[%s10 + $0x30] sm:$0xff]
          %v3077 = vld [vmem:[%s10 + $0x38] sm:$0xff]
          %v3078 = vld [vmem:[%s10 + $0x40] sm:$0xff]
          %v3079 = vld [vmem:[%s10 + $0x48] sm:$0xff]
          %v3080 = vld [vmem:[%s10 + $0x50] sm:$0xff]
          %v3081 = vld [vmem:[%s10 + $0x58] sm:$0xff]
          %v3082 = vld [vmem:[%s10 + $0x60] sm:$0xff]
          %v3083 = vld [vmem:[%s10 + $0x68] sm:$0xff]
          %v3084 = vld [vmem:[%s10 + $0x70] sm:$0xff]
          %v3085 = vld [vmem:[%s10 + $0x78] sm:$0xff]
          %v3086 = vld [vmem:[%s10 + $0x80] sm:$0xff]
          %v3087 = vld [vmem:[%s10 + $0x88] sm:$0xff]
          %v3088 = vld [vmem:[%s10 + $0x90] sm:$0xff]
          %v3089 = vld [vmem:[%s10 + $0x98] sm:$0xff]
          %v3090 = vld [vmem:[%s10 + $0xa0] sm:$0xff]
          %v3091 = vld [vmem:[%s10 + $0xa8] sm:$0xff]
          %v3092 = vld [vmem:[%s10 + $0xb0] sm:$0xff]
          %v3093 = vld [vmem:[%s10 + $0xb8] sm:$0xff]
          %v3094 = vld [vmem:[%s10 + $0xc0] sm:$0xff]
          %v3095 = vld [vmem:[%s10 + $0xc8] sm:$0xff]
          %v3096 = vld [vmem:[%s10 + $0xd0] sm:$0xff]
          %v3097 = vld [vmem:[%s10 + $0xd8] sm:$0xff]
          %v3098 = vld [vmem:[%s10 + $0xe0] sm:$0xff]
          %v3099 = vld [vmem:[%s10 + $0xe8] sm:$0xff]
          %v3100 = vld [vmem:[%s10 + $0xf0] sm:$0xff]
          %v3101 = vld [vmem:[%s10 + $0xf8] sm:$0xff]
          %v3102 = vpack.c.bf16 %v3062, %v3062
          %v3103 = vpack.c.bf16 %v3063, %v3063
          %v3104 = vld [vmem:[%s11] sm:$0x3]
          %v3137 = vunpack.c.l.b16 %v3070
          %v3138 = vunpack.c.h.b16 %v3070
          %v3139 = vunpack.c.l.b16 %v3071
          %v3140 = vunpack.c.h.b16 %v3071
          %v3141 = vunpack.c.l.b16 %v3072
          %v3142 = vunpack.c.h.b16 %v3072
          %v3143 = vunpack.c.l.b16 %v3073
          %v3144 = vunpack.c.h.b16 %v3073
          %v3145 = vunpack.c.l.b16 %v3074
          %v3146 = vunpack.c.h.b16 %v3074
          %v3147 = vunpack.c.l.b16 %v3075
          %v3148 = vunpack.c.h.b16 %v3075
          %v3149 = vunpack.c.l.b16 %v3076
          %v3150 = vunpack.c.h.b16 %v3076
          %v3151 = vunpack.c.l.b16 %v3077
          %v3152 = vunpack.c.h.b16 %v3077
          %v3153 = vunpack.c.l.b16 %v3078
          %v3154 = vunpack.c.h.b16 %v3078
          %v3155 = vunpack.c.l.b16 %v3079
          %v3156 = vunpack.c.h.b16 %v3079
          %v3157 = vunpack.c.l.b16 %v3080
          %v3158 = vunpack.c.h.b16 %v3080
          %v3159 = vunpack.c.l.b16 %v3081
          %v3160 = vunpack.c.h.b16 %v3081
          %v3161 = vunpack.c.l.b16 %v3082
          %v3162 = vunpack.c.h.b16 %v3082
          %v3163 = vunpack.c.l.b16 %v3083
          %v3164 = vunpack.c.h.b16 %v3083
          %v3165 = vunpack.c.l.b16 %v3084
          %v3166 = vunpack.c.h.b16 %v3084
          %v3167 = vunpack.c.l.b16 %v3085
          %v3168 = vunpack.c.h.b16 %v3085
          %v3169 = vunpack.c.l.b16 %v3086
          %v3170 = vunpack.c.h.b16 %v3086
          %v3171 = vunpack.c.l.b16 %v3087
          %v3172 = vunpack.c.h.b16 %v3087
          %v3173 = vunpack.c.l.b16 %v3088
          %v3174 = vunpack.c.h.b16 %v3088
          %v3175 = vunpack.c.l.b16 %v3089
          %v3176 = vunpack.c.h.b16 %v3089
          %v3177 = vunpack.c.l.b16 %v3090
          %v3178 = vunpack.c.h.b16 %v3090
          %v3179 = vunpack.c.l.b16 %v3091
          %v3180 = vunpack.c.h.b16 %v3091
          %v3181 = vunpack.c.l.b16 %v3092
          %v3182 = vunpack.c.h.b16 %v3092
          %v3183 = vunpack.c.l.b16 %v3093
          %v3184 = vunpack.c.h.b16 %v3093
          %v3185 = vunpack.c.l.b16 %v3094
          %v3186 = vunpack.c.h.b16 %v3094
          %v3187 = vunpack.c.l.b16 %v3095
          %v3188 = vunpack.c.h.b16 %v3095
          %v3189 = vunpack.c.l.b16 %v3096
          %v3190 = vunpack.c.h.b16 %v3096
          %v3191 = vunpack.c.l.b16 %v3097
          %v3192 = vunpack.c.h.b16 %v3097
          %v3193 = vunpack.c.l.b16 %v3098
          %v3194 = vunpack.c.h.b16 %v3098
          %v3195 = vunpack.c.l.b16 %v3099
          %v3196 = vunpack.c.h.b16 %v3099
          %v3197 = vunpack.c.l.b16 %v3100
          %v3198 = vunpack.c.h.b16 %v3100
          %v3199 = vunpack.c.l.b16 %v3101
          %v3200 = vunpack.c.h.b16 %v3101
          %v3201 = vpack.c.b16 %v3139, %v3137
          %v3202 = vpack.c.b16 %v3140, %v3138
          %v3203 = vpack.c.b16 %v3143, %v3141
          %v3204 = vpack.c.b16 %v3144, %v3142
          %v3205 = vpack.c.b16 %v3147, %v3145
          %v3206 = vpack.c.b16 %v3148, %v3146
          %v3207 = vpack.c.b16 %v3151, %v3149
          %v3208 = vpack.c.b16 %v3152, %v3150
          %v3209 = vpack.c.b16 %v3155, %v3153
          %v3210 = vpack.c.b16 %v3156, %v3154
          %v3211 = vpack.c.b16 %v3159, %v3157
          %v3212 = vpack.c.b16 %v3160, %v3158
          %v3213 = vpack.c.b16 %v3163, %v3161
          %v3214 = vpack.c.b16 %v3164, %v3162
          %v3215 = vpack.c.b16 %v3167, %v3165
          %v3216 = vpack.c.b16 %v3168, %v3166
          %v3217 = vpack.c.b16 %v3171, %v3169
          %v3218 = vpack.c.b16 %v3172, %v3170
          %v3219 = vpack.c.b16 %v3175, %v3173
          %v3220 = vpack.c.b16 %v3176, %v3174
          %v3221 = vpack.c.b16 %v3179, %v3177
          %v3222 = vpack.c.b16 %v3180, %v3178
          %v3223 = vpack.c.b16 %v3183, %v3181
          %v3224 = vpack.c.b16 %v3184, %v3182
          %v3225 = vpack.c.b16 %v3187, %v3185
          %v3226 = vpack.c.b16 %v3188, %v3186
          %v3227 = vpack.c.b16 %v3191, %v3189
          %v3228 = vpack.c.b16 %v3192, %v3190
          %v3229 = vpack.c.b16 %v3195, %v3193
          %v3230 = vpack.c.b16 %v3196, %v3194
          %v3231 = vpack.c.b16 %v3199, %v3197
          %v3232 = vpack.c.b16 %v3200, %v3198
          %v3266 = vlaneseq
          %v3267 = vshrl.u32 %v3266, 7
          %v3268 = vsub.s32 0, %v3267
          %v3269 = vrot.slane %v3104, %v3268
          %v3270 = vlaneseq
          %v3271 = vshrl.u32 %v3270, 7
          %v3272 = vsub.s32 1, %v3271
          %v3273 = vrot.slane %v3104, %v3272
          %3276 = vmatprep.subr.bf16.mxu0 %v3202
          %3277 = vmatpush1.bf16.msra.mxu0 %v3201
          %3278 = vmatprep.subr.bf16.mxu0 %v3204
          %3279 = vmatpush1.bf16.msra.mxu0 %v3203
          %3280 = vmatprep.subr.bf16.mxu0 %v3206
          %3281 = vmatpush1.bf16.msra.mxu0 %v3205
          %3282 = vmatprep.subr.bf16.mxu0 %v3208
          %3283 = vmatpush1.bf16.msra.mxu0 %v3207
          %3284 = vmatprep.subr.bf16.mxu0 %v3210
          %3285 = vmatpush1.bf16.msra.mxu0 %v3209
          %3286 = vmatprep.subr.bf16.mxu0 %v3212
          %3287 = vmatpush1.bf16.msra.mxu0 %v3211
          %3288 = vmatprep.subr.bf16.mxu0 %v3214
          %3289 = vmatpush1.bf16.msra.mxu0 %v3213
          %3290 = vmatprep.subr.bf16.mxu0 %v3216
          %3291 = vmatpush1.bf16.msra.mxu0 %v3215
          %3292 = vmatprep.subr.bf16.mxu0 %v3218
          %3293 = vmatpush1.bf16.msra.mxu0 %v3217
          %3294 = vmatprep.subr.bf16.mxu0 %v3220
          %3295 = vmatpush1.bf16.msra.mxu0 %v3219
          %3296 = vmatprep.subr.bf16.mxu0 %v3222
          %3297 = vmatpush1.bf16.msra.mxu0 %v3221
          %3298 = vmatprep.subr.bf16.mxu0 %v3224
          %3299 = vmatpush1.bf16.msra.mxu0 %v3223
          %3300 = vmatprep.subr.bf16.mxu0 %v3226
          %3301 = vmatpush1.bf16.msra.mxu0 %v3225
          %3302 = vmatprep.subr.bf16.mxu0 %v3228
          %3303 = vmatpush1.bf16.msra.mxu0 %v3227
          %3304 = vmatprep.subr.bf16.mxu0 %v3230
          %3305 = vmatpush1.bf16.msra.mxu0 %v3229
          %3306 = vmatprep.subr.bf16.mxu0 %v3232
          %3307 = vmatpush1.bf16.msra.mxu0 %v3231
          %3308 = vmatprep.mubr.bf16.mxu0 %v3103
          %3309 = vmatmul.mubr.bf16.gmra.mrb[0].mxu0 %v3102
          %v3310 = vpop.f32.mrb[0].mxu0
          %v3311 = vadd.f32 %v3269, %v3310
          %v3312 = vpop.f32.mrb[0].mxu0
          %v3313 = vadd.f32 %v3273, %v3312
          %v3314 = vpop.f32.mrb[0].mxu0
          %v3315 = vpop.f32.mrb[0].mxu0
          %3316 = vdwg.mxu0
          %v3317 = vtanh.pop %v3311
          %v3318 = vtanh.pop %v3313
          %v3319 = vld [vmem:[%s12] sm:$0xff]
          %v3320 = vld [vmem:[%s12 + $0x8] sm:$0xff]
          %v3321 = vld [vmem:[%s12 + $0x10] sm:$0xff]
          %v3322 = vld [vmem:[%s12 + $0x18] sm:$0xff]
          %v3323 = vld [vmem:[%s12 + $0x20] sm:$0xff]
          %v3324 = vld [vmem:[%s12 + $0x28] sm:$0xff]
          %v3325 = vld [vmem:[%s12 + $0x30] sm:$0xff]
          %v3326 = vld [vmem:[%s12 + $0x38] sm:$0xff]
          %v3327 = vld [vmem:[%s12 + $0x40] sm:$0xff]
          %v3328 = vld [vmem:[%s12 + $0x48] sm:$0xff]
          %v3329 = vld [vmem:[%s12 + $0x50] sm:$0xff]
          %v3330 = vld [vmem:[%s12 + $0x58] sm:$0xff]
          %v3331 = vld [vmem:[%s12 + $0x60] sm:$0xff]
          %v3332 = vld [vmem:[%s12 + $0x68] sm:$0xff]
          %v3333 = vld [vmem:[%s12 + $0x70] sm:$0xff]
          %v3334 = vld [vmem:[%s12 + $0x78] sm:$0xff]
          %v3335 = vld [vmem:[%s12 + $0x80] sm:$0xff]
          %v3336 = vld [vmem:[%s12 + $0x88] sm:$0xff]
          %v3337 = vld [vmem:[%s12 + $0x90] sm:$0xff]
          %v3338 = vld [vmem:[%s12 + $0x98] sm:$0xff]
          %v3339 = vld [vmem:[%s12 + $0xa0] sm:$0xff]
          %v3340 = vld [vmem:[%s12 + $0xa8] sm:$0xff]
          %v3341 = vld [vmem:[%s12 + $0xb0] sm:$0xff]
          %v3342 = vld [vmem:[%s12 + $0xb8] sm:$0xff]
          %v3343 = vld [vmem:[%s12 + $0xc0] sm:$0xff]
          %v3344 = vld [vmem:[%s12 + $0xc8] sm:$0xff]
          %v3345 = vld [vmem:[%s12 + $0xd0] sm:$0xff]
          %v3346 = vld [vmem:[%s12 + $0xd8] sm:$0xff]
          %v3347 = vld [vmem:[%s12 + $0xe0] sm:$0xff]
          %v3348 = vld [vmem:[%s12 + $0xe8] sm:$0xff]
          %v3349 = vld [vmem:[%s12 + $0xf0] sm:$0xff]
          %v3350 = vld [vmem:[%s12 + $0xf8] sm:$0xff]
          %v3351 = vld [vmem:[#allocation4] sm:$0x1]
          %3352 = vmatprep.subr.mxu0 0.0
          %3353 = vmatpush1.msra.mxu0 %v3319
          %3354 = vmatprep.subr.mxu0 0.0
          %3355 = vmatpush1.msra.mxu0 %v3320
          %3356 = vmatprep.subr.mxu0 0.0
          %3357 = vmatpush1.msra.mxu0 %v3321
          %3358 = vmatprep.subr.mxu0 0.0
          %3359 = vmatpush1.msra.mxu0 %v3322
          %3360 = vmatprep.subr.mxu0 0.0
          %3361 = vmatpush1.msra.mxu0 %v3323
          %3362 = vmatprep.subr.mxu0 0.0
          %3363 = vmatpush1.msra.mxu0 %v3324
          %3364 = vmatprep.subr.mxu0 0.0
          %3365 = vmatpush1.msra.mxu0 %v3325
          %3366 = vmatprep.subr.mxu0 0.0
          %3367 = vmatpush1.msra.mxu0 %v3326
          %3368 = vmatprep.subr.mxu0 0.0
          %3369 = vmatpush1.msra.mxu0 %v3327
          %3370 = vmatprep.subr.mxu0 0.0
          %3371 = vmatpush1.msra.mxu0 %v3328
          %3372 = vmatprep.subr.mxu0 0.0
          %3373 = vmatpush1.msra.mxu0 %v3329
          %3374 = vmatprep.subr.mxu0 0.0
          %3375 = vmatpush1.msra.mxu0 %v3330
          %3376 = vmatprep.subr.mxu0 0.0
          %3377 = vmatpush1.msra.mxu0 %v3331
          %3378 = vmatprep.subr.mxu0 0.0
          %3379 = vmatpush1.msra.mxu0 %v3332
          %3380 = vmatprep.subr.mxu0 0.0
          %3381 = vmatpush1.msra.mxu0 %v3333
          %3382 = vmatprep.subr.mxu0 0.0
          %3383 = vmatpush1.msra.mxu0 %v3334
          %3384 = vmatprep.subr.mxu0 0.0
          %3385 = vmatpush1.msra.mxu0 %v3335
          %3386 = vmatprep.subr.mxu0 0.0
          %3387 = vmatpush1.msra.mxu0 %v3336
          %3388 = vmatprep.subr.mxu0 0.0
          %3389 = vmatpush1.msra.mxu0 %v3337
          %3390 = vmatprep.subr.mxu0 0.0
          %3391 = vmatpush1.msra.mxu0 %v3338
          %3392 = vmatprep.subr.mxu0 0.0
          %3393 = vmatpush1.msra.mxu0 %v3339
          %3394 = vmatprep.subr.mxu0 0.0
          %3395 = vmatpush1.msra.mxu0 %v3340
          %3396 = vmatprep.subr.mxu0 0.0
          %3397 = vmatpush1.msra.mxu0 %v3341
          %3398 = vmatprep.subr.mxu0 0.0
          %3399 = vmatpush1.msra.mxu0 %v3342
          %3400 = vmatprep.subr.mxu0 0.0
          %3401 = vmatpush1.msra.mxu0 %v3343
          %3402 = vmatprep.subr.mxu0 0.0
          %3403 = vmatpush1.msra.mxu0 %v3344
          %3404 = vmatprep.subr.mxu0 0.0
          %3405 = vmatpush1.msra.mxu0 %v3345
          %3406 = vmatprep.subr.mxu0 0.0
          %3407 = vmatpush1.msra.mxu0 %v3346
          %3408 = vmatprep.subr.mxu0 0.0
          %3409 = vmatpush1.msra.mxu0 %v3347
          %3410 = vmatprep.subr.mxu0 0.0
          %3411 = vmatpush1.msra.mxu0 %v3348
          %3412 = vmatprep.subr.mxu0 0.0
          %3413 = vmatpush1.msra.mxu0 %v3349
          %3414 = vmatprep.subr.mxu0 0.0
          %3415 = vmatpush1.msra.mxu0 %v3350
          %3416 = vmatprep.mubr.f32.mxu0 %v3318
          %3417 = vmatmul.mubr.f32.gmra.mrb[0].mxu0 %v3317
          %v3418 = vpop.f32.mrb[0].mxu0
          %v3419 = vadd.f32 %v3351, %v3418
          %v3420 = vpop.f32.mrb[0].mxu0
          %3421 = vdwg.mxu0
          %vm3422 = vcmask 0
          %3423 = vst.msk [vmem:[%s702] sm:$0x1] %vm3422, %v3419
        $region100: #{tpu_custom_call.1} parent=75 // pred_fallthru
          _
        %p3424 = scmp.lt.s32.totalorder %s40, 1
        %s3425 = scalar_select %p3424, %s40, 1
        %s3426 = scalar_lea.vmem %s14, %s3425
        // Predicated region
        $region101: #{tpu_custom_call.1} parent=75 // pred_check
          %p3427 = pneg %p405
        $region102: #{tpu_custom_call.1} parent=75 // pred_check_branch
          %3429 = sbr.rel (%p3427) target = $region104
        $region103: #{tpu_custom_call.1} parent=75 // pred_region
          _
        $region104: #{tpu_custom_call.1} parent=75 // pred_fallthru
          _
      $region76: #{tpu_custom_call.1} parent=5 // pred_fallthru
        _
      %p3430 = scmp.le.s32.totalorder 2, %s31
      // Predicated region
      $region105: #{tpu_custom_call.1} parent=5 // pred_check
        %p3431 = pneg %p3430
      $region106: #{tpu_custom_call.1} parent=5 // pred_check_branch
        %3433 = sbr.rel (%p3431) target = $region108
      $region107: #{tpu_custom_call.1} parent=5 // pred_region
        %s3434 = ssub.s32 %s31, 2
        // Predicated region
        $region109: #{tpu_custom_call.1} parent=107 // pred_check
          %p3435 = pneg %p411
        $region110: #{tpu_custom_call.1} parent=107 // pred_check_branch
          %3437 = sbr.rel (%p3435) target = $region112
        $region111: #{tpu_custom_call.1} parent=107 // pred_region
          %p3438 = scmp.lt.s32.totalorder %s42, 1
          %s3439 = scalar_select %p3438, %s42, 1
          %s3440 = scalar_lea.vmem %s14, %s3439
        $region112: #{tpu_custom_call.1} parent=107 // pred_fallthru
          _
      $region108: #{tpu_custom_call.1} parent=5 // pred_fallthru
        _
    $region6: #{tpu_custom_call.1} parent=1 // loop_footer
      %s35 = sadd.s32 1, %s31
    $region7: #{tpu_custom_call.1} parent=1 // loop_footer_branch
      %30 = sbr.rel target = $region3
    $region8: #{tpu_custom_call.1} parent=1 // loop_exit
      _
    %3441 = vsyncpa [#allocation6], 1
    %s3442 = scalar_lea.sflag [#allocation6], 1
    %3443 = vsyncpa %s3442, 1
    %3444 = vsyncpa [#allocation8], 1
    %s3445 = scalar_lea.sflag [#allocation8], 1
    %3446 = vsyncpa %s3445, 1
    %3447 = vsyncpa [#allocation11], 1
    %s3448 = scalar_lea.sflag [#allocation11], 1
    %3449 = vsyncpa %s3448, 1

</llo_original>
